<compile_context>
chip_gen: v6e
topology: v6e:2x2x1
jax: 0.10.0
libtpu: 0.0.40
codegen_flags: <defaults>
</compile_context>

<pallas_src>
import functools

import jax
import jax.numpy as jnp
from jax.experimental import pallas as pl
from jax.experimental.pallas import tpu as pltpu


def _make_conv_bn_relu_kernel(KH, KW, Wp, m_out):
    """Kernel: one padded-row chunk -> all conv taps -> + shift -> ReLU."""

    def kernel(x_ref, w_ref, shift_ref, o_ref, a_ref):
        # x_ref:     (1, R*Wp, Cin)       bf16  flattened padded-row chunk
        # w_ref:     (KH, KW, Cin, Coutp) bf16  BN scale pre-folded
        # shift_ref: (1, Coutp)           f32
        # o_ref:     (1, m_out, Coutp)    f32   (m_out = tile_oh * Wp)
        # a_ref:     (R*Wp, Cin)          f32   VMEM scratch (32-bit layout makes
        #                                        the unaligned tap windows cheap/robust)
        a_ref[...] = x_ref[0].astype(jnp.float32)

        def tap(kh, kw):
            off = kh * Wp + kw  # static python int
            a = a_ref[off:off + m_out, :].astype(jnp.bfloat16)   # (m_out, Cin)
            return jnp.dot(a, w_ref[kh, kw],
                           preferred_element_type=jnp.float32)   # MXU, f32 acc

        # Accumulate all KH*KW taps into the VMEM-resident f32 output block.
        o_ref[0] = tap(0, 0)
        for kh in range(KH):
            for kw in range(KW):
                if kh or kw:
                    o_ref[0] += tap(kh, kw)

        # Fused BatchNorm shift + ReLU epilogue (f32).
        o_ref[0] = jnp.maximum(o_ref[0] + shift_ref[...], 0.0)

    return kernel


def basic_conv2d(x_nchw, weight, bias, gamma, beta, running_mean, running_var,
                 *, stride=1, padding=1, eps=1e-5, tile_oh=None):
    """BasicConv2d forward (Conv2d + BatchNorm2d(eval) + ReLU). NCHW in/out."""
    N, Cin, H, W = x_nchw.shape
    Cout, Cin_w, KH, KW = weight.shape
    assert Cin_w == Cin

    # Dense (stride-1) output geometry; strided output is a subsample of it.
    Ho1 = H + 2 * padding - KH + 1
    Wo1 = W + 2 * padding - KW + 1
    Wp = W + 2 * padding
    assert Ho1 > 0 and Wo1 > 0

    # ---- tiling over output rows -----------------------------------------
    if tile_oh is None:
        # Target ~512 matmul rows per grid step (amortizes per-step overhead,
        # keeps per-step VMEM modest for v7x's 64 MiB).
        tile_oh = max(1, min(Ho1, max(1, 512 // Wp)))
    tile_oh = max(1, min(tile_oh, Ho1))
    n_chunks = -(-Ho1 // tile_oh)
    Ho_t = n_chunks * tile_oh
    R = tile_oh + KH                 # chunk rows incl. halo (+1 row of slack)
    m_out = tile_oh * Wp             # matmul M per grid step
    NC = N * n_chunks

    # ---- activations: NCHW -> padded NHWC -> overlapping row chunks (bf16) --
    x_nhwc = jnp.transpose(x_nchw, (0, 2, 3, 1)).astype(jnp.bfloat16)
    Hp_t = Ho_t + KH
    pad_bottom = Hp_t - padding - H          # >= padding + 1, covers halo/tail
    x_pad = jnp.pad(x_nhwc, ((0, 0), (padding, pad_bottom),
                             (padding, padding), (0, 0)))
    chunks = [x_pad[:, c * tile_oh: c * tile_oh + R] for c in range(n_chunks)]
    x_chunks = jnp.stack(chunks, axis=1).reshape(NC, R * Wp, Cin)

    # ---- fold conv bias + BatchNorm (running stats) into weights / shift ----
    scale = gamma / jnp.sqrt(running_var + eps)               # (Cout,)
    shift = beta + (bias - running_mean) * scale              # (Cout,)
    w_kkcf = jnp.transpose(weight, (2, 3, 1, 0)) * scale      # (KH,KW,Cin,Cout)

    Cout_p = max(128, -(-Cout // 128) * 128)                  # lane-dense output
    w_p = jnp.pad(w_kkcf, ((0, 0), (0, 0), (0, 0), (0, Cout_p - Cout)))
    w_p = w_p.astype(jnp.bfloat16)
    shift_p = jnp.pad(shift, (0, Cout_p - Cout)).reshape(1, Cout_p)
    shift_p = shift_p.astype(jnp.float32)

    kernel = _make_conv_bn_relu_kernel(KH, KW, Wp, m_out)

    flops = 2 * NC * m_out * KH * KW * Cin * Cout_p
    bytes_accessed = (x_chunks.size * 2 + w_p.size * 2 + shift_p.size * 4
                      + NC * m_out * Cout_p * 4)

    out = pl.pallas_call(
        kernel,
        out_shape=jax.ShapeDtypeStruct((NC, m_out, Cout_p), jnp.float32),
        grid_spec=pltpu.PrefetchScalarGridSpec(
            num_scalar_prefetch=0,
            grid=(NC,),
            in_specs=[
                pl.BlockSpec((1, R * Wp, Cin), lambda i: (i, 0, 0)),
                pl.BlockSpec((KH, KW, Cin, Cout_p), lambda i: (0, 0, 0, 0)),
                pl.BlockSpec((1, Cout_p), lambda i: (0, 0)),
            ],
            out_specs=pl.BlockSpec((1, m_out, Cout_p), lambda i: (i, 0, 0)),
            scratch_shapes=[pltpu.VMEM((R * Wp, Cin), jnp.float32)],
        ),
        compiler_params=pltpu.CompilerParams(
            dimension_semantics=("parallel",),
            vmem_limit_bytes=32 * 1024 * 1024,
        ),
        cost_estimate=pl.CostEstimate(
            flops=int(flops), transcendentals=0,
            bytes_accessed=int(bytes_accessed)),
    )(x_chunks, w_p, shift_p)

    # (NC, tile_oh*Wp, Cout_p) -> (N, Ho_t, Wp, Cout_p) -> valid region.
    out = out.reshape(N, Ho_t, Wp, Cout_p)[:, :Ho1, :Wo1, :Cout]
    if stride != 1:
        out = out[:, ::stride, ::stride, :]
    return jnp.transpose(out, (0, 3, 1, 2))   # back to NCHW, f32


if __name__ == "__main__":
    key = jax.random.PRNGKey(0)
    k_x, k_w, k_b, k_g, k_be, k_m, k_v = jax.random.split(key, 7)

    # Small shapes consistent with the module: Conv2d(4 -> 8, k=3, padding=1).
    N, Cin, H, W = 2, 4, 16, 16
    Cout, KH, KW = 8, 3, 3

    x = jax.random.normal(k_x, (N, Cin, H, W), dtype=jnp.float32)

    fan_in = Cin * KH * KW
    bound = 1.0 / (fan_in ** 0.5)
    weight = jax.random.uniform(k_w, (Cout, Cin, KH, KW),
                                minval=-bound, maxval=bound, dtype=jnp.float32)
    bias = jax.random.uniform(k_b, (Cout,), minval=-bound, maxval=bound,
                              dtype=jnp.float32)
    gamma = 1.0 + 0.1 * jax.random.normal(k_g, (Cout,), dtype=jnp.float32)
    beta = 0.1 * jax.random.normal(k_be, (Cout,), dtype=jnp.float32)
    running_mean = 0.1 * jax.random.normal(k_m, (Cout,), dtype=jnp.float32)
    running_var = jnp.abs(jax.random.normal(k_v, (Cout,), dtype=jnp.float32)) + 0.5

    fwd = jax.jit(functools.partial(basic_conv2d, stride=1, padding=1))
    out = jax.block_until_ready(fwd(x, weight, bias, gamma, beta,
                                    running_mean, running_var))

    assert out.shape == (N, Cout, H, W), out.shape
    assert bool(jnp.all(out >= 0.0))  # ReLU post-condition

    # Reference: same bf16-rounded operands, f32 math via XLA conv.
    scale = gamma / jnp.sqrt(running_var + 1e-5)
    shift = beta + (bias - running_mean) * scale
    w_fold = (weight * scale[:, None, None, None]).astype(jnp.bfloat16).astype(jnp.float32)
    x_bf = x.astype(jnp.bfloat16).astype(jnp.float32)
    conv = jax.lax.conv_general_dilated(
        x_bf, w_fold, (1, 1), ((1, 1), (1, 1)),
        dimension_numbers=("NCHW", "OIHW", "NCHW"),
        precision=jax.lax.Precision.HIGHEST)
    ref = jnp.maximum(conv + shift[None, :, None, None], 0.0)
    err = float(jnp.max(jnp.abs(out - ref)))
    assert err < 2e-2, f"max abs err {err}"

    print("KERNEL_OK")
</pallas_src>

<mosaic_0001>
module attributes {stable_mosaic.version = 11 : i64} {
  func.func @kernel(%arg0: i32, %arg1: memref<1x342x4xbf16, #tpu.memory_space<vmem>>, %arg2: memref<3x3x4x128xbf16, #tpu.memory_space<vmem>>, %arg3: memref<1x128xf32, #tpu.memory_space<vmem>>, %arg4: memref<1x288x128xf32, #tpu.memory_space<vmem>>, %arg5: memref<342x4xf32, #tpu.memory_space<vmem>>) attributes {dimension_semantics = [#tpu.dimension_semantics<parallel>], iteration_bounds = array<i64: 2>, scalar_prefetch = 0 : i64, scratch_operands = 1 : i64, tpu.core_type = #tpu.core_type<tc>, window_params = [{transform_indices = @transform_0, window_bounds = array<i64: 1, 342, 4>}, {pipeline_mode = #tpu.pipeline_mode<synchronous>, transform_indices = @transform_1, window_bounds = array<i64: 3, 3, 4, 128>}, {pipeline_mode = #tpu.pipeline_mode<synchronous>, transform_indices = @transform_2, window_bounds = array<i64: 1, 128>}, {transform_indices = @transform_3, window_bounds = array<i64: 1, 288, 128>}]} {
    %c0 = arith.constant 0 : index
    %c0_0 = arith.constant 0 : index
    %c0_1 = arith.constant 0 : index
    %0 = vector.load %arg1[%c0, %c0_0, %c0_1] : memref<1x342x4xbf16, #tpu.memory_space<vmem>>, vector<1x342x4xbf16>
    %1 = vector.shape_cast %0 : vector<1x342x4xbf16> to vector<342x4xbf16>
    %2 = arith.extf %1 : vector<342x4xbf16> to vector<342x4xf32>
    %c0_2 = arith.constant 0 : index
    %c0_3 = arith.constant 0 : index
    %3 = vector.load %arg5[%c0_2, %c0_3] : memref<342x4xf32, #tpu.memory_space<vmem>>, vector<342x4xf32>
    tpu.vector_store %arg5[%c0_2, %c0_3], %2 {strides = array<i32>} : memref<342x4xf32, #tpu.memory_space<vmem>>, vector<342x4xf32>,
    %c0_4 = arith.constant 0 : index
    %c0_5 = arith.constant 0 : index
    %4 = vector.load %arg5[%c0_4, %c0_5] : memref<342x4xf32, #tpu.memory_space<vmem>>, vector<288x4xf32>
    %5 = arith.truncf %4 : vector<288x4xf32> to vector<288x4xbf16>
    %c0_6 = arith.constant 0 : index
    %c0_7 = arith.constant 0 : index
    %c0_8 = arith.constant 0 : index
    %c0_9 = arith.constant 0 : index
    %6 = vector.load %arg2[%c0_6, %c0_7, %c0_8, %c0_9] : memref<3x3x4x128xbf16, #tpu.memory_space<vmem>>, vector<1x1x4x128xbf16>
    %7 = vector.shape_cast %6 : vector<1x1x4x128xbf16> to vector<4x128xbf16>
    %cst = arith.constant dense<0.000000e+00> : vector<288x128xf32>
    %8 = tpu.matmul %5, %7, %cst {dimension_numbers = #tpu.dot_dimension_numbers<[1], [0], [0], [1], [0, 0, 1, 1], [], []>} : vector<288x4xbf16>, vector<4x128xbf16>, vector<288x128xf32> -> vector<288x128xf32>
    %c0_10 = arith.constant 0 : index
    %c0_11 = arith.constant 0 : index
    %c0_12 = arith.constant 0 : index
    %9 = vector.load %arg4[%c0_10, %c0_11, %c0_12] : memref<1x288x128xf32, #tpu.memory_space<vmem>>, vector<1x288x128xf32>
    %10 = vector.shape_cast %9 : vector<1x288x128xf32> to vector<288x128xf32>
    %11 = vector.shape_cast %8 : vector<288x128xf32> to vector<1x288x128xf32>
    tpu.vector_store %arg4[%c0_10, %c0_11, %c0_12], %11 {strides = array<i32>} : memref<1x288x128xf32, #tpu.memory_space<vmem>>, vector<1x288x128xf32>,
    %c0_13 = arith.constant 0 : index
    %c0_14 = arith.constant 0 : index
    %c0_15 = arith.constant 0 : index
    %12 = vector.load %arg4[%c0_13, %c0_14, %c0_15] : memref<1x288x128xf32, #tpu.memory_space<vmem>>, vector<1x288x128xf32>
    %13 = vector.shape_cast %12 : vector<1x288x128xf32> to vector<288x128xf32>
    %c1 = arith.constant 1 : index
    %c0_16 = arith.constant 0 : index
    %14 = vector.load %arg5[%c1, %c0_16] : memref<342x4xf32, #tpu.memory_space<vmem>>, vector<288x4xf32>
    %15 = arith.truncf %14 : vector<288x4xf32> to vector<288x4xbf16>
    %c0_17 = arith.constant 0 : index
    %c1_18 = arith.constant 1 : index
    %c0_19 = arith.constant 0 : index
    %c0_20 = arith.constant 0 : index
    %16 = vector.load %arg2[%c0_17, %c1_18, %c0_19, %c0_20] : memref<3x3x4x128xbf16, #tpu.memory_space<vmem>>, vector<1x1x4x128xbf16>
    %17 = vector.shape_cast %16 : vector<1x1x4x128xbf16> to vector<4x128xbf16>
    %cst_21 = arith.constant dense<0.000000e+00> : vector<288x128xf32>
    %18 = tpu.matmul %15, %17, %cst_21 {dimension_numbers = #tpu.dot_dimension_numbers<[1], [0], [0], [1], [0, 0, 1, 1], [], []>} : vector<288x4xbf16>, vector<4x128xbf16>, vector<288x128xf32> -> vector<288x128xf32>
    %19 = arith.addf %13, %18 : vector<288x128xf32>
    %c0_22 = arith.constant 0 : index
    %c0_23 = arith.constant 0 : index
    %c0_24 = arith.constant 0 : index
    %20 = vector.load %arg4[%c0_22, %c0_23, %c0_24] : memref<1x288x128xf32, #tpu.memory_space<vmem>>, vector<1x288x128xf32>
    %21 = vector.shape_cast %20 : vector<1x288x128xf32> to vector<288x128xf32>
    %22 = vector.shape_cast %19 : vector<288x128xf32> to vector<1x288x128xf32>
    tpu.vector_store %arg4[%c0_22, %c0_23, %c0_24], %22 {strides = array<i32>} : memref<1x288x128xf32, #tpu.memory_space<vmem>>, vector<1x288x128xf32>,
    %c0_25 = arith.constant 0 : index
    %c0_26 = arith.constant 0 : index
    %c0_27 = arith.constant 0 : index
    %23 = vector.load %arg4[%c0_25, %c0_26, %c0_27] : memref<1x288x128xf32, #tpu.memory_space<vmem>>, vector<1x288x128xf32>
    %24 = vector.shape_cast %23 : vector<1x288x128xf32> to vector<288x128xf32>
    %c2 = arith.constant 2 : index
    %c0_28 = arith.constant 0 : index
    %25 = vector.load %arg5[%c2, %c0_28] : memref<342x4xf32, #tpu.memory_space<vmem>>, vector<288x4xf32>
    %26 = arith.truncf %25 : vector<288x4xf32> to vector<288x4xbf16>
    %c0_29 = arith.constant 0 : index
    %c2_30 = arith.constant 2 : index
    %c0_31 = arith.constant 0 : index
    %c0_32 = arith.constant 0 : index
    %27 = vector.load %arg2[%c0_29, %c2_30, %c0_31, %c0_32] : memref<3x3x4x128xbf16, #tpu.memory_space<vmem>>, vector<1x1x4x128xbf16>
    %28 = vector.shape_cast %27 : vector<1x1x4x128xbf16> to vector<4x128xbf16>
    %cst_33 = arith.constant dense<0.000000e+00> : vector<288x128xf32>
    %29 = tpu.matmul %26, %28, %cst_33 {dimension_numbers = #tpu.dot_dimension_numbers<[1], [0], [0], [1], [0, 0, 1, 1], [], []>} : vector<288x4xbf16>, vector<4x128xbf16>, vector<288x128xf32> -> vector<288x128xf32>
    %30 = arith.addf %24, %29 : vector<288x128xf32>
    %c0_34 = arith.constant 0 : index
    %c0_35 = arith.constant 0 : index
    %c0_36 = arith.constant 0 : index
    %31 = vector.load %arg4[%c0_34, %c0_35, %c0_36] : memref<1x288x128xf32, #tpu.memory_space<vmem>>, vector<1x288x128xf32>
    %32 = vector.shape_cast %31 : vector<1x288x128xf32> to vector<288x128xf32>
    %33 = vector.shape_cast %30 : vector<288x128xf32> to vector<1x288x128xf32>
    tpu.vector_store %arg4[%c0_34, %c0_35, %c0_36], %33 {strides = array<i32>} : memref<1x288x128xf32, #tpu.memory_space<vmem>>, vector<1x288x128xf32>,
    %c0_37 = arith.constant 0 : index
    %c0_38 = arith.constant 0 : index
    %c0_39 = arith.constant 0 : index
    %34 = vector.load %arg4[%c0_37, %c0_38, %c0_39] : memref<1x288x128xf32, #tpu.memory_space<vmem>>, vector<1x288x128xf32>
    %35 = vector.shape_cast %34 : vector<1x288x128xf32> to vector<288x128xf32>
    %c18 = arith.constant 18 : index
    %c0_40 = arith.constant 0 : index
    %36 = vector.load %arg5[%c18, %c0_40] : memref<342x4xf32, #tpu.memory_space<vmem>>, vector<288x4xf32>
    %37 = arith.truncf %36 : vector<288x4xf32> to vector<288x4xbf16>
    %c1_41 = arith.constant 1 : index
    %c0_42 = arith.constant 0 : index
    %c0_43 = arith.constant 0 : index
    %c0_44 = arith.constant 0 : index
    %38 = vector.load %arg2[%c1_41, %c0_42, %c0_43, %c0_44] : memref<3x3x4x128xbf16, #tpu.memory_space<vmem>>, vector<1x1x4x128xbf16>
    %39 = vector.shape_cast %38 : vector<1x1x4x128xbf16> to vector<4x128xbf16>
    %cst_45 = arith.constant dense<0.000000e+00> : vector<288x128xf32>
    %40 = tpu.matmul %37, %39, %cst_45 {dimension_numbers = #tpu.dot_dimension_numbers<[1], [0], [0], [1], [0, 0, 1, 1], [], []>} : vector<288x4xbf16>, vector<4x128xbf16>, vector<288x128xf32> -> vector<288x128xf32>
    %41 = arith.addf %35, %40 : vector<288x128xf32>
    %c0_46 = arith.constant 0 : index
    %c0_47 = arith.constant 0 : index
    %c0_48 = arith.constant 0 : index
    %42 = vector.load %arg4[%c0_46, %c0_47, %c0_48] : memref<1x288x128xf32, #tpu.memory_space<vmem>>, vector<1x288x128xf32>
    %43 = vector.shape_cast %42 : vector<1x288x128xf32> to vector<288x128xf32>
    %44 = vector.shape_cast %41 : vector<288x128xf32> to vector<1x288x128xf32>
    tpu.vector_store %arg4[%c0_46, %c0_47, %c0_48], %44 {strides = array<i32>} : memref<1x288x128xf32, #tpu.memory_space<vmem>>, vector<1x288x128xf32>,
    %c0_49 = arith.constant 0 : index
    %c0_50 = arith.constant 0 : index
    %c0_51 = arith.constant 0 : index
    %45 = vector.load %arg4[%c0_49, %c0_50, %c0_51] : memref<1x288x128xf32, #tpu.memory_space<vmem>>, vector<1x288x128xf32>
    %46 = vector.shape_cast %45 : vector<1x288x128xf32> to vector<288x128xf32>
    %c19 = arith.constant 19 : index
    %c0_52 = arith.constant 0 : index
    %47 = vector.load %arg5[%c19, %c0_52] : memref<342x4xf32, #tpu.memory_space<vmem>>, vector<288x4xf32>
    %48 = arith.truncf %47 : vector<288x4xf32> to vector<288x4xbf16>
    %c1_53 = arith.constant 1 : index
    %c1_54 = arith.constant 1 : index
    %c0_55 = arith.constant 0 : index
    %c0_56 = arith.constant 0 : index
    %49 = vector.load %arg2[%c1_53, %c1_54, %c0_55, %c0_56] : memref<3x3x4x128xbf16, #tpu.memory_space<vmem>>, vector<1x1x4x128xbf16>
    %50 = vector.shape_cast %49 : vector<1x1x4x128xbf16> to vector<4x128xbf16>
    %cst_57 = arith.constant dense<0.000000e+00> : vector<288x128xf32>
    %51 = tpu.matmul %48, %50, %cst_57 {dimension_numbers = #tpu.dot_dimension_numbers<[1], [0], [0], [1], [0, 0, 1, 1], [], []>} : vector<288x4xbf16>, vector<4x128xbf16>, vector<288x128xf32> -> vector<288x128xf32>
    %52 = arith.addf %46, %51 : vector<288x128xf32>
    %c0_58 = arith.constant 0 : index
    %c0_59 = arith.constant 0 : index
    %c0_60 = arith.constant 0 : index
    %53 = vector.load %arg4[%c0_58, %c0_59, %c0_60] : memref<1x288x128xf32, #tpu.memory_space<vmem>>, vector<1x288x128xf32>
    %54 = vector.shape_cast %53 : vector<1x288x128xf32> to vector<288x128xf32>
    %55 = vector.shape_cast %52 : vector<288x128xf32> to vector<1x288x128xf32>
    tpu.vector_store %arg4[%c0_58, %c0_59, %c0_60], %55 {strides = array<i32>} : memref<1x288x128xf32, #tpu.memory_space<vmem>>, vector<1x288x128xf32>,
    %c0_61 = arith.constant 0 : index
    %c0_62 = arith.constant 0 : index
    %c0_63 = arith.constant 0 : index
    %56 = vector.load %arg4[%c0_61, %c0_62, %c0_63] : memref<1x288x128xf32, #tpu.memory_space<vmem>>, vector<1x288x128xf32>
    %57 = vector.shape_cast %56 : vector<1x288x128xf32> to vector<288x128xf32>
    %c20 = arith.constant 20 : index
    %c0_64 = arith.constant 0 : index
    %58 = vector.load %arg5[%c20, %c0_64] : memref<342x4xf32, #tpu.memory_space<vmem>>, vector<288x4xf32>
    %59 = arith.truncf %58 : vector<288x4xf32> to vector<288x4xbf16>
    %c1_65 = arith.constant 1 : index
    %c2_66 = arith.constant 2 : index
    %c0_67 = arith.constant 0 : index
    %c0_68 = arith.constant 0 : index
    %60 = vector.load %arg2[%c1_65, %c2_66, %c0_67, %c0_68] : memref<3x3x4x128xbf16, #tpu.memory_space<vmem>>, vector<1x1x4x128xbf16>
    %61 = vector.shape_cast %60 : vector<1x1x4x128xbf16> to vector<4x128xbf16>
    %cst_69 = arith.constant dense<0.000000e+00> : vector<288x128xf32>
    %62 = tpu.matmul %59, %61, %cst_69 {dimension_numbers = #tpu.dot_dimension_numbers<[1], [0], [0], [1], [0, 0, 1, 1], [], []>} : vector<288x4xbf16>, vector<4x128xbf16>, vector<288x128xf32> -> vector<288x128xf32>
    %63 = arith.addf %57, %62 : vector<288x128xf32>
    %c0_70 = arith.constant 0 : index
    %c0_71 = arith.constant 0 : index
    %c0_72 = arith.constant 0 : index
    %64 = vector.load %arg4[%c0_70, %c0_71, %c0_72] : memref<1x288x128xf32, #tpu.memory_space<vmem>>, vector<1x288x128xf32>
    %65 = vector.shape_cast %64 : vector<1x288x128xf32> to vector<288x128xf32>
    %66 = vector.shape_cast %63 : vector<288x128xf32> to vector<1x288x128xf32>
    tpu.vector_store %arg4[%c0_70, %c0_71, %c0_72], %66 {strides = array<i32>} : memref<1x288x128xf32, #tpu.memory_space<vmem>>, vector<1x288x128xf32>,
    %c0_73 = arith.constant 0 : index
    %c0_74 = arith.constant 0 : index
    %c0_75 = arith.constant 0 : index
    %67 = vector.load %arg4[%c0_73, %c0_74, %c0_75] : memref<1x288x128xf32, #tpu.memory_space<vmem>>, vector<1x288x128xf32>
    %68 = vector.shape_cast %67 : vector<1x288x128xf32> to vector<288x128xf32>
    %c36 = arith.constant 36 : index
    %c0_76 = arith.constant 0 : index
    %69 = vector.load %arg5[%c36, %c0_76] : memref<342x4xf32, #tpu.memory_space<vmem>>, vector<288x4xf32>
    %70 = arith.truncf %69 : vector<288x4xf32> to vector<288x4xbf16>
    %c2_77 = arith.constant 2 : index
    %c0_78 = arith.constant 0 : index
    %c0_79 = arith.constant 0 : index
    %c0_80 = arith.constant 0 : index
    %71 = vector.load %arg2[%c2_77, %c0_78, %c0_79, %c0_80] : memref<3x3x4x128xbf16, #tpu.memory_space<vmem>>, vector<1x1x4x128xbf16>
    %72 = vector.shape_cast %71 : vector<1x1x4x128xbf16> to vector<4x128xbf16>
    %cst_81 = arith.constant dense<0.000000e+00> : vector<288x128xf32>
    %73 = tpu.matmul %70, %72, %cst_81 {dimension_numbers = #tpu.dot_dimension_numbers<[1], [0], [0], [1], [0, 0, 1, 1], [], []>} : vector<288x4xbf16>, vector<4x128xbf16>, vector<288x128xf32> -> vector<288x128xf32>
    %74 = arith.addf %68, %73 : vector<288x128xf32>
    %c0_82 = arith.constant 0 : index
    %c0_83 = arith.constant 0 : index
    %c0_84 = arith.constant 0 : index
    %75 = vector.load %arg4[%c0_82, %c0_83, %c0_84] : memref<1x288x128xf32, #tpu.memory_space<vmem>>, vector<1x288x128xf32>
    %76 = vector.shape_cast %75 : vector<1x288x128xf32> to vector<288x128xf32>
    %77 = vector.shape_cast %74 : vector<288x128xf32> to vector<1x288x128xf32>
    tpu.vector_store %arg4[%c0_82, %c0_83, %c0_84], %77 {strides = array<i32>} : memref<1x288x128xf32, #tpu.memory_space<vmem>>, vector<1x288x128xf32>,
    %c0_85 = arith.constant 0 : index
    %c0_86 = arith.constant 0 : index
    %c0_87 = arith.constant 0 : index
    %78 = vector.load %arg4[%c0_85, %c0_86, %c0_87] : memref<1x288x128xf32, #tpu.memory_space<vmem>>, vector<1x288x128xf32>
    %79 = vector.shape_cast %78 : vector<1x288x128xf32> to vector<288x128xf32>
    %c37 = arith.constant 37 : index
    %c0_88 = arith.constant 0 : index
    %80 = vector.load %arg5[%c37, %c0_88] : memref<342x4xf32, #tpu.memory_space<vmem>>, vector<288x4xf32>
    %81 = arith.truncf %80 : vector<288x4xf32> to vector<288x4xbf16>
    %c2_89 = arith.constant 2 : index
    %c1_90 = arith.constant 1 : index
    %c0_91 = arith.constant 0 : index
    %c0_92 = arith.constant 0 : index
    %82 = vector.load %arg2[%c2_89, %c1_90, %c0_91, %c0_92] : memref<3x3x4x128xbf16, #tpu.memory_space<vmem>>, vector<1x1x4x128xbf16>
    %83 = vector.shape_cast %82 : vector<1x1x4x128xbf16> to vector<4x128xbf16>
    %cst_93 = arith.constant dense<0.000000e+00> : vector<288x128xf32>
    %84 = tpu.matmul %81, %83, %cst_93 {dimension_numbers = #tpu.dot_dimension_numbers<[1], [0], [0], [1], [0, 0, 1, 1], [], []>} : vector<288x4xbf16>, vector<4x128xbf16>, vector<288x128xf32> -> vector<288x128xf32>
    %85 = arith.addf %79, %84 : vector<288x128xf32>
    %c0_94 = arith.constant 0 : index
    %c0_95 = arith.constant 0 : index
    %c0_96 = arith.constant 0 : index
    %86 = vector.load %arg4[%c0_94, %c0_95, %c0_96] : memref<1x288x128xf32, #tpu.memory_space<vmem>>, vector<1x288x128xf32>
    %87 = vector.shape_cast %86 : vector<1x288x128xf32> to vector<288x128xf32>
    %88 = vector.shape_cast %85 : vector<288x128xf32> to vector<1x288x128xf32>
    tpu.vector_store %arg4[%c0_94, %c0_95, %c0_96], %88 {strides = array<i32>} : memref<1x288x128xf32, #tpu.memory_space<vmem>>, vector<1x288x128xf32>,
    %c0_97 = arith.constant 0 : index
    %c0_98 = arith.constant 0 : index
    %c0_99 = arith.constant 0 : index
    %89 = vector.load %arg4[%c0_97, %c0_98, %c0_99] : memref<1x288x128xf32, #tpu.memory_space<vmem>>, vector<1x288x128xf32>
    %90 = vector.shape_cast %89 : vector<1x288x128xf32> to vector<288x128xf32>
    %c38 = arith.constant 38 : index
    %c0_100 = arith.constant 0 : index
    %91 = vector.load %arg5[%c38, %c0_100] : memref<342x4xf32, #tpu.memory_space<vmem>>, vector<288x4xf32>
    %92 = arith.truncf %91 : vector<288x4xf32> to vector<288x4xbf16>
    %c2_101 = arith.constant 2 : index
    %c2_102 = arith.constant 2 : index
    %c0_103 = arith.constant 0 : index
    %c0_104 = arith.constant 0 : index
    %93 = vector.load %arg2[%c2_101, %c2_102, %c0_103, %c0_104] : memref<3x3x4x128xbf16, #tpu.memory_space<vmem>>, vector<1x1x4x128xbf16>
    %94 = vector.shape_cast %93 : vector<1x1x4x128xbf16> to vector<4x128xbf16>
    %cst_105 = arith.constant dense<0.000000e+00> : vector<288x128xf32>
    %95 = tpu.matmul %92, %94, %cst_105 {dimension_numbers = #tpu.dot_dimension_numbers<[1], [0], [0], [1], [0, 0, 1, 1], [], []>} : vector<288x4xbf16>, vector<4x128xbf16>, vector<288x128xf32> -> vector<288x128xf32>
    %96 = arith.addf %90, %95 : vector<288x128xf32>
    %c0_106 = arith.constant 0 : index
    %c0_107 = arith.constant 0 : index
    %c0_108 = arith.constant 0 : index
    %97 = vector.load %arg4[%c0_106, %c0_107, %c0_108] : memref<1x288x128xf32, #tpu.memory_space<vmem>>, vector<1x288x128xf32>
    %98 = vector.shape_cast %97 : vector<1x288x128xf32> to vector<288x128xf32>
    %99 = vector.shape_cast %96 : vector<288x128xf32> to vector<1x288x128xf32>
    tpu.vector_store %arg4[%c0_106, %c0_107, %c0_108], %99 {strides = array<i32>} : memref<1x288x128xf32, #tpu.memory_space<vmem>>, vector<1x288x128xf32>,
    %c0_109 = arith.constant 0 : index
    %c0_110 = arith.constant 0 : index
    %c0_111 = arith.constant 0 : index
    %100 = vector.load %arg4[%c0_109, %c0_110, %c0_111] : memref<1x288x128xf32, #tpu.memory_space<vmem>>, vector<1x288x128xf32>
    %101 = vector.shape_cast %100 : vector<1x288x128xf32> to vector<288x128xf32>
    %c0_112 = arith.constant 0 : index
    %c0_113 = arith.constant 0 : index
    %102 = vector.load %arg3[%c0_112, %c0_113] : memref<1x128xf32, #tpu.memory_space<vmem>>, vector<1x128xf32>
    %103 = vector.broadcast %102 : vector<1x128xf32> to vector<288x128xf32>
    %104 = arith.addf %101, %103 : vector<288x128xf32>
    %cst_114 = arith.constant 0.000000e+00 : f32
    %105 = vector.broadcast %cst_114 : f32 to vector<288x128xf32>
    %106 = arith.maximumf %104, %105 : vector<288x128xf32>
    %c0_115 = arith.constant 0 : index
    %c0_116 = arith.constant 0 : index
    %c0_117 = arith.constant 0 : index
    %107 = vector.load %arg4[%c0_115, %c0_116, %c0_117] : memref<1x288x128xf32, #tpu.memory_space<vmem>>, vector<1x288x128xf32>
    %108 = vector.shape_cast %107 : vector<1x288x128xf32> to vector<288x128xf32>
    %109 = vector.shape_cast %106 : vector<288x128xf32> to vector<1x288x128xf32>
    tpu.vector_store %arg4[%c0_115, %c0_116, %c0_117], %109 {strides = array<i32>} : memref<1x288x128xf32, #tpu.memory_space<vmem>>, vector<1x288x128xf32>,
    return
  }
  func.func @transform_0(%arg0: i32) -> (i32, i32, i32) {
    %c0_i32 = arith.constant 0 : i32
    %c0_i32_0 = arith.constant 0 : i32
    %c0_i32_1 = arith.constant 0 : i32
    return %arg0, %c0_i32, %c0_i32_0 : i32, i32, i32
  }
  func.func @transform_1(%arg0: i32) -> (i32, i32, i32, i32) {
    %c0_i32 = arith.constant 0 : i32
    %c0_i32_0 = arith.constant 0 : i32
    %c0_i32_1 = arith.constant 0 : i32
    %c0_i32_2 = arith.constant 0 : i32
    %c0_i32_3 = arith.constant 0 : i32
    return %c0_i32, %c0_i32_0, %c0_i32_1, %c0_i32_2 : i32, i32, i32, i32
  }
  func.func @transform_2(%arg0: i32) -> (i32, i32) {
    %c0_i32 = arith.constant 0 : i32
    %c0_i32_0 = arith.constant 0 : i32
    %c0_i32_1 = arith.constant 0 : i32
    return %c0_i32, %c0_i32_0 : i32, i32
  }
  func.func @transform_3(%arg0: i32) -> (i32, i32, i32) {
    %c0_i32 = arith.constant 0 : i32
    %c0_i32_0 = arith.constant 0 : i32
    %c0_i32_1 = arith.constant 0 : i32
    return %arg0, %c0_i32, %c0_i32_0 : i32, i32, i32
  }
}

</mosaic_0001>

<llo_original>
// kernel: basic_conv2d.1
$region0: #{basic_conv2d.1}
  #allocation0 [shape = 'u32[]', space=smem, size = 0x4, offset = 0x4, fixed_abs, tag = 'smem constant byte address 0x4 - core index']
  #allocation1 [shape = 'u32[144,128]{1,0:T(1,128)}', space=vmem, size = 0x12000, scoped, tag = 'internal scratch']
  #allocation2 [shape = 'f32[342,4]{1,0:T(8,128)}', space=vmem, size = 0x2b000, scoped, tag = 'scratch operand']
  %s0 = inlined_call_operand.vmem [shape: bf16[2,342,4], index: 0, kind: input, shape index: {}]
  %s1 = inlined_call_operand.vmem [shape: bf16[3,3,4,128], index: 1, kind: input, shape index: {}]
  %s2 = inlined_call_operand.vmem [shape: f32[1,128], index: 2, kind: input, shape index: {}]
  %s3 = inlined_call_operand.vmem [shape: f32[2,288,128], index: 3, kind: output, shape index: {}]
  %s4 = sld [smem:[#allocation0]]
  $region45: #{basic_conv2d.1} parent=0
    _
  %s6 = ssub.s32 1, %s4
  %s7 = scalar_select 0, %s6, %s4
  loop: start=0, step=1, limit=4
  $region2: #{basic_conv2d.1} parent=0 // loop_pre_header
    _
  $region3: #{basic_conv2d.1} parent=0 // loop_header
    %s9 = sphi 0, %s13
    %p10 = scmp.ge.s32.totalorder %s9, 4
    %s19 = sphi 0, %s21
    %s22 = sphi 0, %s19
    %s23 = sphi 0, %s22
    %s39 = sphi 0, %s23
    %s43 = sphi 0, %s43
    %s45 = sphi 0, %s43
    %s46 = sphi 0, %s45
    %s60 = sphi 0, %s46
    %s64 = sphi 0, %s64
    %s66 = sphi 0, %s64
    %s67 = sphi 0, %s66
    %s81 = sphi 0, %s67
    %s87 = sphi 0, %s89
    %s90 = sphi 0, %s87
    %s91 = sphi 0, %s90
    %s107 = sphi 0, %s91
  $region4: #{basic_conv2d.1} parent=0 // loop_header_branch
    %12 = sbr.rel (%p10) target = $region8
  $region5: #{basic_conv2d.1} parent=0 // loop_body
    %s14 = ssub.s32 %s9, 1
    %s15 = ssub.s32 %s9, 2
    %s16 = sadd.s32 %s9, 1
    %s17 = ssub.s32 %s9, %s16
    %p18 = scmp.eq.s32.totalorder %s17, 0
    %s20 = sadd.s32 %s19, 1
    %s21 = scalar_select %p18, %s19, %s20
    %p24 = pneg %p18
    %p25 = scmp.eq.s32.totalorder %s9, 1
    %p26 = por %p24, %p25
    %p27 = scmp.ne.s32.totalorder %s19, %s22
    %p28 = scmp.eq.s32.totalorder %s9, 0
    %p29 = por %p27, %p28
    %p30 = scmp.ne.s32.totalorder %s19, %s22
    %p31 = scmp.eq.s32.totalorder %s14, 1
    %p32 = por %p30, %p31
    %p33 = scmp.ne.s32.totalorder %s22, %s23
    %p34 = scmp.eq.s32.totalorder %s14, 0
    %p35 = por %p33, %p34
    %p36 = scmp.ne.s32.totalorder %s22, %s23
    %p37 = scmp.eq.s32.totalorder %s15, 1
    %p38 = por %p36, %p37
    %p40 = scmp.ne.s32.totalorder %s23, %s39
    %p41 = scmp.eq.s32.totalorder %s15, 0
    %p42 = por %p40, %p41
    %s44 = sadd.s32 %s43, 1
    %p47 = scmp.eq.s32.totalorder %s9, 1
    %p48 = scmp.ne.s32.totalorder %s43, %s45
    %p49 = scmp.eq.s32.totalorder %s9, 0
    %p50 = por %p48, %p49
    %p51 = scmp.ne.s32.totalorder %s43, %s45
    %p52 = scmp.eq.s32.totalorder %s14, 1
    %p53 = por %p51, %p52
    %p54 = scmp.ne.s32.totalorder %s45, %s46
    %p55 = scmp.eq.s32.totalorder %s14, 0
    %p56 = por %p54, %p55
    %p57 = scmp.ne.s32.totalorder %s45, %s46
    %p58 = scmp.eq.s32.totalorder %s15, 1
    %p59 = por %p57, %p58
    %p61 = scmp.ne.s32.totalorder %s46, %s60
    %p62 = scmp.eq.s32.totalorder %s15, 0
    %p63 = por %p61, %p62
    %s65 = sadd.s32 %s64, 1
    %p68 = scmp.eq.s32.totalorder %s9, 1
    %p69 = scmp.ne.s32.totalorder %s64, %s66
    %p70 = scmp.eq.s32.totalorder %s9, 0
    %p71 = por %p69, %p70
    %p72 = scmp.ne.s32.totalorder %s64, %s66
    %p73 = scmp.eq.s32.totalorder %s14, 1
    %p74 = por %p72, %p73
    %p75 = scmp.ne.s32.totalorder %s66, %s67
    %p76 = scmp.eq.s32.totalorder %s14, 0
    %p77 = por %p75, %p76
    %p78 = scmp.ne.s32.totalorder %s66, %s67
    %p79 = scmp.eq.s32.totalorder %s15, 1
    %p80 = por %p78, %p79
    %p82 = scmp.ne.s32.totalorder %s67, %s81
    %p83 = scmp.eq.s32.totalorder %s15, 0
    %p84 = por %p82, %p83
    %s85 = ssub.s32 %s9, %s16
    %p86 = scmp.eq.s32.totalorder %s85, 0
    %s88 = sadd.s32 %s87, 1
    %s89 = scalar_select %p86, %s87, %s88
    %p92 = pneg %p86
    %p93 = scmp.eq.s32.totalorder %s9, 1
    %p94 = por %p92, %p93
    %p95 = scmp.ne.s32.totalorder %s87, %s90
    %p96 = scmp.eq.s32.totalorder %s9, 0
    %p97 = por %p95, %p96
    %p98 = scmp.ne.s32.totalorder %s87, %s90
    %p99 = scmp.eq.s32.totalorder %s14, 1
    %p100 = por %p98, %p99
    %p101 = scmp.ne.s32.totalorder %s90, %s91
    %p102 = scmp.eq.s32.totalorder %s14, 0
    %p103 = por %p101, %p102
    %p104 = scmp.ne.s32.totalorder %s90, %s91
    %p105 = scmp.eq.s32.totalorder %s15, 1
    %p106 = por %p104, %p105
    %p108 = scmp.ne.s32.totalorder %s91, %s107
    %p109 = scmp.eq.s32.totalorder %s15, 0
    %p110 = por %p108, %p109
    %p111 = scmp.le.s32.totalorder 1, %s9
    %p112 = scmp.lt.s32.totalorder %s9, 3
    %p113 = pnand %p111, %p112
    %p114 = pneg %p113
    // Predicated region
    $region9: #{basic_conv2d.1} parent=5 // pred_check
      _
    $region10: #{basic_conv2d.1} parent=5 // pred_check_branch
      %116 = sbr.rel (%p113) target = $region12
    $region11: #{basic_conv2d.1} parent=5 // pred_region
      %s117 = ssub.s32 %s9, 1
      // Predicated region
      $region13: #{basic_conv2d.1} parent=11 // pred_check
        %p118 = pneg %p56
      $region14: #{basic_conv2d.1} parent=11 // pred_check_branch
        %120 = sbr.rel (%p118) target = $region16
      $region15: #{basic_conv2d.1} parent=11 // pred_region
        _
      $region16: #{basic_conv2d.1} parent=11 // pred_fallthru
        _
      // Predicated region
      $region17: #{basic_conv2d.1} parent=11 // pred_check
        %p121 = pneg %p77
      $region18: #{basic_conv2d.1} parent=11 // pred_check_branch
        %123 = sbr.rel (%p121) target = $region20
      $region19: #{basic_conv2d.1} parent=11 // pred_region
        _
      $region20: #{basic_conv2d.1} parent=11 // pred_fallthru
        _
    $region12: #{basic_conv2d.1} parent=5 // pred_fallthru
      _
    %p124 = scmp.lt.s32.totalorder %s9, 2
    // Predicated region
    $region21: #{basic_conv2d.1} parent=5 // pred_check
      %p125 = pneg %p124
    $region22: #{basic_conv2d.1} parent=5 // pred_check_branch
      %127 = sbr.rel (%p125) target = $region24
    $region23: #{basic_conv2d.1} parent=5 // pred_region
      // Predicated region
      $region25: #{basic_conv2d.1} parent=23 // pred_check
        %p128 = pneg %p29
      $region26: #{basic_conv2d.1} parent=23 // pred_check_branch
        %130 = sbr.rel (%p128) target = $region28
      $region27: #{basic_conv2d.1} parent=23 // pred_region
        %p131 = scmp.lt.s32.totalorder %s9, 1
        %s132 = scalar_select %p131, %s9, 1
        %s133 = smul.addr %s132, 43
        %s134 = smul.addr %s133, 4
        %s135 = scalar_lea.vmem %s0, %s134
      $region28: #{basic_conv2d.1} parent=23 // pred_fallthru
        _
    $region24: #{basic_conv2d.1} parent=5 // pred_fallthru
      _
    %p136 = scmp.le.s32.totalorder 1, %s9
    %p137 = scmp.lt.s32.totalorder %s9, 3
    %p138 = pnand %p136, %p137
    %p139 = pneg %p138
    // Predicated region
    $region29: #{basic_conv2d.1} parent=5 // pred_check
      _
    $region30: #{basic_conv2d.1} parent=5 // pred_check_branch
      %141 = sbr.rel (%p138) target = $region32
    $region31: #{basic_conv2d.1} parent=5 // pred_region
      %s142 = ssub.s32 %s9, 1
      %p143 = scmp.lt.s32.totalorder %s14, 1
      %s144 = scalar_select %p143, %s14, 1
      %s145 = smul.addr %s144, 43
      %s146 = smul.addr %s145, 4
      %s147 = scalar_lea.vmem %s0, %s146
      %p148 = pneg %p35
      %p149 = pneg %p32
      %p150 = pneg %p56
      %p151 = pneg %p53
      %p152 = pneg %p77
      %p153 = pneg %p74
      %p154 = pneg %p103
      %p155 = pneg %p100
      %p156 = scmp.lt.s32.totalorder %s14, 1
      %s157 = scalar_select %p156, %s14, 1
      %s158 = smul.addr %s157, 36
      %s159 = smul.addr %s158, 8
      %s160 = scalar_lea.vmem %s3, %s159
      %p161 = scmp.lt.s32.totalorder %s14, 1
      %s162 = scalar_select %p161, %s14, 1
      %s163 = smul.addr %s162, 43
      %s164 = smul.addr %s163, 4
      %s165 = scalar_lea.vmem %s0, %s164
      %p166 = scmp.lt.s32.totalorder %s14, 1
      %s167 = scalar_select %p166, %s14, 1
      %s168 = smul.addr %s167, 36
      %s169 = smul.addr %s168, 8
      %s170 = scalar_lea.vmem %s3, %s169
      %v172 = vld [vmem:[%s165] sm:$0xf]
      %v173 = vld [vmem:[%s165 + $0x4] sm:$0xf]
      %v174 = vld [vmem:[%s165 + $0x8] sm:$0xf]
      %v175 = vld [vmem:[%s165 + $0xc] sm:$0xf]
      %v176 = vld [vmem:[%s165 + $0x10] sm:$0xf]
      %v177 = vld [vmem:[%s165 + $0x14] sm:$0xf]
      %v178 = vld [vmem:[%s165 + $0x18] sm:$0xf]
      %v179 = vld [vmem:[%s165 + $0x1c] sm:$0xf]
      %v180 = vld [vmem:[%s165 + $0x20] sm:$0xf]
      %v181 = vld [vmem:[%s165 + $0x24] sm:$0xf]
      %v182 = vld [vmem:[%s165 + $0x28] sm:$0xf]
      %v183 = vld [vmem:[%s165 + $0x2c] sm:$0xf]
      %v184 = vld [vmem:[%s165 + $0x30] sm:$0xf]
      %v185 = vld [vmem:[%s165 + $0x34] sm:$0xf]
      %v186 = vld [vmem:[%s165 + $0x38] sm:$0xf]
      %v187 = vld [vmem:[%s165 + $0x3c] sm:$0xf]
      %v188 = vld [vmem:[%s165 + $0x40] sm:$0xf]
      %v189 = vld [vmem:[%s165 + $0x44] sm:$0xf]
      %v190 = vld [vmem:[%s165 + $0x48] sm:$0xf]
      %v191 = vld [vmem:[%s165 + $0x4c] sm:$0xf]
      %v192 = vld [vmem:[%s165 + $0x50] sm:$0xf]
      %v193 = vld [vmem:[%s165 + $0x54] sm:$0xf]
      %v194 = vld [vmem:[%s165 + $0x58] sm:$0xf]
      %v195 = vld [vmem:[%s165 + $0x5c] sm:$0xf]
      %v196 = vld [vmem:[%s165 + $0x60] sm:$0xf]
      %v197 = vld [vmem:[%s165 + $0x64] sm:$0xf]
      %v198 = vld [vmem:[%s165 + $0x68] sm:$0xf]
      %v199 = vld [vmem:[%s165 + $0x6c] sm:$0xf]
      %v200 = vld [vmem:[%s165 + $0x70] sm:$0xf]
      %v201 = vld [vmem:[%s165 + $0x74] sm:$0xf]
      %v202 = vld [vmem:[%s165 + $0x78] sm:$0xf]
      %v203 = vld [vmem:[%s165 + $0x7c] sm:$0xf]
      %v204 = vld [vmem:[%s165 + $0x80] sm:$0xf]
      %v205 = vld [vmem:[%s165 + $0x84] sm:$0xf]
      %v206 = vld [vmem:[%s165 + $0x88] sm:$0xf]
      %v207 = vld [vmem:[%s165 + $0x8c] sm:$0xf]
      %v208 = vld [vmem:[%s165 + $0x90] sm:$0xf]
      %v209 = vld [vmem:[%s165 + $0x94] sm:$0xf]
      %v210 = vld [vmem:[%s165 + $0x98] sm:$0xf]
      %v211 = vld [vmem:[%s165 + $0x9c] sm:$0xf]
      %v212 = vld [vmem:[%s165 + $0xa0] sm:$0xf]
      %v213 = vld [vmem:[%s165 + $0xa4] sm:$0xf]
      %v214 = vld [vmem:[%s165 + $0xa8] sm:$0x7]
      %v215 = vunpack.c.l.bf16 %v172
      %v216 = vunpack.c.l.bf16 %v173
      %v217 = vunpack.c.l.bf16 %v174
      %v218 = vunpack.c.l.bf16 %v175
      %v219 = vunpack.c.l.bf16 %v176
      %v220 = vunpack.c.l.bf16 %v177
      %v221 = vunpack.c.l.bf16 %v178
      %v222 = vunpack.c.l.bf16 %v179
      %v223 = vunpack.c.l.bf16 %v180
      %v224 = vunpack.c.l.bf16 %v181
      %v225 = vunpack.c.l.bf16 %v182
      %v226 = vunpack.c.l.bf16 %v183
      %v227 = vunpack.c.l.bf16 %v184
      %v228 = vunpack.c.l.bf16 %v185
      %v229 = vunpack.c.l.bf16 %v186
      %v230 = vunpack.c.l.bf16 %v187
      %v231 = vunpack.c.l.bf16 %v188
      %v232 = vunpack.c.l.bf16 %v189
      %v233 = vunpack.c.l.bf16 %v190
      %v234 = vunpack.c.l.bf16 %v191
      %v235 = vunpack.c.l.bf16 %v192
      %v236 = vunpack.c.l.bf16 %v193
      %v237 = vunpack.c.l.bf16 %v194
      %v238 = vunpack.c.l.bf16 %v195
      %v239 = vunpack.c.l.bf16 %v196
      %v240 = vunpack.c.l.bf16 %v197
      %v241 = vunpack.c.l.bf16 %v198
      %v242 = vunpack.c.l.bf16 %v199
      %v243 = vunpack.c.l.bf16 %v200
      %v244 = vunpack.c.l.bf16 %v201
      %v245 = vunpack.c.l.bf16 %v202
      %v246 = vunpack.c.l.bf16 %v203
      %v247 = vunpack.c.l.bf16 %v204
      %v248 = vunpack.c.l.bf16 %v205
      %v249 = vunpack.c.l.bf16 %v206
      %v250 = vunpack.c.l.bf16 %v207
      %v251 = vunpack.c.l.bf16 %v208
      %v252 = vunpack.c.l.bf16 %v209
      %v253 = vunpack.c.l.bf16 %v210
      %v254 = vunpack.c.l.bf16 %v211
      %v255 = vunpack.c.l.bf16 %v212
      %v256 = vunpack.c.l.bf16 %v213
      %v257 = vunpack.c.l.bf16 %v214
      %vm258 = vcmask 31744
      %259 = vst.msk [vmem:[#allocation2] sm:$0xff] %vm258, %v215
      %260 = vst.msk [vmem:[#allocation2 + $0x8] sm:$0xff] %vm258, %v216
      %261 = vst.msk [vmem:[#allocation2 + $0x10] sm:$0xff] %vm258, %v217
      %262 = vst.msk [vmem:[#allocation2 + $0x18] sm:$0xff] %vm258, %v218
      %263 = vst.msk [vmem:[#allocation2 + $0x20] sm:$0xff] %vm258, %v219
      %264 = vst.msk [vmem:[#allocation2 + $0x28] sm:$0xff] %vm258, %v220
      %265 = vst.msk [vmem:[#allocation2 + $0x30] sm:$0xff] %vm258, %v221
      %266 = vst.msk [vmem:[#allocation2 + $0x38] sm:$0xff] %vm258, %v222
      %267 = vst.msk [vmem:[#allocation2 + $0x40] sm:$0xff] %vm258, %v223
      %268 = vst.msk [vmem:[#allocation2 + $0x48] sm:$0xff] %vm258, %v224
      %269 = vst.msk [vmem:[#allocation2 + $0x50] sm:$0xff] %vm258, %v225
      %270 = vst.msk [vmem:[#allocation2 + $0x58] sm:$0xff] %vm258, %v226
      %271 = vst.msk [vmem:[#allocation2 + $0x60] sm:$0xff] %vm258, %v227
      %272 = vst.msk [vmem:[#allocation2 + $0x68] sm:$0xff] %vm258, %v228
      %273 = vst.msk [vmem:[#allocation2 + $0x70] sm:$0xff] %vm258, %v229
      %274 = vst.msk [vmem:[#allocation2 + $0x78] sm:$0xff] %vm258, %v230
      %275 = vst.msk [vmem:[#allocation2 + $0x80] sm:$0xff] %vm258, %v231
      %276 = vst.msk [vmem:[#allocation2 + $0x88] sm:$0xff] %vm258, %v232
      %277 = vst.msk [vmem:[#allocation2 + $0x90] sm:$0xff] %vm258, %v233
      %278 = vst.msk [vmem:[#allocation2 + $0x98] sm:$0xff] %vm258, %v234
      %279 = vst.msk [vmem:[#allocation2 + $0xa0] sm:$0xff] %vm258, %v235
      %280 = vst.msk [vmem:[#allocation2 + $0xa8] sm:$0xff] %vm258, %v236
      %281 = vst.msk [vmem:[#allocation2 + $0xb0] sm:$0xff] %vm258, %v237
      %282 = vst.msk [vmem:[#allocation2 + $0xb8] sm:$0xff] %vm258, %v238
      %283 = vst.msk [vmem:[#allocation2 + $0xc0] sm:$0xff] %vm258, %v239
      %284 = vst.msk [vmem:[#allocation2 + $0xc8] sm:$0xff] %vm258, %v240
      %285 = vst.msk [vmem:[#allocation2 + $0xd0] sm:$0xff] %vm258, %v241
      %286 = vst.msk [vmem:[#allocation2 + $0xd8] sm:$0xff] %vm258, %v242
      %287 = vst.msk [vmem:[#allocation2 + $0xe0] sm:$0xff] %vm258, %v243
      %288 = vst.msk [vmem:[#allocation2 + $0xe8] sm:$0xff] %vm258, %v244
      %289 = vst.msk [vmem:[#allocation2 + $0xf0] sm:$0xff] %vm258, %v245
      %290 = vst.msk [vmem:[#allocation2 + $0xf8] sm:$0xff] %vm258, %v246
      %291 = vst.msk [vmem:[#allocation2 + $0x100] sm:$0xff] %vm258, %v247
      %292 = vst.msk [vmem:[#allocation2 + $0x108] sm:$0xff] %vm258, %v248
      %293 = vst.msk [vmem:[#allocation2 + $0x110] sm:$0xff] %vm258, %v249
      %294 = vst.msk [vmem:[#allocation2 + $0x118] sm:$0xff] %vm258, %v250
      %295 = vst.msk [vmem:[#allocation2 + $0x120] sm:$0xff] %vm258, %v251
      %296 = vst.msk [vmem:[#allocation2 + $0x128] sm:$0xff] %vm258, %v252
      %297 = vst.msk [vmem:[#allocation2 + $0x130] sm:$0xff] %vm258, %v253
      %298 = vst.msk [vmem:[#allocation2 + $0x138] sm:$0xff] %vm258, %v254
      %299 = vst.msk [vmem:[#allocation2 + $0x140] sm:$0xff] %vm258, %v255
      %300 = vst.msk [vmem:[#allocation2 + $0x148] sm:$0xff] %vm258, %v256
      %vm301 = vcmask 29696
      %302 = vst.msk [vmem:[#allocation2 + $0x150] sm:$0x3f] %vm301, %v257
      %v303 = vld [vmem:[#allocation2] sm:$0xff]
      %v304 = vld [vmem:[#allocation2 + $0x8] sm:$0xff]
      %v305 = vld [vmem:[#allocation2 + $0x10] sm:$0xff]
      %v306 = vld [vmem:[#allocation2 + $0x18] sm:$0xff]
      %v307 = vld [vmem:[#allocation2 + $0x20] sm:$0xff]
      %v308 = vld [vmem:[#allocation2 + $0x28] sm:$0xff]
      %v309 = vld [vmem:[#allocation2 + $0x30] sm:$0xff]
      %v310 = vld [vmem:[#allocation2 + $0x38] sm:$0xff]
      %v311 = vld [vmem:[#allocation2 + $0x40] sm:$0xff]
      %v312 = vld [vmem:[#allocation2 + $0x48] sm:$0xff]
      %v313 = vld [vmem:[#allocation2 + $0x50] sm:$0xff]
      %v314 = vld [vmem:[#allocation2 + $0x58] sm:$0xff]
      %v315 = vld [vmem:[#allocation2 + $0x60] sm:$0xff]
      %v316 = vld [vmem:[#allocation2 + $0x68] sm:$0xff]
      %v317 = vld [vmem:[#allocation2 + $0x70] sm:$0xff]
      %v318 = vld [vmem:[#allocation2 + $0x78] sm:$0xff]
      %v319 = vld [vmem:[#allocation2 + $0x80] sm:$0xff]
      %v320 = vld [vmem:[#allocation2 + $0x88] sm:$0xff]
      %v321 = vld [vmem:[#allocation2 + $0x90] sm:$0xff]
      %v322 = vld [vmem:[#allocation2 + $0x98] sm:$0xff]
      %v323 = vld [vmem:[#allocation2 + $0xa0] sm:$0xff]
      %v324 = vld [vmem:[#allocation2 + $0xa8] sm:$0xff]
      %v325 = vld [vmem:[#allocation2 + $0xb0] sm:$0xff]
      %v326 = vld [vmem:[#allocation2 + $0xb8] sm:$0xff]
      %v327 = vld [vmem:[#allocation2 + $0xc0] sm:$0xff]
      %v328 = vld [vmem:[#allocation2 + $0xc8] sm:$0xff]
      %v329 = vld [vmem:[#allocation2 + $0xd0] sm:$0xff]
      %v330 = vld [vmem:[#allocation2 + $0xd8] sm:$0xff]
      %v331 = vld [vmem:[#allocation2 + $0xe0] sm:$0xff]
      %v332 = vld [vmem:[#allocation2 + $0xe8] sm:$0xff]
      %v333 = vld [vmem:[#allocation2 + $0xf0] sm:$0xff]
      %v334 = vld [vmem:[#allocation2 + $0xf8] sm:$0xff]
      %v335 = vld [vmem:[#allocation2 + $0x100] sm:$0xff]
      %v336 = vld [vmem:[#allocation2 + $0x108] sm:$0xff]
      %v337 = vld [vmem:[#allocation2 + $0x110] sm:$0xff]
      %v338 = vld [vmem:[#allocation2 + $0x118] sm:$0xff]
      %v339 = vpack.c.bf16 %v304, %v303
      %v340 = vpack.c.bf16 %v306, %v305
      %v341 = vpack.c.bf16 %v308, %v307
      %v342 = vpack.c.bf16 %v310, %v309
      %v343 = vpack.c.bf16 %v312, %v311
      %v344 = vpack.c.bf16 %v314, %v313
      %v345 = vpack.c.bf16 %v316, %v315
      %v346 = vpack.c.bf16 %v318, %v317
      %v347 = vpack.c.bf16 %v320, %v319
      %v348 = vpack.c.bf16 %v322, %v321
      %v349 = vpack.c.bf16 %v324, %v323
      %v350 = vpack.c.bf16 %v326, %v325
      %v351 = vpack.c.bf16 %v328, %v327
      %v352 = vpack.c.bf16 %v330, %v329
      %v353 = vpack.c.bf16 %v332, %v331
      %v354 = vpack.c.bf16 %v334, %v333
      %v355 = vpack.c.bf16 %v336, %v335
      %v356 = vpack.c.bf16 %v338, %v337
      %v357 = vld [vmem:[%s1] sm:$0x3]
      %v359 = vsel %vm258, %v339, 0
      %v362 = vsel %vm258, %v340, 0
      %v365 = vsel %vm258, %v341, 0
      %v368 = vsel %vm258, %v342, 0
      %v371 = vsel %vm258, %v343, 0
      %v374 = vsel %vm258, %v344, 0
      %v377 = vsel %vm258, %v345, 0
      %v380 = vsel %vm258, %v346, 0
      %v383 = vsel %vm258, %v347, 0
      %v386 = vsel %vm258, %v348, 0
      %v389 = vsel %vm258, %v349, 0
      %v392 = vsel %vm258, %v350, 0
      %v395 = vsel %vm258, %v351, 0
      %v398 = vsel %vm258, %v352, 0
      %v401 = vsel %vm258, %v353, 0
      %v404 = vsel %vm258, %v354, 0
      %v407 = vsel %vm258, %v355, 0
      %v410 = vsel %vm258, %v356, 0
      %vm412 = vcmask 1041408
      %v414 = vsel %vm412, %v357, 0
      %416 = vmatprep.subr.bf16.mxu0 0
      %417 = vmatpush1.bf16.msra.mxu0 0
      %418 = vmatprep.subr.bf16.mxu0 0
      %419 = vmatpush1.bf16.msra.mxu0 0
      %420 = vmatprep.subr.bf16.mxu0 0
      %421 = vmatpush1.bf16.msra.mxu0 0
      %422 = vmatprep.subr.bf16.mxu0 0
      %423 = vmatpush1.bf16.msra.mxu0 0
      %424 = vmatprep.subr.bf16.mxu0 0
      %425 = vmatpush1.bf16.msra.mxu0 0
      %426 = vmatprep.subr.bf16.mxu0 0
      %427 = vmatpush1.bf16.msra.mxu0 0
      %428 = vmatprep.subr.bf16.mxu0 0
      %429 = vmatpush1.bf16.msra.mxu0 0
      %430 = vmatprep.subr.bf16.mxu0 0
      %431 = vmatpush1.bf16.msra.mxu0 %v414
      %432 = vmatprep.subr.bf16.mxu0 0
      %433 = vmatpush2.bf16.msra.mxu0 0
      %434 = vmatprep.subr.bf16.mxu0 0
      %435 = vmatpush2.bf16.msra.mxu0 0
      %436 = vmatprep.subr.bf16.mxu0 0
      %437 = vmatpush2.bf16.msra.mxu0 0
      %438 = vmatprep.subr.bf16.mxu0 0
      %439 = vmatpush2.bf16.msra.mxu0 0
      %440 = vmatprep.subr.bf16.mxu0 0
      %441 = vmatpush2.bf16.msra.mxu0 0
      %442 = vmatprep.subr.bf16.mxu0 0
      %443 = vmatpush2.bf16.msra.mxu0 0
      %444 = vmatprep.subr.bf16.mxu0 0
      %445 = vmatpush2.bf16.msra.mxu0 0
      %446 = vmatprep.subr.bf16.mxu0 0
      %447 = vmatpush2.bf16.msra.mxu0 0
      %448 = vmatprep.mubr.bf16.mxu0 0
      %449 = vmatmul.mubr.bf16.gmra.mxu0 %v359
      %v450 = vpop.f32.mrf.mxu0
      %v451 = vadd.f32 0.0, %v450
      %v452 = vpop.f32.mrf.mxu0
      %v453 = vpop.f32.mrf.mxu0
      %v454 = vadd.f32 0.0, %v453
      %v455 = vpop.f32.mrf.mxu0
      %456 = vmatprep.mubr.bf16.mxu0 0
      %457 = vmatmul.mubr.bf16.gmra.mxu0 %v362
      %v458 = vpop.f32.mrf.mxu0
      %v459 = vadd.f32 0.0, %v458
      %v460 = vpop.f32.mrf.mxu0
      %v461 = vpop.f32.mrf.mxu0
      %v462 = vadd.f32 0.0, %v461
      %v463 = vpop.f32.mrf.mxu0
      %464 = vmatprep.mubr.bf16.mxu0 0
      %465 = vmatmul.mubr.bf16.gmra.mxu0 %v365
      %v466 = vpop.f32.mrf.mxu0
      %v467 = vadd.f32 0.0, %v466
      %v468 = vpop.f32.mrf.mxu0
      %v469 = vpop.f32.mrf.mxu0
      %v470 = vadd.f32 0.0, %v469
      %v471 = vpop.f32.mrf.mxu0
      %472 = vmatprep.mubr.bf16.mxu0 0
      %473 = vmatmul.mubr.bf16.gmra.mxu0 %v368
      %v474 = vpop.f32.mrf.mxu0
      %v475 = vadd.f32 0.0, %v474
      %v476 = vpop.f32.mrf.mxu0
      %v477 = vpop.f32.mrf.mxu0
      %v478 = vadd.f32 0.0, %v477
      %v479 = vpop.f32.mrf.mxu0
      %480 = vmatprep.mubr.bf16.mxu0 0
      %481 = vmatmul.mubr.bf16.gmra.mxu0 %v371
      %v482 = vpop.f32.mrf.mxu0
      %v483 = vadd.f32 0.0, %v482
      %v484 = vpop.f32.mrf.mxu0
      %v485 = vpop.f32.mrf.mxu0
      %v486 = vadd.f32 0.0, %v485
      %v487 = vpop.f32.mrf.mxu0
      %488 = vmatprep.mubr.bf16.mxu0 0
      %489 = vmatmul.mubr.bf16.gmra.mxu0 %v374
      %v490 = vpop.f32.mrf.mxu0
      %v491 = vadd.f32 0.0, %v490
      %v492 = vpop.f32.mrf.mxu0
      %v493 = vpop.f32.mrf.mxu0
      %v494 = vadd.f32 0.0, %v493
      %v495 = vpop.f32.mrf.mxu0
      %496 = vmatprep.mubr.bf16.mxu0 0
      %497 = vmatmul.mubr.bf16.gmra.mxu0 %v377
      %v498 = vpop.f32.mrf.mxu0
      %v499 = vadd.f32 0.0, %v498
      %v500 = vpop.f32.mrf.mxu0
      %v501 = vpop.f32.mrf.mxu0
      %v502 = vadd.f32 0.0, %v501
      %v503 = vpop.f32.mrf.mxu0
      %504 = vmatprep.mubr.bf16.mxu0 0
      %505 = vmatmul.mubr.bf16.gmra.mxu0 %v380
      %v506 = vpop.f32.mrf.mxu0
      %v507 = vadd.f32 0.0, %v506
      %v508 = vpop.f32.mrf.mxu0
      %v509 = vpop.f32.mrf.mxu0
      %v510 = vadd.f32 0.0, %v509
      %v511 = vpop.f32.mrf.mxu0
      %512 = vmatprep.mubr.bf16.mxu0 0
      %513 = vmatmul.mubr.bf16.gmra.mxu0 %v383
      %v514 = vpop.f32.mrf.mxu0
      %v515 = vadd.f32 0.0, %v514
      %v516 = vpop.f32.mrf.mxu0
      %v517 = vpop.f32.mrf.mxu0
      %v518 = vadd.f32 0.0, %v517
      %v519 = vpop.f32.mrf.mxu0
      %520 = vmatprep.mubr.bf16.mxu0 0
      %521 = vmatmul.mubr.bf16.gmra.mxu0 %v386
      %v522 = vpop.f32.mrf.mxu0
      %v523 = vadd.f32 0.0, %v522
      %v524 = vpop.f32.mrf.mxu0
      %v525 = vpop.f32.mrf.mxu0
      %v526 = vadd.f32 0.0, %v525
      %v527 = vpop.f32.mrf.mxu0
      %528 = vmatprep.mubr.bf16.mxu0 0
      %529 = vmatmul.mubr.bf16.gmra.mxu0 %v389
      %v530 = vpop.f32.mrf.mxu0
      %v531 = vadd.f32 0.0, %v530
      %v532 = vpop.f32.mrf.mxu0
      %v533 = vpop.f32.mrf.mxu0
      %v534 = vadd.f32 0.0, %v533
      %v535 = vpop.f32.mrf.mxu0
      %536 = vmatprep.mubr.bf16.mxu0 0
      %537 = vmatmul.mubr.bf16.gmra.mxu0 %v392
      %v538 = vpop.f32.mrf.mxu0
      %v539 = vadd.f32 0.0, %v538
      %v540 = vpop.f32.mrf.mxu0
      %v541 = vpop.f32.mrf.mxu0
      %v542 = vadd.f32 0.0, %v541
      %v543 = vpop.f32.mrf.mxu0
      %544 = vmatprep.mubr.bf16.mxu0 0
      %545 = vmatmul.mubr.bf16.gmra.mxu0 %v395
      %v546 = vpop.f32.mrf.mxu0
      %v547 = vadd.f32 0.0, %v546
      %v548 = vpop.f32.mrf.mxu0
      %v549 = vpop.f32.mrf.mxu0
      %v550 = vadd.f32 0.0, %v549
      %v551 = vpop.f32.mrf.mxu0
      %552 = vmatprep.mubr.bf16.mxu0 0
      %553 = vmatmul.mubr.bf16.gmra.mxu0 %v398
      %v554 = vpop.f32.mrf.mxu0
      %v555 = vadd.f32 0.0, %v554
      %v556 = vpop.f32.mrf.mxu0
      %v557 = vpop.f32.mrf.mxu0
      %v558 = vadd.f32 0.0, %v557
      %v559 = vpop.f32.mrf.mxu0
      %560 = vmatprep.mubr.bf16.mxu0 0
      %561 = vmatmul.mubr.bf16.gmra.mxu0 %v401
      %v562 = vpop.f32.mrf.mxu0
      %v563 = vadd.f32 0.0, %v562
      %v564 = vpop.f32.mrf.mxu0
      %v565 = vpop.f32.mrf.mxu0
      %v566 = vadd.f32 0.0, %v565
      %v567 = vpop.f32.mrf.mxu0
      %568 = vmatprep.mubr.bf16.mxu0 0
      %569 = vmatmul.mubr.bf16.gmra.mxu0 %v404
      %v570 = vpop.f32.mrf.mxu0
      %v571 = vadd.f32 0.0, %v570
      %v572 = vpop.f32.mrf.mxu0
      %v573 = vpop.f32.mrf.mxu0
      %v574 = vadd.f32 0.0, %v573
      %v575 = vpop.f32.mrf.mxu0
      %576 = vmatprep.mubr.bf16.mxu0 0
      %577 = vmatmul.mubr.bf16.gmra.mxu0 %v407
      %v578 = vpop.f32.mrf.mxu0
      %v579 = vadd.f32 0.0, %v578
      %v580 = vpop.f32.mrf.mxu0
      %v581 = vpop.f32.mrf.mxu0
      %v582 = vadd.f32 0.0, %v581
      %v583 = vpop.f32.mrf.mxu0
      %584 = vmatprep.mubr.bf16.mxu0 0
      %585 = vmatmul.mubr.bf16.gmra.mxu0 %v410
      %v586 = vpop.f32.mrf.mxu0
      %v587 = vadd.f32 0.0, %v586
      %v588 = vpop.f32.mrf.mxu0
      %v589 = vpop.f32.mrf.mxu0
      %v590 = vadd.f32 0.0, %v589
      %v591 = vpop.f32.mrf.mxu0
      %592 = vdwg.mxu0
      %593 = vst [vmem:[%s170] sm:$0xff] %v451
      %594 = vst [vmem:[%s170 + $0x8] sm:$0xff] %v454
      %595 = vst [vmem:[%s170 + $0x10] sm:$0xff] %v459
      %596 = vst [vmem:[%s170 + $0x18] sm:$0xff] %v462
      %597 = vst [vmem:[%s170 + $0x20] sm:$0xff] %v467
      %598 = vst [vmem:[%s170 + $0x28] sm:$0xff] %v470
      %599 = vst [vmem:[%s170 + $0x30] sm:$0xff] %v475
      %600 = vst [vmem:[%s170 + $0x38] sm:$0xff] %v478
      %601 = vst [vmem:[%s170 + $0x40] sm:$0xff] %v483
      %602 = vst [vmem:[%s170 + $0x48] sm:$0xff] %v486
      %603 = vst [vmem:[%s170 + $0x50] sm:$0xff] %v491
      %604 = vst [vmem:[%s170 + $0x58] sm:$0xff] %v494
      %605 = vst [vmem:[%s170 + $0x60] sm:$0xff] %v499
      %606 = vst [vmem:[%s170 + $0x68] sm:$0xff] %v502
      %607 = vst [vmem:[%s170 + $0x70] sm:$0xff] %v507
      %608 = vst [vmem:[%s170 + $0x78] sm:$0xff] %v510
      %609 = vst [vmem:[%s170 + $0x80] sm:$0xff] %v515
      %610 = vst [vmem:[%s170 + $0x88] sm:$0xff] %v518
      %611 = vst [vmem:[%s170 + $0x90] sm:$0xff] %v523
      %612 = vst [vmem:[%s170 + $0x98] sm:$0xff] %v526
      %613 = vst [vmem:[%s170 + $0xa0] sm:$0xff] %v531
      %614 = vst [vmem:[%s170 + $0xa8] sm:$0xff] %v534
      %615 = vst [vmem:[%s170 + $0xb0] sm:$0xff] %v539
      %616 = vst [vmem:[%s170 + $0xb8] sm:$0xff] %v542
      %617 = vst [vmem:[%s170 + $0xc0] sm:$0xff] %v547
      %618 = vst [vmem:[%s170 + $0xc8] sm:$0xff] %v550
      %619 = vst [vmem:[%s170 + $0xd0] sm:$0xff] %v555
      %620 = vst [vmem:[%s170 + $0xd8] sm:$0xff] %v558
      %621 = vst [vmem:[%s170 + $0xe0] sm:$0xff] %v563
      %622 = vst [vmem:[%s170 + $0xe8] sm:$0xff] %v566
      %623 = vst [vmem:[%s170 + $0xf0] sm:$0xff] %v571
      %624 = vst [vmem:[%s170 + $0xf8] sm:$0xff] %v574
      %625 = vst [vmem:[%s170 + $0x100] sm:$0xff] %v579
      %626 = vst [vmem:[%s170 + $0x108] sm:$0xff] %v582
      %627 = vst [vmem:[%s170 + $0x110] sm:$0xff] %v587
      %628 = vst [vmem:[%s170 + $0x118] sm:$0xff] %v590
      %v629 = vld [vmem:[%s170] sm:$0xff]
      %v630 = vld [vmem:[%s170 + $0x8] sm:$0xff]
      %v631 = vld [vmem:[%s170 + $0x10] sm:$0xff]
      %v632 = vld [vmem:[%s170 + $0x18] sm:$0xff]
      %v633 = vld [vmem:[%s170 + $0x20] sm:$0xff]
      %v634 = vld [vmem:[%s170 + $0x28] sm:$0xff]
      %v635 = vld [vmem:[%s170 + $0x30] sm:$0xff]
      %v636 = vld [vmem:[%s170 + $0x38] sm:$0xff]
      %v637 = vld [vmem:[%s170 + $0x40] sm:$0xff]
      %v638 = vld [vmem:[%s170 + $0x48] sm:$0xff]
      %v639 = vld [vmem:[%s170 + $0x50] sm:$0xff]
      %v640 = vld [vmem:[%s170 + $0x58] sm:$0xff]
      %v641 = vld [vmem:[%s170 + $0x60] sm:$0xff]
      %v642 = vld [vmem:[%s170 + $0x68] sm:$0xff]
      %v643 = vld [vmem:[%s170 + $0x70] sm:$0xff]
      %v644 = vld [vmem:[%s170 + $0x78] sm:$0xff]
      %v645 = vld [vmem:[%s170 + $0x80] sm:$0xff]
      %v646 = vld [vmem:[%s170 + $0x88] sm:$0xff]
      %v647 = vld [vmem:[%s170 + $0x90] sm:$0xff]
      %v648 = vld [vmem:[%s170 + $0x98] sm:$0xff]
      %v649 = vld [vmem:[%s170 + $0xa0] sm:$0xff]
      %v650 = vld [vmem:[%s170 + $0xa8] sm:$0xff]
      %v651 = vld [vmem:[%s170 + $0xb0] sm:$0xff]
      %v652 = vld [vmem:[%s170 + $0xb8] sm:$0xff]
      %v653 = vld [vmem:[%s170 + $0xc0] sm:$0xff]
      %v654 = vld [vmem:[%s170 + $0xc8] sm:$0xff]
      %v655 = vld [vmem:[%s170 + $0xd0] sm:$0xff]
      %v656 = vld [vmem:[%s170 + $0xd8] sm:$0xff]
      %v657 = vld [vmem:[%s170 + $0xe0] sm:$0xff]
      %v658 = vld [vmem:[%s170 + $0xe8] sm:$0xff]
      %v659 = vld [vmem:[%s170 + $0xf0] sm:$0xff]
      %v660 = vld [vmem:[%s170 + $0xf8] sm:$0xff]
      %v661 = vld [vmem:[%s170 + $0x100] sm:$0xff]
      %v662 = vld [vmem:[%s170 + $0x108] sm:$0xff]
      %v663 = vld [vmem:[%s170 + $0x110] sm:$0xff]
      %v664 = vld [vmem:[%s170 + $0x118] sm:$0xff]
      %v665 = vld [vmem:[#allocation2 + $0x1] sm:$0xff]
      %v666 = vld [vmem:[#allocation2 + $0x9] sm:$0xff]
      %v667 = vld [vmem:[#allocation2 + $0x11] sm:$0xff]
      %v668 = vld [vmem:[#allocation2 + $0x19] sm:$0xff]
      %v669 = vld [vmem:[#allocation2 + $0x21] sm:$0xff]
      %v670 = vld [vmem:[#allocation2 + $0x29] sm:$0xff]
      %v671 = vld [vmem:[#allocation2 + $0x31] sm:$0xff]
      %v672 = vld [vmem:[#allocation2 + $0x39] sm:$0xff]
      %v673 = vld [vmem:[#allocation2 + $0x41] sm:$0xff]
      %v674 = vld [vmem:[#allocation2 + $0x49] sm:$0xff]
      %v675 = vld [vmem:[#allocation2 + $0x51] sm:$0xff]
      %v676 = vld [vmem:[#allocation2 + $0x59] sm:$0xff]
      %v677 = vld [vmem:[#allocation2 + $0x61] sm:$0xff]
      %v678 = vld [vmem:[#allocation2 + $0x69] sm:$0xff]
      %v679 = vld [vmem:[#allocation2 + $0x71] sm:$0xff]
      %v680 = vld [vmem:[#allocation2 + $0x79] sm:$0xff]
      %v681 = vld [vmem:[#allocation2 + $0x81] sm:$0xff]
      %v682 = vld [vmem:[#allocation2 + $0x89] sm:$0xff]
      %v683 = vld [vmem:[#allocation2 + $0x91] sm:$0xff]
      %v684 = vld [vmem:[#allocation2 + $0x99] sm:$0xff]
      %v685 = vld [vmem:[#allocation2 + $0xa1] sm:$0xff]
      %v686 = vld [vmem:[#allocation2 + $0xa9] sm:$0xff]
      %v687 = vld [vmem:[#allocation2 + $0xb1] sm:$0xff]
      %v688 = vld [vmem:[#allocation2 + $0xb9] sm:$0xff]
      %v689 = vld [vmem:[#allocation2 + $0xc1] sm:$0xff]
      %v690 = vld [vmem:[#allocation2 + $0xc9] sm:$0xff]
      %v691 = vld [vmem:[#allocation2 + $0xd1] sm:$0xff]
      %v692 = vld [vmem:[#allocation2 + $0xd9] sm:$0xff]
      %v693 = vld [vmem:[#allocation2 + $0xe1] sm:$0xff]
      %v694 = vld [vmem:[#allocation2 + $0xe9] sm:$0xff]
      %v695 = vld [vmem:[#allocation2 + $0xf1] sm:$0xff]
      %v696 = vld [vmem:[#allocation2 + $0xf9] sm:$0xff]
      %v697 = vld [vmem:[#allocation2 + $0x101] sm:$0xff]
      %v698 = vld [vmem:[#allocation2 + $0x109] sm:$0xff]
      %v699 = vld [vmem:[#allocation2 + $0x111] sm:$0xff]
      %v700 = vld [vmem:[#allocation2 + $0x119] sm:$0xff]
      %v701 = vpack.c.bf16 %v666, %v665
      %v702 = vpack.c.bf16 %v668, %v667
      %v703 = vpack.c.bf16 %v670, %v669
      %v704 = vpack.c.bf16 %v672, %v671
      %v705 = vpack.c.bf16 %v674, %v673
      %v706 = vpack.c.bf16 %v676, %v675
      %v707 = vpack.c.bf16 %v678, %v677
      %v708 = vpack.c.bf16 %v680, %v679
      %v709 = vpack.c.bf16 %v682, %v681
      %v710 = vpack.c.bf16 %v684, %v683
      %v711 = vpack.c.bf16 %v686, %v685
      %v712 = vpack.c.bf16 %v688, %v687
      %v713 = vpack.c.bf16 %v690, %v689
      %v714 = vpack.c.bf16 %v692, %v691
      %v715 = vpack.c.bf16 %v694, %v693
      %v716 = vpack.c.bf16 %v696, %v695
      %v717 = vpack.c.bf16 %v698, %v697
      %v718 = vpack.c.bf16 %v700, %v699
      %s719 = scalar_lea.vmem %s1, 2
      %v720 = vld [vmem:[%s719] sm:$0x3]
      %v722 = vsel %vm258, %v701, 0
      %v725 = vsel %vm258, %v702, 0
      %v728 = vsel %vm258, %v703, 0
      %v731 = vsel %vm258, %v704, 0
      %v734 = vsel %vm258, %v705, 0
      %v737 = vsel %vm258, %v706, 0
      %v740 = vsel %vm258, %v707, 0
      %v743 = vsel %vm258, %v708, 0
      %v746 = vsel %vm258, %v709, 0
      %v749 = vsel %vm258, %v710, 0
      %v752 = vsel %vm258, %v711, 0
      %v755 = vsel %vm258, %v712, 0
      %v758 = vsel %vm258, %v713, 0
      %v761 = vsel %vm258, %v714, 0
      %v764 = vsel %vm258, %v715, 0
      %v767 = vsel %vm258, %v716, 0
      %v770 = vsel %vm258, %v717, 0
      %v773 = vsel %vm258, %v718, 0
      %v776 = vsel %vm412, %v720, 0
      %778 = vmatprep.subr.bf16.mxu0 0
      %779 = vmatpush1.bf16.msra.mxu0 0
      %780 = vmatprep.subr.bf16.mxu0 0
      %781 = vmatpush1.bf16.msra.mxu0 0
      %782 = vmatprep.subr.bf16.mxu0 0
      %783 = vmatpush1.bf16.msra.mxu0 0
      %784 = vmatprep.subr.bf16.mxu0 0
      %785 = vmatpush1.bf16.msra.mxu0 0
      %786 = vmatprep.subr.bf16.mxu0 0
      %787 = vmatpush1.bf16.msra.mxu0 0
      %788 = vmatprep.subr.bf16.mxu0 0
      %789 = vmatpush1.bf16.msra.mxu0 0
      %790 = vmatprep.subr.bf16.mxu0 0
      %791 = vmatpush1.bf16.msra.mxu0 0
      %792 = vmatprep.subr.bf16.mxu0 0
      %793 = vmatpush1.bf16.msra.mxu0 %v776
      %794 = vmatprep.subr.bf16.mxu0 0
      %795 = vmatpush2.bf16.msra.mxu0 0
      %796 = vmatprep.subr.bf16.mxu0 0
      %797 = vmatpush2.bf16.msra.mxu0 0
      %798 = vmatprep.subr.bf16.mxu0 0
      %799 = vmatpush2.bf16.msra.mxu0 0
      %800 = vmatprep.subr.bf16.mxu0 0
      %801 = vmatpush2.bf16.msra.mxu0 0
      %802 = vmatprep.subr.bf16.mxu0 0
      %803 = vmatpush2.bf16.msra.mxu0 0
      %804 = vmatprep.subr.bf16.mxu0 0
      %805 = vmatpush2.bf16.msra.mxu0 0
      %806 = vmatprep.subr.bf16.mxu0 0
      %807 = vmatpush2.bf16.msra.mxu0 0
      %808 = vmatprep.subr.bf16.mxu0 0
      %809 = vmatpush2.bf16.msra.mxu0 0
      %810 = vmatprep.mubr.bf16.mxu0 0
      %811 = vmatmul.mubr.bf16.gmra.mxu0 %v722
      %v812 = vpop.f32.mrf.mxu0
      %v813 = vadd.f32 0.0, %v812
      %v814 = vpop.f32.mrf.mxu0
      %v815 = vpop.f32.mrf.mxu0
      %v816 = vadd.f32 0.0, %v815
      %v817 = vpop.f32.mrf.mxu0
      %818 = vmatprep.mubr.bf16.mxu0 0
      %819 = vmatmul.mubr.bf16.gmra.mxu0 %v725
      %v820 = vpop.f32.mrf.mxu0
      %v821 = vadd.f32 0.0, %v820
      %v822 = vpop.f32.mrf.mxu0
      %v823 = vpop.f32.mrf.mxu0
      %v824 = vadd.f32 0.0, %v823
      %v825 = vpop.f32.mrf.mxu0
      %826 = vmatprep.mubr.bf16.mxu0 0
      %827 = vmatmul.mubr.bf16.gmra.mxu0 %v728
      %v828 = vpop.f32.mrf.mxu0
      %v829 = vadd.f32 0.0, %v828
      %v830 = vpop.f32.mrf.mxu0
      %v831 = vpop.f32.mrf.mxu0
      %v832 = vadd.f32 0.0, %v831
      %v833 = vpop.f32.mrf.mxu0
      %834 = vmatprep.mubr.bf16.mxu0 0
      %835 = vmatmul.mubr.bf16.gmra.mxu0 %v731
      %v836 = vpop.f32.mrf.mxu0
      %v837 = vadd.f32 0.0, %v836
      %v838 = vpop.f32.mrf.mxu0
      %v839 = vpop.f32.mrf.mxu0
      %v840 = vadd.f32 0.0, %v839
      %v841 = vpop.f32.mrf.mxu0
      %842 = vmatprep.mubr.bf16.mxu0 0
      %843 = vmatmul.mubr.bf16.gmra.mxu0 %v734
      %v844 = vpop.f32.mrf.mxu0
      %v845 = vadd.f32 0.0, %v844
      %v846 = vpop.f32.mrf.mxu0
      %v847 = vpop.f32.mrf.mxu0
      %v848 = vadd.f32 0.0, %v847
      %v849 = vpop.f32.mrf.mxu0
      %850 = vmatprep.mubr.bf16.mxu0 0
      %851 = vmatmul.mubr.bf16.gmra.mxu0 %v737
      %v852 = vpop.f32.mrf.mxu0
      %v853 = vadd.f32 0.0, %v852
      %v854 = vpop.f32.mrf.mxu0
      %v855 = vpop.f32.mrf.mxu0
      %v856 = vadd.f32 0.0, %v855
      %v857 = vpop.f32.mrf.mxu0
      %858 = vmatprep.mubr.bf16.mxu0 0
      %859 = vmatmul.mubr.bf16.gmra.mxu0 %v740
      %v860 = vpop.f32.mrf.mxu0
      %v861 = vadd.f32 0.0, %v860
      %v862 = vpop.f32.mrf.mxu0
      %v863 = vpop.f32.mrf.mxu0
      %v864 = vadd.f32 0.0, %v863
      %v865 = vpop.f32.mrf.mxu0
      %866 = vmatprep.mubr.bf16.mxu0 0
      %867 = vmatmul.mubr.bf16.gmra.mxu0 %v743
      %v868 = vpop.f32.mrf.mxu0
      %v869 = vadd.f32 0.0, %v868
      %v870 = vpop.f32.mrf.mxu0
      %v871 = vpop.f32.mrf.mxu0
      %v872 = vadd.f32 0.0, %v871
      %v873 = vpop.f32.mrf.mxu0
      %874 = vmatprep.mubr.bf16.mxu0 0
      %875 = vmatmul.mubr.bf16.gmra.mxu0 %v746
      %v876 = vpop.f32.mrf.mxu0
      %v877 = vadd.f32 0.0, %v876
      %v878 = vpop.f32.mrf.mxu0
      %v879 = vpop.f32.mrf.mxu0
      %v880 = vadd.f32 0.0, %v879
      %v881 = vpop.f32.mrf.mxu0
      %882 = vmatprep.mubr.bf16.mxu0 0
      %883 = vmatmul.mubr.bf16.gmra.mxu0 %v749
      %v884 = vpop.f32.mrf.mxu0
      %v885 = vadd.f32 0.0, %v884
      %v886 = vpop.f32.mrf.mxu0
      %v887 = vpop.f32.mrf.mxu0
      %v888 = vadd.f32 0.0, %v887
      %v889 = vpop.f32.mrf.mxu0
      %890 = vmatprep.mubr.bf16.mxu0 0
      %891 = vmatmul.mubr.bf16.gmra.mxu0 %v752
      %v892 = vpop.f32.mrf.mxu0
      %v893 = vadd.f32 0.0, %v892
      %v894 = vpop.f32.mrf.mxu0
      %v895 = vpop.f32.mrf.mxu0
      %v896 = vadd.f32 0.0, %v895
      %v897 = vpop.f32.mrf.mxu0
      %898 = vmatprep.mubr.bf16.mxu0 0
      %899 = vmatmul.mubr.bf16.gmra.mxu0 %v755
      %v900 = vpop.f32.mrf.mxu0
      %v901 = vadd.f32 0.0, %v900
      %v902 = vpop.f32.mrf.mxu0
      %v903 = vpop.f32.mrf.mxu0
      %v904 = vadd.f32 0.0, %v903
      %v905 = vpop.f32.mrf.mxu0
      %906 = vmatprep.mubr.bf16.mxu0 0
      %907 = vmatmul.mubr.bf16.gmra.mxu0 %v758
      %v908 = vpop.f32.mrf.mxu0
      %v909 = vadd.f32 0.0, %v908
      %v910 = vpop.f32.mrf.mxu0
      %v911 = vpop.f32.mrf.mxu0
      %v912 = vadd.f32 0.0, %v911
      %v913 = vpop.f32.mrf.mxu0
      %914 = vmatprep.mubr.bf16.mxu0 0
      %915 = vmatmul.mubr.bf16.gmra.mxu0 %v761
      %v916 = vpop.f32.mrf.mxu0
      %v917 = vadd.f32 0.0, %v916
      %v918 = vpop.f32.mrf.mxu0
      %v919 = vpop.f32.mrf.mxu0
      %v920 = vadd.f32 0.0, %v919
      %v921 = vpop.f32.mrf.mxu0
      %922 = vmatprep.mubr.bf16.mxu0 0
      %923 = vmatmul.mubr.bf16.gmra.mxu0 %v764
      %v924 = vpop.f32.mrf.mxu0
      %v925 = vadd.f32 0.0, %v924
      %v926 = vpop.f32.mrf.mxu0
      %v927 = vpop.f32.mrf.mxu0
      %v928 = vadd.f32 0.0, %v927
      %v929 = vpop.f32.mrf.mxu0
      %930 = vmatprep.mubr.bf16.mxu0 0
      %931 = vmatmul.mubr.bf16.gmra.mxu0 %v767
      %v932 = vpop.f32.mrf.mxu0
      %v933 = vadd.f32 0.0, %v932
      %v934 = vpop.f32.mrf.mxu0
      %v935 = vpop.f32.mrf.mxu0
      %v936 = vadd.f32 0.0, %v935
      %v937 = vpop.f32.mrf.mxu0
      %938 = vmatprep.mubr.bf16.mxu0 0
      %939 = vmatmul.mubr.bf16.gmra.mxu0 %v770
      %v940 = vpop.f32.mrf.mxu0
      %v941 = vadd.f32 0.0, %v940
      %v942 = vpop.f32.mrf.mxu0
      %v943 = vpop.f32.mrf.mxu0
      %v944 = vadd.f32 0.0, %v943
      %v945 = vpop.f32.mrf.mxu0
      %946 = vmatprep.mubr.bf16.mxu0 0
      %947 = vmatmul.mubr.bf16.gmra.mxu0 %v773
      %v948 = vpop.f32.mrf.mxu0
      %v949 = vadd.f32 0.0, %v948
      %v950 = vpop.f32.mrf.mxu0
      %v951 = vpop.f32.mrf.mxu0
      %v952 = vadd.f32 0.0, %v951
      %v953 = vpop.f32.mrf.mxu0
      %954 = vdwg.mxu0
      %v955 = vadd.f32 %v629, %v813
      %v956 = vadd.f32 %v630, %v816
      %v957 = vadd.f32 %v631, %v821
      %v958 = vadd.f32 %v632, %v824
      %v959 = vadd.f32 %v633, %v829
      %v960 = vadd.f32 %v634, %v832
      %v961 = vadd.f32 %v635, %v837
      %v962 = vadd.f32 %v636, %v840
      %v963 = vadd.f32 %v637, %v845
      %v964 = vadd.f32 %v638, %v848
      %v965 = vadd.f32 %v639, %v853
      %v966 = vadd.f32 %v640, %v856
      %v967 = vadd.f32 %v641, %v861
      %v968 = vadd.f32 %v642, %v864
      %v969 = vadd.f32 %v643, %v869
      %v970 = vadd.f32 %v644, %v872
      %v971 = vadd.f32 %v645, %v877
      %v972 = vadd.f32 %v646, %v880
      %v973 = vadd.f32 %v647, %v885
      %v974 = vadd.f32 %v648, %v888
      %v975 = vadd.f32 %v649, %v893
      %v976 = vadd.f32 %v650, %v896
      %v977 = vadd.f32 %v651, %v901
      %v978 = vadd.f32 %v652, %v904
      %v979 = vadd.f32 %v653, %v909
      %v980 = vadd.f32 %v654, %v912
      %v981 = vadd.f32 %v655, %v917
      %v982 = vadd.f32 %v656, %v920
      %v983 = vadd.f32 %v657, %v925
      %v984 = vadd.f32 %v658, %v928
      %v985 = vadd.f32 %v659, %v933
      %v986 = vadd.f32 %v660, %v936
      %v987 = vadd.f32 %v661, %v941
      %v988 = vadd.f32 %v662, %v944
      %v989 = vadd.f32 %v663, %v949
      %v990 = vadd.f32 %v664, %v952
      %991 = vst [vmem:[%s170] sm:$0xff] %v955
      %992 = vst [vmem:[%s170 + $0x8] sm:$0xff] %v956
      %993 = vst [vmem:[%s170 + $0x10] sm:$0xff] %v957
      %994 = vst [vmem:[%s170 + $0x18] sm:$0xff] %v958
      %995 = vst [vmem:[%s170 + $0x20] sm:$0xff] %v959
      %996 = vst [vmem:[%s170 + $0x28] sm:$0xff] %v960
      %997 = vst [vmem:[%s170 + $0x30] sm:$0xff] %v961
      %998 = vst [vmem:[%s170 + $0x38] sm:$0xff] %v962
      %999 = vst [vmem:[%s170 + $0x40] sm:$0xff] %v963
      %1000 = vst [vmem:[%s170 + $0x48] sm:$0xff] %v964
      %1001 = vst [vmem:[%s170 + $0x50] sm:$0xff] %v965
      %1002 = vst [vmem:[%s170 + $0x58] sm:$0xff] %v966
      %1003 = vst [vmem:[%s170 + $0x60] sm:$0xff] %v967
      %1004 = vst [vmem:[%s170 + $0x68] sm:$0xff] %v968
      %1005 = vst [vmem:[%s170 + $0x70] sm:$0xff] %v969
      %1006 = vst [vmem:[%s170 + $0x78] sm:$0xff] %v970
      %1007 = vst [vmem:[%s170 + $0x80] sm:$0xff] %v971
      %1008 = vst [vmem:[%s170 + $0x88] sm:$0xff] %v972
      %1009 = vst [vmem:[%s170 + $0x90] sm:$0xff] %v973
      %1010 = vst [vmem:[%s170 + $0x98] sm:$0xff] %v974
      %1011 = vst [vmem:[%s170 + $0xa0] sm:$0xff] %v975
      %1012 = vst [vmem:[%s170 + $0xa8] sm:$0xff] %v976
      %1013 = vst [vmem:[%s170 + $0xb0] sm:$0xff] %v977
      %1014 = vst [vmem:[%s170 + $0xb8] sm:$0xff] %v978
      %1015 = vst [vmem:[%s170 + $0xc0] sm:$0xff] %v979
      %1016 = vst [vmem:[%s170 + $0xc8] sm:$0xff] %v980
      %1017 = vst [vmem:[%s170 + $0xd0] sm:$0xff] %v981
      %1018 = vst [vmem:[%s170 + $0xd8] sm:$0xff] %v982
      %1019 = vst [vmem:[%s170 + $0xe0] sm:$0xff] %v983
      %1020 = vst [vmem:[%s170 + $0xe8] sm:$0xff] %v984
      %1021 = vst [vmem:[%s170 + $0xf0] sm:$0xff] %v985
      %1022 = vst [vmem:[%s170 + $0xf8] sm:$0xff] %v986
      %1023 = vst [vmem:[%s170 + $0x100] sm:$0xff] %v987
      %1024 = vst [vmem:[%s170 + $0x108] sm:$0xff] %v988
      %1025 = vst [vmem:[%s170 + $0x110] sm:$0xff] %v989
      %1026 = vst [vmem:[%s170 + $0x118] sm:$0xff] %v990
      %v1027 = vld [vmem:[%s170] sm:$0xff]
      %v1028 = vld [vmem:[%s170 + $0x8] sm:$0xff]
      %v1029 = vld [vmem:[%s170 + $0x10] sm:$0xff]
      %v1030 = vld [vmem:[%s170 + $0x18] sm:$0xff]
      %v1031 = vld [vmem:[%s170 + $0x20] sm:$0xff]
      %v1032 = vld [vmem:[%s170 + $0x28] sm:$0xff]
      %v1033 = vld [vmem:[%s170 + $0x30] sm:$0xff]
      %v1034 = vld [vmem:[%s170 + $0x38] sm:$0xff]
      %v1035 = vld [vmem:[%s170 + $0x40] sm:$0xff]
      %v1036 = vld [vmem:[%s170 + $0x48] sm:$0xff]
      %v1037 = vld [vmem:[%s170 + $0x50] sm:$0xff]
      %v1038 = vld [vmem:[%s170 + $0x58] sm:$0xff]
      %v1039 = vld [vmem:[%s170 + $0x60] sm:$0xff]
      %v1040 = vld [vmem:[%s170 + $0x68] sm:$0xff]
      %v1041 = vld [vmem:[%s170 + $0x70] sm:$0xff]
      %v1042 = vld [vmem:[%s170 + $0x78] sm:$0xff]
      %v1043 = vld [vmem:[%s170 + $0x80] sm:$0xff]
      %v1044 = vld [vmem:[%s170 + $0x88] sm:$0xff]
      %v1045 = vld [vmem:[%s170 + $0x90] sm:$0xff]
      %v1046 = vld [vmem:[%s170 + $0x98] sm:$0xff]
      %v1047 = vld [vmem:[%s170 + $0xa0] sm:$0xff]
      %v1048 = vld [vmem:[%s170 + $0xa8] sm:$0xff]
      %v1049 = vld [vmem:[%s170 + $0xb0] sm:$0xff]
      %v1050 = vld [vmem:[%s170 + $0xb8] sm:$0xff]
      %v1051 = vld [vmem:[%s170 + $0xc0] sm:$0xff]
      %v1052 = vld [vmem:[%s170 + $0xc8] sm:$0xff]
      %v1053 = vld [vmem:[%s170 + $0xd0] sm:$0xff]
      %v1054 = vld [vmem:[%s170 + $0xd8] sm:$0xff]
      %v1055 = vld [vmem:[%s170 + $0xe0] sm:$0xff]
      %v1056 = vld [vmem:[%s170 + $0xe8] sm:$0xff]
      %v1057 = vld [vmem:[%s170 + $0xf0] sm:$0xff]
      %v1058 = vld [vmem:[%s170 + $0xf8] sm:$0xff]
      %v1059 = vld [vmem:[%s170 + $0x100] sm:$0xff]
      %v1060 = vld [vmem:[%s170 + $0x108] sm:$0xff]
      %v1061 = vld [vmem:[%s170 + $0x110] sm:$0xff]
      %v1062 = vld [vmem:[%s170 + $0x118] sm:$0xff]
      %v1063 = vld [vmem:[#allocation2 + $0x2] sm:$0xff]
      %v1064 = vld [vmem:[#allocation2 + $0xa] sm:$0xff]
      %v1065 = vld [vmem:[#allocation2 + $0x12] sm:$0xff]
      %v1066 = vld [vmem:[#allocation2 + $0x1a] sm:$0xff]
      %v1067 = vld [vmem:[#allocation2 + $0x22] sm:$0xff]
      %v1068 = vld [vmem:[#allocation2 + $0x2a] sm:$0xff]
      %v1069 = vld [vmem:[#allocation2 + $0x32] sm:$0xff]
      %v1070 = vld [vmem:[#allocation2 + $0x3a] sm:$0xff]
      %v1071 = vld [vmem:[#allocation2 + $0x42] sm:$0xff]
      %v1072 = vld [vmem:[#allocation2 + $0x4a] sm:$0xff]
      %v1073 = vld [vmem:[#allocation2 + $0x52] sm:$0xff]
      %v1074 = vld [vmem:[#allocation2 + $0x5a] sm:$0xff]
      %v1075 = vld [vmem:[#allocation2 + $0x62] sm:$0xff]
      %v1076 = vld [vmem:[#allocation2 + $0x6a] sm:$0xff]
      %v1077 = vld [vmem:[#allocation2 + $0x72] sm:$0xff]
      %v1078 = vld [vmem:[#allocation2 + $0x7a] sm:$0xff]
      %v1079 = vld [vmem:[#allocation2 + $0x82] sm:$0xff]
      %v1080 = vld [vmem:[#allocation2 + $0x8a] sm:$0xff]
      %v1081 = vld [vmem:[#allocation2 + $0x92] sm:$0xff]
      %v1082 = vld [vmem:[#allocation2 + $0x9a] sm:$0xff]
      %v1083 = vld [vmem:[#allocation2 + $0xa2] sm:$0xff]
      %v1084 = vld [vmem:[#allocation2 + $0xaa] sm:$0xff]
      %v1085 = vld [vmem:[#allocation2 + $0xb2] sm:$0xff]
      %v1086 = vld [vmem:[#allocation2 + $0xba] sm:$0xff]
      %v1087 = vld [vmem:[#allocation2 + $0xc2] sm:$0xff]
      %v1088 = vld [vmem:[#allocation2 + $0xca] sm:$0xff]
      %v1089 = vld [vmem:[#allocation2 + $0xd2] sm:$0xff]
      %v1090 = vld [vmem:[#allocation2 + $0xda] sm:$0xff]
      %v1091 = vld [vmem:[#allocation2 + $0xe2] sm:$0xff]
      %v1092 = vld [vmem:[#allocation2 + $0xea] sm:$0xff]
      %v1093 = vld [vmem:[#allocation2 + $0xf2] sm:$0xff]
      %v1094 = vld [vmem:[#allocation2 + $0xfa] sm:$0xff]
      %v1095 = vld [vmem:[#allocation2 + $0x102] sm:$0xff]
      %v1096 = vld [vmem:[#allocation2 + $0x10a] sm:$0xff]
      %v1097 = vld [vmem:[#allocation2 + $0x112] sm:$0xff]
      %v1098 = vld [vmem:[#allocation2 + $0x11a] sm:$0xff]
      %v1099 = vpack.c.bf16 %v1064, %v1063
      %v1100 = vpack.c.bf16 %v1066, %v1065
      %v1101 = vpack.c.bf16 %v1068, %v1067
      %v1102 = vpack.c.bf16 %v1070, %v1069
      %v1103 = vpack.c.bf16 %v1072, %v1071
      %v1104 = vpack.c.bf16 %v1074, %v1073
      %v1105 = vpack.c.bf16 %v1076, %v1075
      %v1106 = vpack.c.bf16 %v1078, %v1077
      %v1107 = vpack.c.bf16 %v1080, %v1079
      %v1108 = vpack.c.bf16 %v1082, %v1081
      %v1109 = vpack.c.bf16 %v1084, %v1083
      %v1110 = vpack.c.bf16 %v1086, %v1085
      %v1111 = vpack.c.bf16 %v1088, %v1087
      %v1112 = vpack.c.bf16 %v1090, %v1089
      %v1113 = vpack.c.bf16 %v1092, %v1091
      %v1114 = vpack.c.bf16 %v1094, %v1093
      %v1115 = vpack.c.bf16 %v1096, %v1095
      %v1116 = vpack.c.bf16 %v1098, %v1097
      %s1117 = scalar_lea.vmem %s1, 4
      %v1118 = vld [vmem:[%s1117] sm:$0x3]
      %v1120 = vsel %vm258, %v1099, 0
      %v1123 = vsel %vm258, %v1100, 0
      %v1126 = vsel %vm258, %v1101, 0
      %v1129 = vsel %vm258, %v1102, 0
      %v1132 = vsel %vm258, %v1103, 0
      %v1135 = vsel %vm258, %v1104, 0
      %v1138 = vsel %vm258, %v1105, 0
      %v1141 = vsel %vm258, %v1106, 0
      %v1144 = vsel %vm258, %v1107, 0
      %v1147 = vsel %vm258, %v1108, 0
      %v1150 = vsel %vm258, %v1109, 0
      %v1153 = vsel %vm258, %v1110, 0
      %v1156 = vsel %vm258, %v1111, 0
      %v1159 = vsel %vm258, %v1112, 0
      %v1162 = vsel %vm258, %v1113, 0
      %v1165 = vsel %vm258, %v1114, 0
      %v1168 = vsel %vm258, %v1115, 0
      %v1171 = vsel %vm258, %v1116, 0
      %v1174 = vsel %vm412, %v1118, 0
      %1176 = vmatprep.subr.bf16.mxu0 0
      %1177 = vmatpush1.bf16.msra.mxu0 0
      %1178 = vmatprep.subr.bf16.mxu0 0
      %1179 = vmatpush1.bf16.msra.mxu0 0
      %1180 = vmatprep.subr.bf16.mxu0 0
      %1181 = vmatpush1.bf16.msra.mxu0 0
      %1182 = vmatprep.subr.bf16.mxu0 0
      %1183 = vmatpush1.bf16.msra.mxu0 0
      %1184 = vmatprep.subr.bf16.mxu0 0
      %1185 = vmatpush1.bf16.msra.mxu0 0
      %1186 = vmatprep.subr.bf16.mxu0 0
      %1187 = vmatpush1.bf16.msra.mxu0 0
      %1188 = vmatprep.subr.bf16.mxu0 0
      %1189 = vmatpush1.bf16.msra.mxu0 0
      %1190 = vmatprep.subr.bf16.mxu0 0
      %1191 = vmatpush1.bf16.msra.mxu0 %v1174
      %1192 = vmatprep.subr.bf16.mxu0 0
      %1193 = vmatpush2.bf16.msra.mxu0 0
      %1194 = vmatprep.subr.bf16.mxu0 0
      %1195 = vmatpush2.bf16.msra.mxu0 0
      %1196 = vmatprep.subr.bf16.mxu0 0
      %1197 = vmatpush2.bf16.msra.mxu0 0
      %1198 = vmatprep.subr.bf16.mxu0 0
      %1199 = vmatpush2.bf16.msra.mxu0 0
      %1200 = vmatprep.subr.bf16.mxu0 0
      %1201 = vmatpush2.bf16.msra.mxu0 0
      %1202 = vmatprep.subr.bf16.mxu0 0
      %1203 = vmatpush2.bf16.msra.mxu0 0
      %1204 = vmatprep.subr.bf16.mxu0 0
      %1205 = vmatpush2.bf16.msra.mxu0 0
      %1206 = vmatprep.subr.bf16.mxu0 0
      %1207 = vmatpush2.bf16.msra.mxu0 0
      %1208 = vmatprep.mubr.bf16.mxu0 0
      %1209 = vmatmul.mubr.bf16.gmra.mxu0 %v1120
      %v1210 = vpop.f32.mrf.mxu0
      %v1211 = vadd.f32 0.0, %v1210
      %v1212 = vpop.f32.mrf.mxu0
      %v1213 = vpop.f32.mrf.mxu0
      %v1214 = vadd.f32 0.0, %v1213
      %v1215 = vpop.f32.mrf.mxu0
      %1216 = vmatprep.mubr.bf16.mxu0 0
      %1217 = vmatmul.mubr.bf16.gmra.mxu0 %v1123
      %v1218 = vpop.f32.mrf.mxu0
      %v1219 = vadd.f32 0.0, %v1218
      %v1220 = vpop.f32.mrf.mxu0
      %v1221 = vpop.f32.mrf.mxu0
      %v1222 = vadd.f32 0.0, %v1221
      %v1223 = vpop.f32.mrf.mxu0
      %1224 = vmatprep.mubr.bf16.mxu0 0
      %1225 = vmatmul.mubr.bf16.gmra.mxu0 %v1126
      %v1226 = vpop.f32.mrf.mxu0
      %v1227 = vadd.f32 0.0, %v1226
      %v1228 = vpop.f32.mrf.mxu0
      %v1229 = vpop.f32.mrf.mxu0
      %v1230 = vadd.f32 0.0, %v1229
      %v1231 = vpop.f32.mrf.mxu0
      %1232 = vmatprep.mubr.bf16.mxu0 0
      %1233 = vmatmul.mubr.bf16.gmra.mxu0 %v1129
      %v1234 = vpop.f32.mrf.mxu0
      %v1235 = vadd.f32 0.0, %v1234
      %v1236 = vpop.f32.mrf.mxu0
      %v1237 = vpop.f32.mrf.mxu0
      %v1238 = vadd.f32 0.0, %v1237
      %v1239 = vpop.f32.mrf.mxu0
      %1240 = vmatprep.mubr.bf16.mxu0 0
      %1241 = vmatmul.mubr.bf16.gmra.mxu0 %v1132
      %v1242 = vpop.f32.mrf.mxu0
      %v1243 = vadd.f32 0.0, %v1242
      %v1244 = vpop.f32.mrf.mxu0
      %v1245 = vpop.f32.mrf.mxu0
      %v1246 = vadd.f32 0.0, %v1245
      %v1247 = vpop.f32.mrf.mxu0
      %1248 = vmatprep.mubr.bf16.mxu0 0
      %1249 = vmatmul.mubr.bf16.gmra.mxu0 %v1135
      %v1250 = vpop.f32.mrf.mxu0
      %v1251 = vadd.f32 0.0, %v1250
      %v1252 = vpop.f32.mrf.mxu0
      %v1253 = vpop.f32.mrf.mxu0
      %v1254 = vadd.f32 0.0, %v1253
      %v1255 = vpop.f32.mrf.mxu0
      %1256 = vmatprep.mubr.bf16.mxu0 0
      %1257 = vmatmul.mubr.bf16.gmra.mxu0 %v1138
      %v1258 = vpop.f32.mrf.mxu0
      %v1259 = vadd.f32 0.0, %v1258
      %v1260 = vpop.f32.mrf.mxu0
      %v1261 = vpop.f32.mrf.mxu0
      %v1262 = vadd.f32 0.0, %v1261
      %v1263 = vpop.f32.mrf.mxu0
      %1264 = vmatprep.mubr.bf16.mxu0 0
      %1265 = vmatmul.mubr.bf16.gmra.mxu0 %v1141
      %v1266 = vpop.f32.mrf.mxu0
      %v1267 = vadd.f32 0.0, %v1266
      %v1268 = vpop.f32.mrf.mxu0
      %v1269 = vpop.f32.mrf.mxu0
      %v1270 = vadd.f32 0.0, %v1269
      %v1271 = vpop.f32.mrf.mxu0
      %1272 = vmatprep.mubr.bf16.mxu0 0
      %1273 = vmatmul.mubr.bf16.gmra.mxu0 %v1144
      %v1274 = vpop.f32.mrf.mxu0
      %v1275 = vadd.f32 0.0, %v1274
      %v1276 = vpop.f32.mrf.mxu0
      %v1277 = vpop.f32.mrf.mxu0
      %v1278 = vadd.f32 0.0, %v1277
      %v1279 = vpop.f32.mrf.mxu0
      %1280 = vmatprep.mubr.bf16.mxu0 0
      %1281 = vmatmul.mubr.bf16.gmra.mxu0 %v1147
      %v1282 = vpop.f32.mrf.mxu0
      %v1283 = vadd.f32 0.0, %v1282
      %v1284 = vpop.f32.mrf.mxu0
      %v1285 = vpop.f32.mrf.mxu0
      %v1286 = vadd.f32 0.0, %v1285
      %v1287 = vpop.f32.mrf.mxu0
      %1288 = vmatprep.mubr.bf16.mxu0 0
      %1289 = vmatmul.mubr.bf16.gmra.mxu0 %v1150
      %v1290 = vpop.f32.mrf.mxu0
      %v1291 = vadd.f32 0.0, %v1290
      %v1292 = vpop.f32.mrf.mxu0
      %v1293 = vpop.f32.mrf.mxu0
      %v1294 = vadd.f32 0.0, %v1293
      %v1295 = vpop.f32.mrf.mxu0
      %1296 = vmatprep.mubr.bf16.mxu0 0
      %1297 = vmatmul.mubr.bf16.gmra.mxu0 %v1153
      %v1298 = vpop.f32.mrf.mxu0
      %v1299 = vadd.f32 0.0, %v1298
      %v1300 = vpop.f32.mrf.mxu0
      %v1301 = vpop.f32.mrf.mxu0
      %v1302 = vadd.f32 0.0, %v1301
      %v1303 = vpop.f32.mrf.mxu0
      %1304 = vmatprep.mubr.bf16.mxu0 0
      %1305 = vmatmul.mubr.bf16.gmra.mxu0 %v1156
      %v1306 = vpop.f32.mrf.mxu0
      %v1307 = vadd.f32 0.0, %v1306
      %v1308 = vpop.f32.mrf.mxu0
      %v1309 = vpop.f32.mrf.mxu0
      %v1310 = vadd.f32 0.0, %v1309
      %v1311 = vpop.f32.mrf.mxu0
      %1312 = vmatprep.mubr.bf16.mxu0 0
      %1313 = vmatmul.mubr.bf16.gmra.mxu0 %v1159
      %v1314 = vpop.f32.mrf.mxu0
      %v1315 = vadd.f32 0.0, %v1314
      %v1316 = vpop.f32.mrf.mxu0
      %v1317 = vpop.f32.mrf.mxu0
      %v1318 = vadd.f32 0.0, %v1317
      %v1319 = vpop.f32.mrf.mxu0
      %1320 = vmatprep.mubr.bf16.mxu0 0
      %1321 = vmatmul.mubr.bf16.gmra.mxu0 %v1162
      %v1322 = vpop.f32.mrf.mxu0
      %v1323 = vadd.f32 0.0, %v1322
      %v1324 = vpop.f32.mrf.mxu0
      %v1325 = vpop.f32.mrf.mxu0
      %v1326 = vadd.f32 0.0, %v1325
      %v1327 = vpop.f32.mrf.mxu0
      %1328 = vmatprep.mubr.bf16.mxu0 0
      %1329 = vmatmul.mubr.bf16.gmra.mxu0 %v1165
      %v1330 = vpop.f32.mrf.mxu0
      %v1331 = vadd.f32 0.0, %v1330
      %v1332 = vpop.f32.mrf.mxu0
      %v1333 = vpop.f32.mrf.mxu0
      %v1334 = vadd.f32 0.0, %v1333
      %v1335 = vpop.f32.mrf.mxu0
      %1336 = vmatprep.mubr.bf16.mxu0 0
      %1337 = vmatmul.mubr.bf16.gmra.mxu0 %v1168
      %v1338 = vpop.f32.mrf.mxu0
      %v1339 = vadd.f32 0.0, %v1338
      %v1340 = vpop.f32.mrf.mxu0
      %v1341 = vpop.f32.mrf.mxu0
      %v1342 = vadd.f32 0.0, %v1341
      %v1343 = vpop.f32.mrf.mxu0
      %1344 = vmatprep.mubr.bf16.mxu0 0
      %1345 = vmatmul.mubr.bf16.gmra.mxu0 %v1171
      %v1346 = vpop.f32.mrf.mxu0
      %v1347 = vadd.f32 0.0, %v1346
      %v1348 = vpop.f32.mrf.mxu0
      %v1349 = vpop.f32.mrf.mxu0
      %v1350 = vadd.f32 0.0, %v1349
      %v1351 = vpop.f32.mrf.mxu0
      %1352 = vdwg.mxu0
      %v1353 = vadd.f32 %v1027, %v1211
      %v1354 = vadd.f32 %v1028, %v1214
      %v1355 = vadd.f32 %v1029, %v1219
      %v1356 = vadd.f32 %v1030, %v1222
      %v1357 = vadd.f32 %v1031, %v1227
      %v1358 = vadd.f32 %v1032, %v1230
      %v1359 = vadd.f32 %v1033, %v1235
      %v1360 = vadd.f32 %v1034, %v1238
      %v1361 = vadd.f32 %v1035, %v1243
      %v1362 = vadd.f32 %v1036, %v1246
      %v1363 = vadd.f32 %v1037, %v1251
      %v1364 = vadd.f32 %v1038, %v1254
      %v1365 = vadd.f32 %v1039, %v1259
      %v1366 = vadd.f32 %v1040, %v1262
      %v1367 = vadd.f32 %v1041, %v1267
      %v1368 = vadd.f32 %v1042, %v1270
      %v1369 = vadd.f32 %v1043, %v1275
      %v1370 = vadd.f32 %v1044, %v1278
      %v1371 = vadd.f32 %v1045, %v1283
      %v1372 = vadd.f32 %v1046, %v1286
      %v1373 = vadd.f32 %v1047, %v1291
      %v1374 = vadd.f32 %v1048, %v1294
      %v1375 = vadd.f32 %v1049, %v1299
      %v1376 = vadd.f32 %v1050, %v1302
      %v1377 = vadd.f32 %v1051, %v1307
      %v1378 = vadd.f32 %v1052, %v1310
      %v1379 = vadd.f32 %v1053, %v1315
      %v1380 = vadd.f32 %v1054, %v1318
      %v1381 = vadd.f32 %v1055, %v1323
      %v1382 = vadd.f32 %v1056, %v1326
      %v1383 = vadd.f32 %v1057, %v1331
      %v1384 = vadd.f32 %v1058, %v1334
      %v1385 = vadd.f32 %v1059, %v1339
      %v1386 = vadd.f32 %v1060, %v1342
      %v1387 = vadd.f32 %v1061, %v1347
      %v1388 = vadd.f32 %v1062, %v1350
      %1389 = vst [vmem:[%s170] sm:$0xff] %v1353
      %1390 = vst [vmem:[%s170 + $0x8] sm:$0xff] %v1354
      %1391 = vst [vmem:[%s170 + $0x10] sm:$0xff] %v1355
      %1392 = vst [vmem:[%s170 + $0x18] sm:$0xff] %v1356
      %1393 = vst [vmem:[%s170 + $0x20] sm:$0xff] %v1357
      %1394 = vst [vmem:[%s170 + $0x28] sm:$0xff] %v1358
      %1395 = vst [vmem:[%s170 + $0x30] sm:$0xff] %v1359
      %1396 = vst [vmem:[%s170 + $0x38] sm:$0xff] %v1360
      %1397 = vst [vmem:[%s170 + $0x40] sm:$0xff] %v1361
      %1398 = vst [vmem:[%s170 + $0x48] sm:$0xff] %v1362
      %1399 = vst [vmem:[%s170 + $0x50] sm:$0xff] %v1363
      %1400 = vst [vmem:[%s170 + $0x58] sm:$0xff] %v1364
      %1401 = vst [vmem:[%s170 + $0x60] sm:$0xff] %v1365
      %1402 = vst [vmem:[%s170 + $0x68] sm:$0xff] %v1366
      %1403 = vst [vmem:[%s170 + $0x70] sm:$0xff] %v1367
      %1404 = vst [vmem:[%s170 + $0x78] sm:$0xff] %v1368
      %1405 = vst [vmem:[%s170 + $0x80] sm:$0xff] %v1369
      %1406 = vst [vmem:[%s170 + $0x88] sm:$0xff] %v1370
      %1407 = vst [vmem:[%s170 + $0x90] sm:$0xff] %v1371
      %1408 = vst [vmem:[%s170 + $0x98] sm:$0xff] %v1372
      %1409 = vst [vmem:[%s170 + $0xa0] sm:$0xff] %v1373
      %1410 = vst [vmem:[%s170 + $0xa8] sm:$0xff] %v1374
      %1411 = vst [vmem:[%s170 + $0xb0] sm:$0xff] %v1375
      %1412 = vst [vmem:[%s170 + $0xb8] sm:$0xff] %v1376
      %1413 = vst [vmem:[%s170 + $0xc0] sm:$0xff] %v1377
      %1414 = vst [vmem:[%s170 + $0xc8] sm:$0xff] %v1378
      %1415 = vst [vmem:[%s170 + $0xd0] sm:$0xff] %v1379
      %1416 = vst [vmem:[%s170 + $0xd8] sm:$0xff] %v1380
      %1417 = vst [vmem:[%s170 + $0xe0] sm:$0xff] %v1381
      %1418 = vst [vmem:[%s170 + $0xe8] sm:$0xff] %v1382
      %1419 = vst [vmem:[%s170 + $0xf0] sm:$0xff] %v1383
      %1420 = vst [vmem:[%s170 + $0xf8] sm:$0xff] %v1384
      %1421 = vst [vmem:[%s170 + $0x100] sm:$0xff] %v1385
      %1422 = vst [vmem:[%s170 + $0x108] sm:$0xff] %v1386
      %1423 = vst [vmem:[%s170 + $0x110] sm:$0xff] %v1387
      %1424 = vst [vmem:[%s170 + $0x118] sm:$0xff] %v1388
      %v1425 = vld [vmem:[%s170] sm:$0xff]
      %v1426 = vld [vmem:[%s170 + $0x8] sm:$0xff]
      %v1427 = vld [vmem:[%s170 + $0x10] sm:$0xff]
      %v1428 = vld [vmem:[%s170 + $0x18] sm:$0xff]
      %v1429 = vld [vmem:[%s170 + $0x20] sm:$0xff]
      %v1430 = vld [vmem:[%s170 + $0x28] sm:$0xff]
      %v1431 = vld [vmem:[%s170 + $0x30] sm:$0xff]
      %v1432 = vld [vmem:[%s170 + $0x38] sm:$0xff]
      %v1433 = vld [vmem:[%s170 + $0x40] sm:$0xff]
      %v1434 = vld [vmem:[%s170 + $0x48] sm:$0xff]
      %v1435 = vld [vmem:[%s170 + $0x50] sm:$0xff]
      %v1436 = vld [vmem:[%s170 + $0x58] sm:$0xff]
      %v1437 = vld [vmem:[%s170 + $0x60] sm:$0xff]
      %v1438 = vld [vmem:[%s170 + $0x68] sm:$0xff]
      %v1439 = vld [vmem:[%s170 + $0x70] sm:$0xff]
      %v1440 = vld [vmem:[%s170 + $0x78] sm:$0xff]
      %v1441 = vld [vmem:[%s170 + $0x80] sm:$0xff]
      %v1442 = vld [vmem:[%s170 + $0x88] sm:$0xff]
      %v1443 = vld [vmem:[%s170 + $0x90] sm:$0xff]
      %v1444 = vld [vmem:[%s170 + $0x98] sm:$0xff]
      %v1445 = vld [vmem:[%s170 + $0xa0] sm:$0xff]
      %v1446 = vld [vmem:[%s170 + $0xa8] sm:$0xff]
      %v1447 = vld [vmem:[%s170 + $0xb0] sm:$0xff]
      %v1448 = vld [vmem:[%s170 + $0xb8] sm:$0xff]
      %v1449 = vld [vmem:[%s170 + $0xc0] sm:$0xff]
      %v1450 = vld [vmem:[%s170 + $0xc8] sm:$0xff]
      %v1451 = vld [vmem:[%s170 + $0xd0] sm:$0xff]
      %v1452 = vld [vmem:[%s170 + $0xd8] sm:$0xff]
      %v1453 = vld [vmem:[%s170 + $0xe0] sm:$0xff]
      %v1454 = vld [vmem:[%s170 + $0xe8] sm:$0xff]
      %v1455 = vld [vmem:[%s170 + $0xf0] sm:$0xff]
      %v1456 = vld [vmem:[%s170 + $0xf8] sm:$0xff]
      %v1457 = vld [vmem:[%s170 + $0x100] sm:$0xff]
      %v1458 = vld [vmem:[%s170 + $0x108] sm:$0xff]
      %v1459 = vld [vmem:[%s170 + $0x110] sm:$0xff]
      %v1460 = vld [vmem:[%s170 + $0x118] sm:$0xff]
      %v1461 = vld [vmem:[#allocation2 + $0x12] sm:$0xff]
      %v1462 = vld [vmem:[#allocation2 + $0x1a] sm:$0xff]
      %v1463 = vld [vmem:[#allocation2 + $0x22] sm:$0xff]
      %v1464 = vld [vmem:[#allocation2 + $0x2a] sm:$0xff]
      %v1465 = vld [vmem:[#allocation2 + $0x32] sm:$0xff]
      %v1466 = vld [vmem:[#allocation2 + $0x3a] sm:$0xff]
      %v1467 = vld [vmem:[#allocation2 + $0x42] sm:$0xff]
      %v1468 = vld [vmem:[#allocation2 + $0x4a] sm:$0xff]
      %v1469 = vld [vmem:[#allocation2 + $0x52] sm:$0xff]
      %v1470 = vld [vmem:[#allocation2 + $0x5a] sm:$0xff]
      %v1471 = vld [vmem:[#allocation2 + $0x62] sm:$0xff]
      %v1472 = vld [vmem:[#allocation2 + $0x6a] sm:$0xff]
      %v1473 = vld [vmem:[#allocation2 + $0x72] sm:$0xff]
      %v1474 = vld [vmem:[#allocation2 + $0x7a] sm:$0xff]
      %v1475 = vld [vmem:[#allocation2 + $0x82] sm:$0xff]
      %v1476 = vld [vmem:[#allocation2 + $0x8a] sm:$0xff]
      %v1477 = vld [vmem:[#allocation2 + $0x92] sm:$0xff]
      %v1478 = vld [vmem:[#allocation2 + $0x9a] sm:$0xff]
      %v1479 = vld [vmem:[#allocation2 + $0xa2] sm:$0xff]
      %v1480 = vld [vmem:[#allocation2 + $0xaa] sm:$0xff]
      %v1481 = vld [vmem:[#allocation2 + $0xb2] sm:$0xff]
      %v1482 = vld [vmem:[#allocation2 + $0xba] sm:$0xff]
      %v1483 = vld [vmem:[#allocation2 + $0xc2] sm:$0xff]
      %v1484 = vld [vmem:[#allocation2 + $0xca] sm:$0xff]
      %v1485 = vld [vmem:[#allocation2 + $0xd2] sm:$0xff]
      %v1486 = vld [vmem:[#allocation2 + $0xda] sm:$0xff]
      %v1487 = vld [vmem:[#allocation2 + $0xe2] sm:$0xff]
      %v1488 = vld [vmem:[#allocation2 + $0xea] sm:$0xff]
      %v1489 = vld [vmem:[#allocation2 + $0xf2] sm:$0xff]
      %v1490 = vld [vmem:[#allocation2 + $0xfa] sm:$0xff]
      %v1491 = vld [vmem:[#allocation2 + $0x102] sm:$0xff]
      %v1492 = vld [vmem:[#allocation2 + $0x10a] sm:$0xff]
      %v1493 = vld [vmem:[#allocation2 + $0x112] sm:$0xff]
      %v1494 = vld [vmem:[#allocation2 + $0x11a] sm:$0xff]
      %v1495 = vld [vmem:[#allocation2 + $0x122] sm:$0xff]
      %v1496 = vld [vmem:[#allocation2 + $0x12a] sm:$0xff]
      %v1497 = vpack.c.bf16 %v1462, %v1461
      %v1498 = vpack.c.bf16 %v1464, %v1463
      %v1499 = vpack.c.bf16 %v1466, %v1465
      %v1500 = vpack.c.bf16 %v1468, %v1467
      %v1501 = vpack.c.bf16 %v1470, %v1469
      %v1502 = vpack.c.bf16 %v1472, %v1471
      %v1503 = vpack.c.bf16 %v1474, %v1473
      %v1504 = vpack.c.bf16 %v1476, %v1475
      %v1505 = vpack.c.bf16 %v1478, %v1477
      %v1506 = vpack.c.bf16 %v1480, %v1479
      %v1507 = vpack.c.bf16 %v1482, %v1481
      %v1508 = vpack.c.bf16 %v1484, %v1483
      %v1509 = vpack.c.bf16 %v1486, %v1485
      %v1510 = vpack.c.bf16 %v1488, %v1487
      %v1511 = vpack.c.bf16 %v1490, %v1489
      %v1512 = vpack.c.bf16 %v1492, %v1491
      %v1513 = vpack.c.bf16 %v1494, %v1493
      %v1514 = vpack.c.bf16 %v1496, %v1495
      %s1515 = scalar_lea.vmem %s1, 6
      %v1516 = vld [vmem:[%s1515] sm:$0x3]
      %v1518 = vsel %vm258, %v1497, 0
      %v1521 = vsel %vm258, %v1498, 0
      %v1524 = vsel %vm258, %v1499, 0
      %v1527 = vsel %vm258, %v1500, 0
      %v1530 = vsel %vm258, %v1501, 0
      %v1533 = vsel %vm258, %v1502, 0
      %v1536 = vsel %vm258, %v1503, 0
      %v1539 = vsel %vm258, %v1504, 0
      %v1542 = vsel %vm258, %v1505, 0
      %v1545 = vsel %vm258, %v1506, 0
      %v1548 = vsel %vm258, %v1507, 0
      %v1551 = vsel %vm258, %v1508, 0
      %v1554 = vsel %vm258, %v1509, 0
      %v1557 = vsel %vm258, %v1510, 0
      %v1560 = vsel %vm258, %v1511, 0
      %v1563 = vsel %vm258, %v1512, 0
      %v1566 = vsel %vm258, %v1513, 0
      %v1569 = vsel %vm258, %v1514, 0
      %v1572 = vsel %vm412, %v1516, 0
      %1574 = vmatprep.subr.bf16.mxu0 0
      %1575 = vmatpush1.bf16.msra.mxu0 0
      %1576 = vmatprep.subr.bf16.mxu0 0
      %1577 = vmatpush1.bf16.msra.mxu0 0
      %1578 = vmatprep.subr.bf16.mxu0 0
      %1579 = vmatpush1.bf16.msra.mxu0 0
      %1580 = vmatprep.subr.bf16.mxu0 0
      %1581 = vmatpush1.bf16.msra.mxu0 0
      %1582 = vmatprep.subr.bf16.mxu0 0
      %1583 = vmatpush1.bf16.msra.mxu0 0
      %1584 = vmatprep.subr.bf16.mxu0 0
      %1585 = vmatpush1.bf16.msra.mxu0 0
      %1586 = vmatprep.subr.bf16.mxu0 0
      %1587 = vmatpush1.bf16.msra.mxu0 0
      %1588 = vmatprep.subr.bf16.mxu0 0
      %1589 = vmatpush1.bf16.msra.mxu0 %v1572
      %1590 = vmatprep.subr.bf16.mxu0 0
      %1591 = vmatpush2.bf16.msra.mxu0 0
      %1592 = vmatprep.subr.bf16.mxu0 0
      %1593 = vmatpush2.bf16.msra.mxu0 0
      %1594 = vmatprep.subr.bf16.mxu0 0
      %1595 = vmatpush2.bf16.msra.mxu0 0
      %1596 = vmatprep.subr.bf16.mxu0 0
      %1597 = vmatpush2.bf16.msra.mxu0 0
      %1598 = vmatprep.subr.bf16.mxu0 0
      %1599 = vmatpush2.bf16.msra.mxu0 0
      %1600 = vmatprep.subr.bf16.mxu0 0
      %1601 = vmatpush2.bf16.msra.mxu0 0
      %1602 = vmatprep.subr.bf16.mxu0 0
      %1603 = vmatpush2.bf16.msra.mxu0 0
      %1604 = vmatprep.subr.bf16.mxu0 0
      %1605 = vmatpush2.bf16.msra.mxu0 0
      %1606 = vmatprep.mubr.bf16.mxu0 0
      %1607 = vmatmul.mubr.bf16.gmra.mxu0 %v1518
      %v1608 = vpop.f32.mrf.mxu0
      %v1609 = vadd.f32 0.0, %v1608
      %v1610 = vpop.f32.mrf.mxu0
      %v1611 = vpop.f32.mrf.mxu0
      %v1612 = vadd.f32 0.0, %v1611
      %v1613 = vpop.f32.mrf.mxu0
      %1614 = vmatprep.mubr.bf16.mxu0 0
      %1615 = vmatmul.mubr.bf16.gmra.mxu0 %v1521
      %v1616 = vpop.f32.mrf.mxu0
      %v1617 = vadd.f32 0.0, %v1616
      %v1618 = vpop.f32.mrf.mxu0
      %v1619 = vpop.f32.mrf.mxu0
      %v1620 = vadd.f32 0.0, %v1619
      %v1621 = vpop.f32.mrf.mxu0
      %1622 = vmatprep.mubr.bf16.mxu0 0
      %1623 = vmatmul.mubr.bf16.gmra.mxu0 %v1524
      %v1624 = vpop.f32.mrf.mxu0
      %v1625 = vadd.f32 0.0, %v1624
      %v1626 = vpop.f32.mrf.mxu0
      %v1627 = vpop.f32.mrf.mxu0
      %v1628 = vadd.f32 0.0, %v1627
      %v1629 = vpop.f32.mrf.mxu0
      %1630 = vmatprep.mubr.bf16.mxu0 0
      %1631 = vmatmul.mubr.bf16.gmra.mxu0 %v1527
      %v1632 = vpop.f32.mrf.mxu0
      %v1633 = vadd.f32 0.0, %v1632
      %v1634 = vpop.f32.mrf.mxu0
      %v1635 = vpop.f32.mrf.mxu0
      %v1636 = vadd.f32 0.0, %v1635
      %v1637 = vpop.f32.mrf.mxu0
      %1638 = vmatprep.mubr.bf16.mxu0 0
      %1639 = vmatmul.mubr.bf16.gmra.mxu0 %v1530
      %v1640 = vpop.f32.mrf.mxu0
      %v1641 = vadd.f32 0.0, %v1640
      %v1642 = vpop.f32.mrf.mxu0
      %v1643 = vpop.f32.mrf.mxu0
      %v1644 = vadd.f32 0.0, %v1643
      %v1645 = vpop.f32.mrf.mxu0
      %1646 = vmatprep.mubr.bf16.mxu0 0
      %1647 = vmatmul.mubr.bf16.gmra.mxu0 %v1533
      %v1648 = vpop.f32.mrf.mxu0
      %v1649 = vadd.f32 0.0, %v1648
      %v1650 = vpop.f32.mrf.mxu0
      %v1651 = vpop.f32.mrf.mxu0
      %v1652 = vadd.f32 0.0, %v1651
      %v1653 = vpop.f32.mrf.mxu0
      %1654 = vmatprep.mubr.bf16.mxu0 0
      %1655 = vmatmul.mubr.bf16.gmra.mxu0 %v1536
      %v1656 = vpop.f32.mrf.mxu0
      %v1657 = vadd.f32 0.0, %v1656
      %v1658 = vpop.f32.mrf.mxu0
      %v1659 = vpop.f32.mrf.mxu0
      %v1660 = vadd.f32 0.0, %v1659
      %v1661 = vpop.f32.mrf.mxu0
      %1662 = vmatprep.mubr.bf16.mxu0 0
      %1663 = vmatmul.mubr.bf16.gmra.mxu0 %v1539
      %v1664 = vpop.f32.mrf.mxu0
      %v1665 = vadd.f32 0.0, %v1664
      %v1666 = vpop.f32.mrf.mxu0
      %v1667 = vpop.f32.mrf.mxu0
      %v1668 = vadd.f32 0.0, %v1667
      %v1669 = vpop.f32.mrf.mxu0
      %1670 = vmatprep.mubr.bf16.mxu0 0
      %1671 = vmatmul.mubr.bf16.gmra.mxu0 %v1542
      %v1672 = vpop.f32.mrf.mxu0
      %v1673 = vadd.f32 0.0, %v1672
      %v1674 = vpop.f32.mrf.mxu0
      %v1675 = vpop.f32.mrf.mxu0
      %v1676 = vadd.f32 0.0, %v1675
      %v1677 = vpop.f32.mrf.mxu0
      %1678 = vmatprep.mubr.bf16.mxu0 0
      %1679 = vmatmul.mubr.bf16.gmra.mxu0 %v1545
      %v1680 = vpop.f32.mrf.mxu0
      %v1681 = vadd.f32 0.0, %v1680
      %v1682 = vpop.f32.mrf.mxu0
      %v1683 = vpop.f32.mrf.mxu0
      %v1684 = vadd.f32 0.0, %v1683
      %v1685 = vpop.f32.mrf.mxu0
      %1686 = vmatprep.mubr.bf16.mxu0 0
      %1687 = vmatmul.mubr.bf16.gmra.mxu0 %v1548
      %v1688 = vpop.f32.mrf.mxu0
      %v1689 = vadd.f32 0.0, %v1688
      %v1690 = vpop.f32.mrf.mxu0
      %v1691 = vpop.f32.mrf.mxu0
      %v1692 = vadd.f32 0.0, %v1691
      %v1693 = vpop.f32.mrf.mxu0
      %1694 = vmatprep.mubr.bf16.mxu0 0
      %1695 = vmatmul.mubr.bf16.gmra.mxu0 %v1551
      %v1696 = vpop.f32.mrf.mxu0
      %v1697 = vadd.f32 0.0, %v1696
      %v1698 = vpop.f32.mrf.mxu0
      %v1699 = vpop.f32.mrf.mxu0
      %v1700 = vadd.f32 0.0, %v1699
      %v1701 = vpop.f32.mrf.mxu0
      %1702 = vmatprep.mubr.bf16.mxu0 0
      %1703 = vmatmul.mubr.bf16.gmra.mxu0 %v1554
      %v1704 = vpop.f32.mrf.mxu0
      %v1705 = vadd.f32 0.0, %v1704
      %v1706 = vpop.f32.mrf.mxu0
      %v1707 = vpop.f32.mrf.mxu0
      %v1708 = vadd.f32 0.0, %v1707
      %v1709 = vpop.f32.mrf.mxu0
      %1710 = vmatprep.mubr.bf16.mxu0 0
      %1711 = vmatmul.mubr.bf16.gmra.mxu0 %v1557
      %v1712 = vpop.f32.mrf.mxu0
      %v1713 = vadd.f32 0.0, %v1712
      %v1714 = vpop.f32.mrf.mxu0
      %v1715 = vpop.f32.mrf.mxu0
      %v1716 = vadd.f32 0.0, %v1715
      %v1717 = vpop.f32.mrf.mxu0
      %1718 = vmatprep.mubr.bf16.mxu0 0
      %1719 = vmatmul.mubr.bf16.gmra.mxu0 %v1560
      %v1720 = vpop.f32.mrf.mxu0
      %v1721 = vadd.f32 0.0, %v1720
      %v1722 = vpop.f32.mrf.mxu0
      %v1723 = vpop.f32.mrf.mxu0
      %v1724 = vadd.f32 0.0, %v1723
      %v1725 = vpop.f32.mrf.mxu0
      %1726 = vmatprep.mubr.bf16.mxu0 0
      %1727 = vmatmul.mubr.bf16.gmra.mxu0 %v1563
      %v1728 = vpop.f32.mrf.mxu0
      %v1729 = vadd.f32 0.0, %v1728
      %v1730 = vpop.f32.mrf.mxu0
      %v1731 = vpop.f32.mrf.mxu0
      %v1732 = vadd.f32 0.0, %v1731
      %v1733 = vpop.f32.mrf.mxu0
      %1734 = vmatprep.mubr.bf16.mxu0 0
      %1735 = vmatmul.mubr.bf16.gmra.mxu0 %v1566
      %v1736 = vpop.f32.mrf.mxu0
      %v1737 = vadd.f32 0.0, %v1736
      %v1738 = vpop.f32.mrf.mxu0
      %v1739 = vpop.f32.mrf.mxu0
      %v1740 = vadd.f32 0.0, %v1739
      %v1741 = vpop.f32.mrf.mxu0
      %1742 = vmatprep.mubr.bf16.mxu0 0
      %1743 = vmatmul.mubr.bf16.gmra.mxu0 %v1569
      %v1744 = vpop.f32.mrf.mxu0
      %v1745 = vadd.f32 0.0, %v1744
      %v1746 = vpop.f32.mrf.mxu0
      %v1747 = vpop.f32.mrf.mxu0
      %v1748 = vadd.f32 0.0, %v1747
      %v1749 = vpop.f32.mrf.mxu0
      %1750 = vdwg.mxu0
      %v1751 = vadd.f32 %v1425, %v1609
      %v1752 = vadd.f32 %v1426, %v1612
      %v1753 = vadd.f32 %v1427, %v1617
      %v1754 = vadd.f32 %v1428, %v1620
      %v1755 = vadd.f32 %v1429, %v1625
      %v1756 = vadd.f32 %v1430, %v1628
      %v1757 = vadd.f32 %v1431, %v1633
      %v1758 = vadd.f32 %v1432, %v1636
      %v1759 = vadd.f32 %v1433, %v1641
      %v1760 = vadd.f32 %v1434, %v1644
      %v1761 = vadd.f32 %v1435, %v1649
      %v1762 = vadd.f32 %v1436, %v1652
      %v1763 = vadd.f32 %v1437, %v1657
      %v1764 = vadd.f32 %v1438, %v1660
      %v1765 = vadd.f32 %v1439, %v1665
      %v1766 = vadd.f32 %v1440, %v1668
      %v1767 = vadd.f32 %v1441, %v1673
      %v1768 = vadd.f32 %v1442, %v1676
      %v1769 = vadd.f32 %v1443, %v1681
      %v1770 = vadd.f32 %v1444, %v1684
      %v1771 = vadd.f32 %v1445, %v1689
      %v1772 = vadd.f32 %v1446, %v1692
      %v1773 = vadd.f32 %v1447, %v1697
      %v1774 = vadd.f32 %v1448, %v1700
      %v1775 = vadd.f32 %v1449, %v1705
      %v1776 = vadd.f32 %v1450, %v1708
      %v1777 = vadd.f32 %v1451, %v1713
      %v1778 = vadd.f32 %v1452, %v1716
      %v1779 = vadd.f32 %v1453, %v1721
      %v1780 = vadd.f32 %v1454, %v1724
      %v1781 = vadd.f32 %v1455, %v1729
      %v1782 = vadd.f32 %v1456, %v1732
      %v1783 = vadd.f32 %v1457, %v1737
      %v1784 = vadd.f32 %v1458, %v1740
      %v1785 = vadd.f32 %v1459, %v1745
      %v1786 = vadd.f32 %v1460, %v1748
      %1787 = vst [vmem:[%s170] sm:$0xff] %v1751
      %1788 = vst [vmem:[%s170 + $0x8] sm:$0xff] %v1752
      %1789 = vst [vmem:[%s170 + $0x10] sm:$0xff] %v1753
      %1790 = vst [vmem:[%s170 + $0x18] sm:$0xff] %v1754
      %1791 = vst [vmem:[%s170 + $0x20] sm:$0xff] %v1755
      %1792 = vst [vmem:[%s170 + $0x28] sm:$0xff] %v1756
      %1793 = vst [vmem:[%s170 + $0x30] sm:$0xff] %v1757
      %1794 = vst [vmem:[%s170 + $0x38] sm:$0xff] %v1758
      %1795 = vst [vmem:[%s170 + $0x40] sm:$0xff] %v1759
      %1796 = vst [vmem:[%s170 + $0x48] sm:$0xff] %v1760
      %1797 = vst [vmem:[%s170 + $0x50] sm:$0xff] %v1761
      %1798 = vst [vmem:[%s170 + $0x58] sm:$0xff] %v1762
      %1799 = vst [vmem:[%s170 + $0x60] sm:$0xff] %v1763
      %1800 = vst [vmem:[%s170 + $0x68] sm:$0xff] %v1764
      %1801 = vst [vmem:[%s170 + $0x70] sm:$0xff] %v1765
      %1802 = vst [vmem:[%s170 + $0x78] sm:$0xff] %v1766
      %1803 = vst [vmem:[%s170 + $0x80] sm:$0xff] %v1767
      %1804 = vst [vmem:[%s170 + $0x88] sm:$0xff] %v1768
      %1805 = vst [vmem:[%s170 + $0x90] sm:$0xff] %v1769
      %1806 = vst [vmem:[%s170 + $0x98] sm:$0xff] %v1770
      %1807 = vst [vmem:[%s170 + $0xa0] sm:$0xff] %v1771
      %1808 = vst [vmem:[%s170 + $0xa8] sm:$0xff] %v1772
      %1809 = vst [vmem:[%s170 + $0xb0] sm:$0xff] %v1773
      %1810 = vst [vmem:[%s170 + $0xb8] sm:$0xff] %v1774
      %1811 = vst [vmem:[%s170 + $0xc0] sm:$0xff] %v1775
      %1812 = vst [vmem:[%s170 + $0xc8] sm:$0xff] %v1776
      %1813 = vst [vmem:[%s170 + $0xd0] sm:$0xff] %v1777
      %1814 = vst [vmem:[%s170 + $0xd8] sm:$0xff] %v1778
      %1815 = vst [vmem:[%s170 + $0xe0] sm:$0xff] %v1779
      %1816 = vst [vmem:[%s170 + $0xe8] sm:$0xff] %v1780
      %1817 = vst [vmem:[%s170 + $0xf0] sm:$0xff] %v1781
      %1818 = vst [vmem:[%s170 + $0xf8] sm:$0xff] %v1782
      %1819 = vst [vmem:[%s170 + $0x100] sm:$0xff] %v1783
      %1820 = vst [vmem:[%s170 + $0x108] sm:$0xff] %v1784
      %1821 = vst [vmem:[%s170 + $0x110] sm:$0xff] %v1785
      %1822 = vst [vmem:[%s170 + $0x118] sm:$0xff] %v1786
      %v1823 = vld [vmem:[%s170] sm:$0xff]
      %v1824 = vld [vmem:[%s170 + $0x8] sm:$0xff]
      %v1825 = vld [vmem:[%s170 + $0x10] sm:$0xff]
      %v1826 = vld [vmem:[%s170 + $0x18] sm:$0xff]
      %v1827 = vld [vmem:[%s170 + $0x20] sm:$0xff]
      %v1828 = vld [vmem:[%s170 + $0x28] sm:$0xff]
      %v1829 = vld [vmem:[%s170 + $0x30] sm:$0xff]
      %v1830 = vld [vmem:[%s170 + $0x38] sm:$0xff]
      %v1831 = vld [vmem:[%s170 + $0x40] sm:$0xff]
      %v1832 = vld [vmem:[%s170 + $0x48] sm:$0xff]
      %v1833 = vld [vmem:[%s170 + $0x50] sm:$0xff]
      %v1834 = vld [vmem:[%s170 + $0x58] sm:$0xff]
      %v1835 = vld [vmem:[%s170 + $0x60] sm:$0xff]
      %v1836 = vld [vmem:[%s170 + $0x68] sm:$0xff]
      %v1837 = vld [vmem:[%s170 + $0x70] sm:$0xff]
      %v1838 = vld [vmem:[%s170 + $0x78] sm:$0xff]
      %v1839 = vld [vmem:[%s170 + $0x80] sm:$0xff]
      %v1840 = vld [vmem:[%s170 + $0x88] sm:$0xff]
      %v1841 = vld [vmem:[%s170 + $0x90] sm:$0xff]
      %v1842 = vld [vmem:[%s170 + $0x98] sm:$0xff]
      %v1843 = vld [vmem:[%s170 + $0xa0] sm:$0xff]
      %v1844 = vld [vmem:[%s170 + $0xa8] sm:$0xff]
      %v1845 = vld [vmem:[%s170 + $0xb0] sm:$0xff]
      %v1846 = vld [vmem:[%s170 + $0xb8] sm:$0xff]
      %v1847 = vld [vmem:[%s170 + $0xc0] sm:$0xff]
      %v1848 = vld [vmem:[%s170 + $0xc8] sm:$0xff]
      %v1849 = vld [vmem:[%s170 + $0xd0] sm:$0xff]
      %v1850 = vld [vmem:[%s170 + $0xd8] sm:$0xff]
      %v1851 = vld [vmem:[%s170 + $0xe0] sm:$0xff]
      %v1852 = vld [vmem:[%s170 + $0xe8] sm:$0xff]
      %v1853 = vld [vmem:[%s170 + $0xf0] sm:$0xff]
      %v1854 = vld [vmem:[%s170 + $0xf8] sm:$0xff]
      %v1855 = vld [vmem:[%s170 + $0x100] sm:$0xff]
      %v1856 = vld [vmem:[%s170 + $0x108] sm:$0xff]
      %v1857 = vld [vmem:[%s170 + $0x110] sm:$0xff]
      %v1858 = vld [vmem:[%s170 + $0x118] sm:$0xff]
      %v1859 = vld [vmem:[#allocation2 + $0x13] sm:$0xff]
      %v1860 = vld [vmem:[#allocation2 + $0x1b] sm:$0xff]
      %v1861 = vld [vmem:[#allocation2 + $0x23] sm:$0xff]
      %v1862 = vld [vmem:[#allocation2 + $0x2b] sm:$0xff]
      %v1863 = vld [vmem:[#allocation2 + $0x33] sm:$0xff]
      %v1864 = vld [vmem:[#allocation2 + $0x3b] sm:$0xff]
      %v1865 = vld [vmem:[#allocation2 + $0x43] sm:$0xff]
      %v1866 = vld [vmem:[#allocation2 + $0x4b] sm:$0xff]
      %v1867 = vld [vmem:[#allocation2 + $0x53] sm:$0xff]
      %v1868 = vld [vmem:[#allocation2 + $0x5b] sm:$0xff]
      %v1869 = vld [vmem:[#allocation2 + $0x63] sm:$0xff]
      %v1870 = vld [vmem:[#allocation2 + $0x6b] sm:$0xff]
      %v1871 = vld [vmem:[#allocation2 + $0x73] sm:$0xff]
      %v1872 = vld [vmem:[#allocation2 + $0x7b] sm:$0xff]
      %v1873 = vld [vmem:[#allocation2 + $0x83] sm:$0xff]
      %v1874 = vld [vmem:[#allocation2 + $0x8b] sm:$0xff]
      %v1875 = vld [vmem:[#allocation2 + $0x93] sm:$0xff]
      %v1876 = vld [vmem:[#allocation2 + $0x9b] sm:$0xff]
      %v1877 = vld [vmem:[#allocation2 + $0xa3] sm:$0xff]
      %v1878 = vld [vmem:[#allocation2 + $0xab] sm:$0xff]
      %v1879 = vld [vmem:[#allocation2 + $0xb3] sm:$0xff]
      %v1880 = vld [vmem:[#allocation2 + $0xbb] sm:$0xff]
      %v1881 = vld [vmem:[#allocation2 + $0xc3] sm:$0xff]
      %v1882 = vld [vmem:[#allocation2 + $0xcb] sm:$0xff]
      %v1883 = vld [vmem:[#allocation2 + $0xd3] sm:$0xff]
      %v1884 = vld [vmem:[#allocation2 + $0xdb] sm:$0xff]
      %v1885 = vld [vmem:[#allocation2 + $0xe3] sm:$0xff]
      %v1886 = vld [vmem:[#allocation2 + $0xeb] sm:$0xff]
      %v1887 = vld [vmem:[#allocation2 + $0xf3] sm:$0xff]
      %v1888 = vld [vmem:[#allocation2 + $0xfb] sm:$0xff]
      %v1889 = vld [vmem:[#allocation2 + $0x103] sm:$0xff]
      %v1890 = vld [vmem:[#allocation2 + $0x10b] sm:$0xff]
      %v1891 = vld [vmem:[#allocation2 + $0x113] sm:$0xff]
      %v1892 = vld [vmem:[#allocation2 + $0x11b] sm:$0xff]
      %v1893 = vld [vmem:[#allocation2 + $0x123] sm:$0xff]
      %v1894 = vld [vmem:[#allocation2 + $0x12b] sm:$0xff]
      %v1895 = vpack.c.bf16 %v1860, %v1859
      %v1896 = vpack.c.bf16 %v1862, %v1861
      %v1897 = vpack.c.bf16 %v1864, %v1863
      %v1898 = vpack.c.bf16 %v1866, %v1865
      %v1899 = vpack.c.bf16 %v1868, %v1867
      %v1900 = vpack.c.bf16 %v1870, %v1869
      %v1901 = vpack.c.bf16 %v1872, %v1871
      %v1902 = vpack.c.bf16 %v1874, %v1873
      %v1903 = vpack.c.bf16 %v1876, %v1875
      %v1904 = vpack.c.bf16 %v1878, %v1877
      %v1905 = vpack.c.bf16 %v1880, %v1879
      %v1906 = vpack.c.bf16 %v1882, %v1881
      %v1907 = vpack.c.bf16 %v1884, %v1883
      %v1908 = vpack.c.bf16 %v1886, %v1885
      %v1909 = vpack.c.bf16 %v1888, %v1887
      %v1910 = vpack.c.bf16 %v1890, %v1889
      %v1911 = vpack.c.bf16 %v1892, %v1891
      %v1912 = vpack.c.bf16 %v1894, %v1893
      %s1913 = scalar_lea.vmem %s1, 8
      %v1914 = vld [vmem:[%s1913] sm:$0x3]
      %v1916 = vsel %vm258, %v1895, 0
      %v1919 = vsel %vm258, %v1896, 0
      %v1922 = vsel %vm258, %v1897, 0
      %v1925 = vsel %vm258, %v1898, 0
      %v1928 = vsel %vm258, %v1899, 0
      %v1931 = vsel %vm258, %v1900, 0
      %v1934 = vsel %vm258, %v1901, 0
      %v1937 = vsel %vm258, %v1902, 0
      %v1940 = vsel %vm258, %v1903, 0
      %v1943 = vsel %vm258, %v1904, 0
      %v1946 = vsel %vm258, %v1905, 0
      %v1949 = vsel %vm258, %v1906, 0
      %v1952 = vsel %vm258, %v1907, 0
      %v1955 = vsel %vm258, %v1908, 0
      %v1958 = vsel %vm258, %v1909, 0
      %v1961 = vsel %vm258, %v1910, 0
      %v1964 = vsel %vm258, %v1911, 0
      %v1967 = vsel %vm258, %v1912, 0
      %v1970 = vsel %vm412, %v1914, 0
      %1972 = vmatprep.subr.bf16.mxu0 0
      %1973 = vmatpush1.bf16.msra.mxu0 0
      %1974 = vmatprep.subr.bf16.mxu0 0
      %1975 = vmatpush1.bf16.msra.mxu0 0
      %1976 = vmatprep.subr.bf16.mxu0 0
      %1977 = vmatpush1.bf16.msra.mxu0 0
      %1978 = vmatprep.subr.bf16.mxu0 0
      %1979 = vmatpush1.bf16.msra.mxu0 0
      %1980 = vmatprep.subr.bf16.mxu0 0
      %1981 = vmatpush1.bf16.msra.mxu0 0
      %1982 = vmatprep.subr.bf16.mxu0 0
      %1983 = vmatpush1.bf16.msra.mxu0 0
      %1984 = vmatprep.subr.bf16.mxu0 0
      %1985 = vmatpush1.bf16.msra.mxu0 0
      %1986 = vmatprep.subr.bf16.mxu0 0
      %1987 = vmatpush1.bf16.msra.mxu0 %v1970
      %1988 = vmatprep.subr.bf16.mxu0 0
      %1989 = vmatpush2.bf16.msra.mxu0 0
      %1990 = vmatprep.subr.bf16.mxu0 0
      %1991 = vmatpush2.bf16.msra.mxu0 0
      %1992 = vmatprep.subr.bf16.mxu0 0
      %1993 = vmatpush2.bf16.msra.mxu0 0
      %1994 = vmatprep.subr.bf16.mxu0 0
      %1995 = vmatpush2.bf16.msra.mxu0 0
      %1996 = vmatprep.subr.bf16.mxu0 0
      %1997 = vmatpush2.bf16.msra.mxu0 0
      %1998 = vmatprep.subr.bf16.mxu0 0
      %1999 = vmatpush2.bf16.msra.mxu0 0
      %2000 = vmatprep.subr.bf16.mxu0 0
      %2001 = vmatpush2.bf16.msra.mxu0 0
      %2002 = vmatprep.subr.bf16.mxu0 0
      %2003 = vmatpush2.bf16.msra.mxu0 0
      %2004 = vmatprep.mubr.bf16.mxu0 0
      %2005 = vmatmul.mubr.bf16.gmra.mxu0 %v1916
      %v2006 = vpop.f32.mrf.mxu0
      %v2007 = vadd.f32 0.0, %v2006
      %v2008 = vpop.f32.mrf.mxu0
      %v2009 = vpop.f32.mrf.mxu0
      %v2010 = vadd.f32 0.0, %v2009
      %v2011 = vpop.f32.mrf.mxu0
      %2012 = vmatprep.mubr.bf16.mxu0 0
      %2013 = vmatmul.mubr.bf16.gmra.mxu0 %v1919
      %v2014 = vpop.f32.mrf.mxu0
      %v2015 = vadd.f32 0.0, %v2014
      %v2016 = vpop.f32.mrf.mxu0
      %v2017 = vpop.f32.mrf.mxu0
      %v2018 = vadd.f32 0.0, %v2017
      %v2019 = vpop.f32.mrf.mxu0
      %2020 = vmatprep.mubr.bf16.mxu0 0
      %2021 = vmatmul.mubr.bf16.gmra.mxu0 %v1922
      %v2022 = vpop.f32.mrf.mxu0
      %v2023 = vadd.f32 0.0, %v2022
      %v2024 = vpop.f32.mrf.mxu0
      %v2025 = vpop.f32.mrf.mxu0
      %v2026 = vadd.f32 0.0, %v2025
      %v2027 = vpop.f32.mrf.mxu0
      %2028 = vmatprep.mubr.bf16.mxu0 0
      %2029 = vmatmul.mubr.bf16.gmra.mxu0 %v1925
      %v2030 = vpop.f32.mrf.mxu0
      %v2031 = vadd.f32 0.0, %v2030
      %v2032 = vpop.f32.mrf.mxu0
      %v2033 = vpop.f32.mrf.mxu0
      %v2034 = vadd.f32 0.0, %v2033
      %v2035 = vpop.f32.mrf.mxu0
      %2036 = vmatprep.mubr.bf16.mxu0 0
      %2037 = vmatmul.mubr.bf16.gmra.mxu0 %v1928
      %v2038 = vpop.f32.mrf.mxu0
      %v2039 = vadd.f32 0.0, %v2038
      %v2040 = vpop.f32.mrf.mxu0
      %v2041 = vpop.f32.mrf.mxu0
      %v2042 = vadd.f32 0.0, %v2041
      %v2043 = vpop.f32.mrf.mxu0
      %2044 = vmatprep.mubr.bf16.mxu0 0
      %2045 = vmatmul.mubr.bf16.gmra.mxu0 %v1931
      %v2046 = vpop.f32.mrf.mxu0
      %v2047 = vadd.f32 0.0, %v2046
      %v2048 = vpop.f32.mrf.mxu0
      %v2049 = vpop.f32.mrf.mxu0
      %v2050 = vadd.f32 0.0, %v2049
      %v2051 = vpop.f32.mrf.mxu0
      %2052 = vmatprep.mubr.bf16.mxu0 0
      %2053 = vmatmul.mubr.bf16.gmra.mxu0 %v1934
      %v2054 = vpop.f32.mrf.mxu0
      %v2055 = vadd.f32 0.0, %v2054
      %v2056 = vpop.f32.mrf.mxu0
      %v2057 = vpop.f32.mrf.mxu0
      %v2058 = vadd.f32 0.0, %v2057
      %v2059 = vpop.f32.mrf.mxu0
      %2060 = vmatprep.mubr.bf16.mxu0 0
      %2061 = vmatmul.mubr.bf16.gmra.mxu0 %v1937
      %v2062 = vpop.f32.mrf.mxu0
      %v2063 = vadd.f32 0.0, %v2062
      %v2064 = vpop.f32.mrf.mxu0
      %v2065 = vpop.f32.mrf.mxu0
      %v2066 = vadd.f32 0.0, %v2065
      %v2067 = vpop.f32.mrf.mxu0
      %2068 = vmatprep.mubr.bf16.mxu0 0
      %2069 = vmatmul.mubr.bf16.gmra.mxu0 %v1940
      %v2070 = vpop.f32.mrf.mxu0
      %v2071 = vadd.f32 0.0, %v2070
      %v2072 = vpop.f32.mrf.mxu0
      %v2073 = vpop.f32.mrf.mxu0
      %v2074 = vadd.f32 0.0, %v2073
      %v2075 = vpop.f32.mrf.mxu0
      %2076 = vmatprep.mubr.bf16.mxu0 0
      %2077 = vmatmul.mubr.bf16.gmra.mxu0 %v1943
      %v2078 = vpop.f32.mrf.mxu0
      %v2079 = vadd.f32 0.0, %v2078
      %v2080 = vpop.f32.mrf.mxu0
      %v2081 = vpop.f32.mrf.mxu0
      %v2082 = vadd.f32 0.0, %v2081
      %v2083 = vpop.f32.mrf.mxu0
      %2084 = vmatprep.mubr.bf16.mxu0 0
      %2085 = vmatmul.mubr.bf16.gmra.mxu0 %v1946
      %v2086 = vpop.f32.mrf.mxu0
      %v2087 = vadd.f32 0.0, %v2086
      %v2088 = vpop.f32.mrf.mxu0
      %v2089 = vpop.f32.mrf.mxu0
      %v2090 = vadd.f32 0.0, %v2089
      %v2091 = vpop.f32.mrf.mxu0
      %2092 = vmatprep.mubr.bf16.mxu0 0
      %2093 = vmatmul.mubr.bf16.gmra.mxu0 %v1949
      %v2094 = vpop.f32.mrf.mxu0
      %v2095 = vadd.f32 0.0, %v2094
      %v2096 = vpop.f32.mrf.mxu0
      %v2097 = vpop.f32.mrf.mxu0
      %v2098 = vadd.f32 0.0, %v2097
      %v2099 = vpop.f32.mrf.mxu0
      %2100 = vmatprep.mubr.bf16.mxu0 0
      %2101 = vmatmul.mubr.bf16.gmra.mxu0 %v1952
      %v2102 = vpop.f32.mrf.mxu0
      %v2103 = vadd.f32 0.0, %v2102
      %v2104 = vpop.f32.mrf.mxu0
      %v2105 = vpop.f32.mrf.mxu0
      %v2106 = vadd.f32 0.0, %v2105
      %v2107 = vpop.f32.mrf.mxu0
      %2108 = vmatprep.mubr.bf16.mxu0 0
      %2109 = vmatmul.mubr.bf16.gmra.mxu0 %v1955
      %v2110 = vpop.f32.mrf.mxu0
      %v2111 = vadd.f32 0.0, %v2110
      %v2112 = vpop.f32.mrf.mxu0
      %v2113 = vpop.f32.mrf.mxu0
      %v2114 = vadd.f32 0.0, %v2113
      %v2115 = vpop.f32.mrf.mxu0
      %2116 = vmatprep.mubr.bf16.mxu0 0
      %2117 = vmatmul.mubr.bf16.gmra.mxu0 %v1958
      %v2118 = vpop.f32.mrf.mxu0
      %v2119 = vadd.f32 0.0, %v2118
      %v2120 = vpop.f32.mrf.mxu0
      %v2121 = vpop.f32.mrf.mxu0
      %v2122 = vadd.f32 0.0, %v2121
      %v2123 = vpop.f32.mrf.mxu0
      %2124 = vmatprep.mubr.bf16.mxu0 0
      %2125 = vmatmul.mubr.bf16.gmra.mxu0 %v1961
      %v2126 = vpop.f32.mrf.mxu0
      %v2127 = vadd.f32 0.0, %v2126
      %v2128 = vpop.f32.mrf.mxu0
      %v2129 = vpop.f32.mrf.mxu0
      %v2130 = vadd.f32 0.0, %v2129
      %v2131 = vpop.f32.mrf.mxu0
      %2132 = vmatprep.mubr.bf16.mxu0 0
      %2133 = vmatmul.mubr.bf16.gmra.mxu0 %v1964
      %v2134 = vpop.f32.mrf.mxu0
      %v2135 = vadd.f32 0.0, %v2134
      %v2136 = vpop.f32.mrf.mxu0
      %v2137 = vpop.f32.mrf.mxu0
      %v2138 = vadd.f32 0.0, %v2137
      %v2139 = vpop.f32.mrf.mxu0
      %2140 = vmatprep.mubr.bf16.mxu0 0
      %2141 = vmatmul.mubr.bf16.gmra.mxu0 %v1967
      %v2142 = vpop.f32.mrf.mxu0
      %v2143 = vadd.f32 0.0, %v2142
      %v2144 = vpop.f32.mrf.mxu0
      %v2145 = vpop.f32.mrf.mxu0
      %v2146 = vadd.f32 0.0, %v2145
      %v2147 = vpop.f32.mrf.mxu0
      %2148 = vdwg.mxu0
      %v2149 = vadd.f32 %v1823, %v2007
      %v2150 = vadd.f32 %v1824, %v2010
      %v2151 = vadd.f32 %v1825, %v2015
      %v2152 = vadd.f32 %v1826, %v2018
      %v2153 = vadd.f32 %v1827, %v2023
      %v2154 = vadd.f32 %v1828, %v2026
      %v2155 = vadd.f32 %v1829, %v2031
      %v2156 = vadd.f32 %v1830, %v2034
      %v2157 = vadd.f32 %v1831, %v2039
      %v2158 = vadd.f32 %v1832, %v2042
      %v2159 = vadd.f32 %v1833, %v2047
      %v2160 = vadd.f32 %v1834, %v2050
      %v2161 = vadd.f32 %v1835, %v2055
      %v2162 = vadd.f32 %v1836, %v2058
      %v2163 = vadd.f32 %v1837, %v2063
      %v2164 = vadd.f32 %v1838, %v2066
      %v2165 = vadd.f32 %v1839, %v2071
      %v2166 = vadd.f32 %v1840, %v2074
      %v2167 = vadd.f32 %v1841, %v2079
      %v2168 = vadd.f32 %v1842, %v2082
      %v2169 = vadd.f32 %v1843, %v2087
      %v2170 = vadd.f32 %v1844, %v2090
      %v2171 = vadd.f32 %v1845, %v2095
      %v2172 = vadd.f32 %v1846, %v2098
      %v2173 = vadd.f32 %v1847, %v2103
      %v2174 = vadd.f32 %v1848, %v2106
      %v2175 = vadd.f32 %v1849, %v2111
      %v2176 = vadd.f32 %v1850, %v2114
      %v2177 = vadd.f32 %v1851, %v2119
      %v2178 = vadd.f32 %v1852, %v2122
      %v2179 = vadd.f32 %v1853, %v2127
      %v2180 = vadd.f32 %v1854, %v2130
      %v2181 = vadd.f32 %v1855, %v2135
      %v2182 = vadd.f32 %v1856, %v2138
      %v2183 = vadd.f32 %v1857, %v2143
      %v2184 = vadd.f32 %v1858, %v2146
      %2185 = vst [vmem:[%s170] sm:$0xff] %v2149
      %2186 = vst [vmem:[%s170 + $0x8] sm:$0xff] %v2150
      %2187 = vst [vmem:[%s170 + $0x10] sm:$0xff] %v2151
      %2188 = vst [vmem:[%s170 + $0x18] sm:$0xff] %v2152
      %2189 = vst [vmem:[%s170 + $0x20] sm:$0xff] %v2153
      %2190 = vst [vmem:[%s170 + $0x28] sm:$0xff] %v2154
      %2191 = vst [vmem:[%s170 + $0x30] sm:$0xff] %v2155
      %2192 = vst [vmem:[%s170 + $0x38] sm:$0xff] %v2156
      %2193 = vst [vmem:[%s170 + $0x40] sm:$0xff] %v2157
      %2194 = vst [vmem:[%s170 + $0x48] sm:$0xff] %v2158
      %2195 = vst [vmem:[%s170 + $0x50] sm:$0xff] %v2159
      %2196 = vst [vmem:[%s170 + $0x58] sm:$0xff] %v2160
      %2197 = vst [vmem:[%s170 + $0x60] sm:$0xff] %v2161
      %2198 = vst [vmem:[%s170 + $0x68] sm:$0xff] %v2162
      %2199 = vst [vmem:[%s170 + $0x70] sm:$0xff] %v2163
      %2200 = vst [vmem:[%s170 + $0x78] sm:$0xff] %v2164
      %2201 = vst [vmem:[%s170 + $0x80] sm:$0xff] %v2165
      %2202 = vst [vmem:[%s170 + $0x88] sm:$0xff] %v2166
      %2203 = vst [vmem:[%s170 + $0x90] sm:$0xff] %v2167
      %2204 = vst [vmem:[%s170 + $0x98] sm:$0xff] %v2168
      %2205 = vst [vmem:[%s170 + $0xa0] sm:$0xff] %v2169
      %2206 = vst [vmem:[%s170 + $0xa8] sm:$0xff] %v2170
      %2207 = vst [vmem:[%s170 + $0xb0] sm:$0xff] %v2171
      %2208 = vst [vmem:[%s170 + $0xb8] sm:$0xff] %v2172
      %2209 = vst [vmem:[%s170 + $0xc0] sm:$0xff] %v2173
      %2210 = vst [vmem:[%s170 + $0xc8] sm:$0xff] %v2174
      %2211 = vst [vmem:[%s170 + $0xd0] sm:$0xff] %v2175
      %2212 = vst [vmem:[%s170 + $0xd8] sm:$0xff] %v2176
      %2213 = vst [vmem:[%s170 + $0xe0] sm:$0xff] %v2177
      %2214 = vst [vmem:[%s170 + $0xe8] sm:$0xff] %v2178
      %2215 = vst [vmem:[%s170 + $0xf0] sm:$0xff] %v2179
      %2216 = vst [vmem:[%s170 + $0xf8] sm:$0xff] %v2180
      %2217 = vst [vmem:[%s170 + $0x100] sm:$0xff] %v2181
      %2218 = vst [vmem:[%s170 + $0x108] sm:$0xff] %v2182
      %2219 = vst [vmem:[%s170 + $0x110] sm:$0xff] %v2183
      %2220 = vst [vmem:[%s170 + $0x118] sm:$0xff] %v2184
      %v2221 = vld [vmem:[%s170] sm:$0xff]
      %v2222 = vld [vmem:[%s170 + $0x8] sm:$0xff]
      %v2223 = vld [vmem:[%s170 + $0x10] sm:$0xff]
      %v2224 = vld [vmem:[%s170 + $0x18] sm:$0xff]
      %v2225 = vld [vmem:[%s170 + $0x20] sm:$0xff]
      %v2226 = vld [vmem:[%s170 + $0x28] sm:$0xff]
      %v2227 = vld [vmem:[%s170 + $0x30] sm:$0xff]
      %v2228 = vld [vmem:[%s170 + $0x38] sm:$0xff]
      %v2229 = vld [vmem:[%s170 + $0x40] sm:$0xff]
      %v2230 = vld [vmem:[%s170 + $0x48] sm:$0xff]
      %v2231 = vld [vmem:[%s170 + $0x50] sm:$0xff]
      %v2232 = vld [vmem:[%s170 + $0x58] sm:$0xff]
      %v2233 = vld [vmem:[%s170 + $0x60] sm:$0xff]
      %v2234 = vld [vmem:[%s170 + $0x68] sm:$0xff]
      %v2235 = vld [vmem:[%s170 + $0x70] sm:$0xff]
      %v2236 = vld [vmem:[%s170 + $0x78] sm:$0xff]
      %v2237 = vld [vmem:[%s170 + $0x80] sm:$0xff]
      %v2238 = vld [vmem:[%s170 + $0x88] sm:$0xff]
      %v2239 = vld [vmem:[%s170 + $0x90] sm:$0xff]
      %v2240 = vld [vmem:[%s170 + $0x98] sm:$0xff]
      %v2241 = vld [vmem:[%s170 + $0xa0] sm:$0xff]
      %v2242 = vld [vmem:[%s170 + $0xa8] sm:$0xff]
      %v2243 = vld [vmem:[%s170 + $0xb0] sm:$0xff]
      %v2244 = vld [vmem:[%s170 + $0xb8] sm:$0xff]
      %v2245 = vld [vmem:[%s170 + $0xc0] sm:$0xff]
      %v2246 = vld [vmem:[%s170 + $0xc8] sm:$0xff]
      %v2247 = vld [vmem:[%s170 + $0xd0] sm:$0xff]
      %v2248 = vld [vmem:[%s170 + $0xd8] sm:$0xff]
      %v2249 = vld [vmem:[%s170 + $0xe0] sm:$0xff]
      %v2250 = vld [vmem:[%s170 + $0xe8] sm:$0xff]
      %v2251 = vld [vmem:[%s170 + $0xf0] sm:$0xff]
      %v2252 = vld [vmem:[%s170 + $0xf8] sm:$0xff]
      %v2253 = vld [vmem:[%s170 + $0x100] sm:$0xff]
      %v2254 = vld [vmem:[%s170 + $0x108] sm:$0xff]
      %v2255 = vld [vmem:[%s170 + $0x110] sm:$0xff]
      %v2256 = vld [vmem:[%s170 + $0x118] sm:$0xff]
      %v2257 = vld [vmem:[#allocation2 + $0x14] sm:$0xff]
      %v2258 = vld [vmem:[#allocation2 + $0x1c] sm:$0xff]
      %v2259 = vld [vmem:[#allocation2 + $0x24] sm:$0xff]
      %v2260 = vld [vmem:[#allocation2 + $0x2c] sm:$0xff]
      %v2261 = vld [vmem:[#allocation2 + $0x34] sm:$0xff]
      %v2262 = vld [vmem:[#allocation2 + $0x3c] sm:$0xff]
      %v2263 = vld [vmem:[#allocation2 + $0x44] sm:$0xff]
      %v2264 = vld [vmem:[#allocation2 + $0x4c] sm:$0xff]
      %v2265 = vld [vmem:[#allocation2 + $0x54] sm:$0xff]
      %v2266 = vld [vmem:[#allocation2 + $0x5c] sm:$0xff]
      %v2267 = vld [vmem:[#allocation2 + $0x64] sm:$0xff]
      %v2268 = vld [vmem:[#allocation2 + $0x6c] sm:$0xff]
      %v2269 = vld [vmem:[#allocation2 + $0x74] sm:$0xff]
      %v2270 = vld [vmem:[#allocation2 + $0x7c] sm:$0xff]
      %v2271 = vld [vmem:[#allocation2 + $0x84] sm:$0xff]
      %v2272 = vld [vmem:[#allocation2 + $0x8c] sm:$0xff]
      %v2273 = vld [vmem:[#allocation2 + $0x94] sm:$0xff]
      %v2274 = vld [vmem:[#allocation2 + $0x9c] sm:$0xff]
      %v2275 = vld [vmem:[#allocation2 + $0xa4] sm:$0xff]
      %v2276 = vld [vmem:[#allocation2 + $0xac] sm:$0xff]
      %v2277 = vld [vmem:[#allocation2 + $0xb4] sm:$0xff]
      %v2278 = vld [vmem:[#allocation2 + $0xbc] sm:$0xff]
      %v2279 = vld [vmem:[#allocation2 + $0xc4] sm:$0xff]
      %v2280 = vld [vmem:[#allocation2 + $0xcc] sm:$0xff]
      %v2281 = vld [vmem:[#allocation2 + $0xd4] sm:$0xff]
      %v2282 = vld [vmem:[#allocation2 + $0xdc] sm:$0xff]
      %v2283 = vld [vmem:[#allocation2 + $0xe4] sm:$0xff]
      %v2284 = vld [vmem:[#allocation2 + $0xec] sm:$0xff]
      %v2285 = vld [vmem:[#allocation2 + $0xf4] sm:$0xff]
      %v2286 = vld [vmem:[#allocation2 + $0xfc] sm:$0xff]
      %v2287 = vld [vmem:[#allocation2 + $0x104] sm:$0xff]
      %v2288 = vld [vmem:[#allocation2 + $0x10c] sm:$0xff]
      %v2289 = vld [vmem:[#allocation2 + $0x114] sm:$0xff]
      %v2290 = vld [vmem:[#allocation2 + $0x11c] sm:$0xff]
      %v2291 = vld [vmem:[#allocation2 + $0x124] sm:$0xff]
      %v2292 = vld [vmem:[#allocation2 + $0x12c] sm:$0xff]
      %v2293 = vpack.c.bf16 %v2258, %v2257
      %v2294 = vpack.c.bf16 %v2260, %v2259
      %v2295 = vpack.c.bf16 %v2262, %v2261
      %v2296 = vpack.c.bf16 %v2264, %v2263
      %v2297 = vpack.c.bf16 %v2266, %v2265
      %v2298 = vpack.c.bf16 %v2268, %v2267
      %v2299 = vpack.c.bf16 %v2270, %v2269
      %v2300 = vpack.c.bf16 %v2272, %v2271
      %v2301 = vpack.c.bf16 %v2274, %v2273
      %v2302 = vpack.c.bf16 %v2276, %v2275
      %v2303 = vpack.c.bf16 %v2278, %v2277
      %v2304 = vpack.c.bf16 %v2280, %v2279
      %v2305 = vpack.c.bf16 %v2282, %v2281
      %v2306 = vpack.c.bf16 %v2284, %v2283
      %v2307 = vpack.c.bf16 %v2286, %v2285
      %v2308 = vpack.c.bf16 %v2288, %v2287
      %v2309 = vpack.c.bf16 %v2290, %v2289
      %v2310 = vpack.c.bf16 %v2292, %v2291
      %s2311 = scalar_lea.vmem %s1, 10
      %v2312 = vld [vmem:[%s2311] sm:$0x3]
      %v2314 = vsel %vm258, %v2293, 0
      %v2317 = vsel %vm258, %v2294, 0
      %v2320 = vsel %vm258, %v2295, 0
      %v2323 = vsel %vm258, %v2296, 0
      %v2326 = vsel %vm258, %v2297, 0
      %v2329 = vsel %vm258, %v2298, 0
      %v2332 = vsel %vm258, %v2299, 0
      %v2335 = vsel %vm258, %v2300, 0
      %v2338 = vsel %vm258, %v2301, 0
      %v2341 = vsel %vm258, %v2302, 0
      %v2344 = vsel %vm258, %v2303, 0
      %v2347 = vsel %vm258, %v2304, 0
      %v2350 = vsel %vm258, %v2305, 0
      %v2353 = vsel %vm258, %v2306, 0
      %v2356 = vsel %vm258, %v2307, 0
      %v2359 = vsel %vm258, %v2308, 0
      %v2362 = vsel %vm258, %v2309, 0
      %v2365 = vsel %vm258, %v2310, 0
      %v2368 = vsel %vm412, %v2312, 0
      %2370 = vmatprep.subr.bf16.mxu0 0
      %2371 = vmatpush1.bf16.msra.mxu0 0
      %2372 = vmatprep.subr.bf16.mxu0 0
      %2373 = vmatpush1.bf16.msra.mxu0 0
      %2374 = vmatprep.subr.bf16.mxu0 0
      %2375 = vmatpush1.bf16.msra.mxu0 0
      %2376 = vmatprep.subr.bf16.mxu0 0
      %2377 = vmatpush1.bf16.msra.mxu0 0
      %2378 = vmatprep.subr.bf16.mxu0 0
      %2379 = vmatpush1.bf16.msra.mxu0 0
      %2380 = vmatprep.subr.bf16.mxu0 0
      %2381 = vmatpush1.bf16.msra.mxu0 0
      %2382 = vmatprep.subr.bf16.mxu0 0
      %2383 = vmatpush1.bf16.msra.mxu0 0
      %2384 = vmatprep.subr.bf16.mxu0 0
      %2385 = vmatpush1.bf16.msra.mxu0 %v2368
      %2386 = vmatprep.subr.bf16.mxu0 0
      %2387 = vmatpush2.bf16.msra.mxu0 0
      %2388 = vmatprep.subr.bf16.mxu0 0
      %2389 = vmatpush2.bf16.msra.mxu0 0
      %2390 = vmatprep.subr.bf16.mxu0 0
      %2391 = vmatpush2.bf16.msra.mxu0 0
      %2392 = vmatprep.subr.bf16.mxu0 0
      %2393 = vmatpush2.bf16.msra.mxu0 0
      %2394 = vmatprep.subr.bf16.mxu0 0
      %2395 = vmatpush2.bf16.msra.mxu0 0
      %2396 = vmatprep.subr.bf16.mxu0 0
      %2397 = vmatpush2.bf16.msra.mxu0 0
      %2398 = vmatprep.subr.bf16.mxu0 0
      %2399 = vmatpush2.bf16.msra.mxu0 0
      %2400 = vmatprep.subr.bf16.mxu0 0
      %2401 = vmatpush2.bf16.msra.mxu0 0
      %2402 = vmatprep.mubr.bf16.mxu0 0
      %2403 = vmatmul.mubr.bf16.gmra.mxu0 %v2314
      %v2404 = vpop.f32.mrf.mxu0
      %v2405 = vadd.f32 0.0, %v2404
      %v2406 = vpop.f32.mrf.mxu0
      %v2407 = vpop.f32.mrf.mxu0
      %v2408 = vadd.f32 0.0, %v2407
      %v2409 = vpop.f32.mrf.mxu0
      %2410 = vmatprep.mubr.bf16.mxu0 0
      %2411 = vmatmul.mubr.bf16.gmra.mxu0 %v2317
      %v2412 = vpop.f32.mrf.mxu0
      %v2413 = vadd.f32 0.0, %v2412
      %v2414 = vpop.f32.mrf.mxu0
      %v2415 = vpop.f32.mrf.mxu0
      %v2416 = vadd.f32 0.0, %v2415
      %v2417 = vpop.f32.mrf.mxu0
      %2418 = vmatprep.mubr.bf16.mxu0 0
      %2419 = vmatmul.mubr.bf16.gmra.mxu0 %v2320
      %v2420 = vpop.f32.mrf.mxu0
      %v2421 = vadd.f32 0.0, %v2420
      %v2422 = vpop.f32.mrf.mxu0
      %v2423 = vpop.f32.mrf.mxu0
      %v2424 = vadd.f32 0.0, %v2423
      %v2425 = vpop.f32.mrf.mxu0
      %2426 = vmatprep.mubr.bf16.mxu0 0
      %2427 = vmatmul.mubr.bf16.gmra.mxu0 %v2323
      %v2428 = vpop.f32.mrf.mxu0
      %v2429 = vadd.f32 0.0, %v2428
      %v2430 = vpop.f32.mrf.mxu0
      %v2431 = vpop.f32.mrf.mxu0
      %v2432 = vadd.f32 0.0, %v2431
      %v2433 = vpop.f32.mrf.mxu0
      %2434 = vmatprep.mubr.bf16.mxu0 0
      %2435 = vmatmul.mubr.bf16.gmra.mxu0 %v2326
      %v2436 = vpop.f32.mrf.mxu0
      %v2437 = vadd.f32 0.0, %v2436
      %v2438 = vpop.f32.mrf.mxu0
      %v2439 = vpop.f32.mrf.mxu0
      %v2440 = vadd.f32 0.0, %v2439
      %v2441 = vpop.f32.mrf.mxu0
      %2442 = vmatprep.mubr.bf16.mxu0 0
      %2443 = vmatmul.mubr.bf16.gmra.mxu0 %v2329
      %v2444 = vpop.f32.mrf.mxu0
      %v2445 = vadd.f32 0.0, %v2444
      %v2446 = vpop.f32.mrf.mxu0
      %v2447 = vpop.f32.mrf.mxu0
      %v2448 = vadd.f32 0.0, %v2447
      %v2449 = vpop.f32.mrf.mxu0
      %2450 = vmatprep.mubr.bf16.mxu0 0
      %2451 = vmatmul.mubr.bf16.gmra.mxu0 %v2332
      %v2452 = vpop.f32.mrf.mxu0
      %v2453 = vadd.f32 0.0, %v2452
      %v2454 = vpop.f32.mrf.mxu0
      %v2455 = vpop.f32.mrf.mxu0
      %v2456 = vadd.f32 0.0, %v2455
      %v2457 = vpop.f32.mrf.mxu0
      %2458 = vmatprep.mubr.bf16.mxu0 0
      %2459 = vmatmul.mubr.bf16.gmra.mxu0 %v2335
      %v2460 = vpop.f32.mrf.mxu0
      %v2461 = vadd.f32 0.0, %v2460
      %v2462 = vpop.f32.mrf.mxu0
      %v2463 = vpop.f32.mrf.mxu0
      %v2464 = vadd.f32 0.0, %v2463
      %v2465 = vpop.f32.mrf.mxu0
      %2466 = vmatprep.mubr.bf16.mxu0 0
      %2467 = vmatmul.mubr.bf16.gmra.mxu0 %v2338
      %v2468 = vpop.f32.mrf.mxu0
      %v2469 = vadd.f32 0.0, %v2468
      %v2470 = vpop.f32.mrf.mxu0
      %v2471 = vpop.f32.mrf.mxu0
      %v2472 = vadd.f32 0.0, %v2471
      %v2473 = vpop.f32.mrf.mxu0
      %2474 = vmatprep.mubr.bf16.mxu0 0
      %2475 = vmatmul.mubr.bf16.gmra.mxu0 %v2341
      %v2476 = vpop.f32.mrf.mxu0
      %v2477 = vadd.f32 0.0, %v2476
      %v2478 = vpop.f32.mrf.mxu0
      %v2479 = vpop.f32.mrf.mxu0
      %v2480 = vadd.f32 0.0, %v2479
      %v2481 = vpop.f32.mrf.mxu0
      %2482 = vmatprep.mubr.bf16.mxu0 0
      %2483 = vmatmul.mubr.bf16.gmra.mxu0 %v2344
      %v2484 = vpop.f32.mrf.mxu0
      %v2485 = vadd.f32 0.0, %v2484
      %v2486 = vpop.f32.mrf.mxu0
      %v2487 = vpop.f32.mrf.mxu0
      %v2488 = vadd.f32 0.0, %v2487
      %v2489 = vpop.f32.mrf.mxu0
      %2490 = vmatprep.mubr.bf16.mxu0 0
      %2491 = vmatmul.mubr.bf16.gmra.mxu0 %v2347
      %v2492 = vpop.f32.mrf.mxu0
      %v2493 = vadd.f32 0.0, %v2492
      %v2494 = vpop.f32.mrf.mxu0
      %v2495 = vpop.f32.mrf.mxu0
      %v2496 = vadd.f32 0.0, %v2495
      %v2497 = vpop.f32.mrf.mxu0
      %2498 = vmatprep.mubr.bf16.mxu0 0
      %2499 = vmatmul.mubr.bf16.gmra.mxu0 %v2350
      %v2500 = vpop.f32.mrf.mxu0
      %v2501 = vadd.f32 0.0, %v2500
      %v2502 = vpop.f32.mrf.mxu0
      %v2503 = vpop.f32.mrf.mxu0
      %v2504 = vadd.f32 0.0, %v2503
      %v2505 = vpop.f32.mrf.mxu0
      %2506 = vmatprep.mubr.bf16.mxu0 0
      %2507 = vmatmul.mubr.bf16.gmra.mxu0 %v2353
      %v2508 = vpop.f32.mrf.mxu0
      %v2509 = vadd.f32 0.0, %v2508
      %v2510 = vpop.f32.mrf.mxu0
      %v2511 = vpop.f32.mrf.mxu0
      %v2512 = vadd.f32 0.0, %v2511
      %v2513 = vpop.f32.mrf.mxu0
      %2514 = vmatprep.mubr.bf16.mxu0 0
      %2515 = vmatmul.mubr.bf16.gmra.mxu0 %v2356
      %v2516 = vpop.f32.mrf.mxu0
      %v2517 = vadd.f32 0.0, %v2516
      %v2518 = vpop.f32.mrf.mxu0
      %v2519 = vpop.f32.mrf.mxu0
      %v2520 = vadd.f32 0.0, %v2519
      %v2521 = vpop.f32.mrf.mxu0
      %2522 = vmatprep.mubr.bf16.mxu0 0
      %2523 = vmatmul.mubr.bf16.gmra.mxu0 %v2359
      %v2524 = vpop.f32.mrf.mxu0
      %v2525 = vadd.f32 0.0, %v2524
      %v2526 = vpop.f32.mrf.mxu0
      %v2527 = vpop.f32.mrf.mxu0
      %v2528 = vadd.f32 0.0, %v2527
      %v2529 = vpop.f32.mrf.mxu0
      %2530 = vmatprep.mubr.bf16.mxu0 0
      %2531 = vmatmul.mubr.bf16.gmra.mxu0 %v2362
      %v2532 = vpop.f32.mrf.mxu0
      %v2533 = vadd.f32 0.0, %v2532
      %v2534 = vpop.f32.mrf.mxu0
      %v2535 = vpop.f32.mrf.mxu0
      %v2536 = vadd.f32 0.0, %v2535
      %v2537 = vpop.f32.mrf.mxu0
      %2538 = vmatprep.mubr.bf16.mxu0 0
      %2539 = vmatmul.mubr.bf16.gmra.mxu0 %v2365
      %v2540 = vpop.f32.mrf.mxu0
      %v2541 = vadd.f32 0.0, %v2540
      %v2542 = vpop.f32.mrf.mxu0
      %v2543 = vpop.f32.mrf.mxu0
      %v2544 = vadd.f32 0.0, %v2543
      %v2545 = vpop.f32.mrf.mxu0
      %2546 = vdwg.mxu0
      %v2547 = vadd.f32 %v2221, %v2405
      %v2548 = vadd.f32 %v2222, %v2408
      %v2549 = vadd.f32 %v2223, %v2413
      %v2550 = vadd.f32 %v2224, %v2416
      %v2551 = vadd.f32 %v2225, %v2421
      %v2552 = vadd.f32 %v2226, %v2424
      %v2553 = vadd.f32 %v2227, %v2429
      %v2554 = vadd.f32 %v2228, %v2432
      %v2555 = vadd.f32 %v2229, %v2437
      %v2556 = vadd.f32 %v2230, %v2440
      %v2557 = vadd.f32 %v2231, %v2445
      %v2558 = vadd.f32 %v2232, %v2448
      %v2559 = vadd.f32 %v2233, %v2453
      %v2560 = vadd.f32 %v2234, %v2456
      %v2561 = vadd.f32 %v2235, %v2461
      %v2562 = vadd.f32 %v2236, %v2464
      %v2563 = vadd.f32 %v2237, %v2469
      %v2564 = vadd.f32 %v2238, %v2472
      %v2565 = vadd.f32 %v2239, %v2477
      %v2566 = vadd.f32 %v2240, %v2480
      %v2567 = vadd.f32 %v2241, %v2485
      %v2568 = vadd.f32 %v2242, %v2488
      %v2569 = vadd.f32 %v2243, %v2493
      %v2570 = vadd.f32 %v2244, %v2496
      %v2571 = vadd.f32 %v2245, %v2501
      %v2572 = vadd.f32 %v2246, %v2504
      %v2573 = vadd.f32 %v2247, %v2509
      %v2574 = vadd.f32 %v2248, %v2512
      %v2575 = vadd.f32 %v2249, %v2517
      %v2576 = vadd.f32 %v2250, %v2520
      %v2577 = vadd.f32 %v2251, %v2525
      %v2578 = vadd.f32 %v2252, %v2528
      %v2579 = vadd.f32 %v2253, %v2533
      %v2580 = vadd.f32 %v2254, %v2536
      %v2581 = vadd.f32 %v2255, %v2541
      %v2582 = vadd.f32 %v2256, %v2544
      %2583 = vst [vmem:[%s170] sm:$0xff] %v2547
      %2584 = vst [vmem:[%s170 + $0x8] sm:$0xff] %v2548
      %2585 = vst [vmem:[%s170 + $0x10] sm:$0xff] %v2549
      %2586 = vst [vmem:[%s170 + $0x18] sm:$0xff] %v2550
      %2587 = vst [vmem:[%s170 + $0x20] sm:$0xff] %v2551
      %2588 = vst [vmem:[%s170 + $0x28] sm:$0xff] %v2552
      %2589 = vst [vmem:[%s170 + $0x30] sm:$0xff] %v2553
      %2590 = vst [vmem:[%s170 + $0x38] sm:$0xff] %v2554
      %2591 = vst [vmem:[%s170 + $0x40] sm:$0xff] %v2555
      %2592 = vst [vmem:[%s170 + $0x48] sm:$0xff] %v2556
      %2593 = vst [vmem:[%s170 + $0x50] sm:$0xff] %v2557
      %2594 = vst [vmem:[%s170 + $0x58] sm:$0xff] %v2558
      %2595 = vst [vmem:[%s170 + $0x60] sm:$0xff] %v2559
      %2596 = vst [vmem:[%s170 + $0x68] sm:$0xff] %v2560
      %2597 = vst [vmem:[%s170 + $0x70] sm:$0xff] %v2561
      %2598 = vst [vmem:[%s170 + $0x78] sm:$0xff] %v2562
      %2599 = vst [vmem:[%s170 + $0x80] sm:$0xff] %v2563
      %2600 = vst [vmem:[%s170 + $0x88] sm:$0xff] %v2564
      %2601 = vst [vmem:[%s170 + $0x90] sm:$0xff] %v2565
      %2602 = vst [vmem:[%s170 + $0x98] sm:$0xff] %v2566
      %2603 = vst [vmem:[%s170 + $0xa0] sm:$0xff] %v2567
      %2604 = vst [vmem:[%s170 + $0xa8] sm:$0xff] %v2568
      %2605 = vst [vmem:[%s170 + $0xb0] sm:$0xff] %v2569
      %2606 = vst [vmem:[%s170 + $0xb8] sm:$0xff] %v2570
      %2607 = vst [vmem:[%s170 + $0xc0] sm:$0xff] %v2571
      %2608 = vst [vmem:[%s170 + $0xc8] sm:$0xff] %v2572
      %2609 = vst [vmem:[%s170 + $0xd0] sm:$0xff] %v2573
      %2610 = vst [vmem:[%s170 + $0xd8] sm:$0xff] %v2574
      %2611 = vst [vmem:[%s170 + $0xe0] sm:$0xff] %v2575
      %2612 = vst [vmem:[%s170 + $0xe8] sm:$0xff] %v2576
      %2613 = vst [vmem:[%s170 + $0xf0] sm:$0xff] %v2577
      %2614 = vst [vmem:[%s170 + $0xf8] sm:$0xff] %v2578
      %2615 = vst [vmem:[%s170 + $0x100] sm:$0xff] %v2579
      %2616 = vst [vmem:[%s170 + $0x108] sm:$0xff] %v2580
      %2617 = vst [vmem:[%s170 + $0x110] sm:$0xff] %v2581
      %2618 = vst [vmem:[%s170 + $0x118] sm:$0xff] %v2582
      %v2619 = vld [vmem:[%s170] sm:$0xff]
      %v2620 = vld [vmem:[%s170 + $0x8] sm:$0xff]
      %v2621 = vld [vmem:[%s170 + $0x10] sm:$0xff]
      %v2622 = vld [vmem:[%s170 + $0x18] sm:$0xff]
      %v2623 = vld [vmem:[%s170 + $0x20] sm:$0xff]
      %v2624 = vld [vmem:[%s170 + $0x28] sm:$0xff]
      %v2625 = vld [vmem:[%s170 + $0x30] sm:$0xff]
      %v2626 = vld [vmem:[%s170 + $0x38] sm:$0xff]
      %v2627 = vld [vmem:[%s170 + $0x40] sm:$0xff]
      %v2628 = vld [vmem:[%s170 + $0x48] sm:$0xff]
      %v2629 = vld [vmem:[%s170 + $0x50] sm:$0xff]
      %v2630 = vld [vmem:[%s170 + $0x58] sm:$0xff]
      %v2631 = vld [vmem:[%s170 + $0x60] sm:$0xff]
      %v2632 = vld [vmem:[%s170 + $0x68] sm:$0xff]
      %v2633 = vld [vmem:[%s170 + $0x70] sm:$0xff]
      %v2634 = vld [vmem:[%s170 + $0x78] sm:$0xff]
      %v2635 = vld [vmem:[%s170 + $0x80] sm:$0xff]
      %v2636 = vld [vmem:[%s170 + $0x88] sm:$0xff]
      %v2637 = vld [vmem:[%s170 + $0x90] sm:$0xff]
      %v2638 = vld [vmem:[%s170 + $0x98] sm:$0xff]
      %v2639 = vld [vmem:[%s170 + $0xa0] sm:$0xff]
      %v2640 = vld [vmem:[%s170 + $0xa8] sm:$0xff]
      %v2641 = vld [vmem:[%s170 + $0xb0] sm:$0xff]
      %v2642 = vld [vmem:[%s170 + $0xb8] sm:$0xff]
      %v2643 = vld [vmem:[%s170 + $0xc0] sm:$0xff]
      %v2644 = vld [vmem:[%s170 + $0xc8] sm:$0xff]
      %v2645 = vld [vmem:[%s170 + $0xd0] sm:$0xff]
      %v2646 = vld [vmem:[%s170 + $0xd8] sm:$0xff]
      %v2647 = vld [vmem:[%s170 + $0xe0] sm:$0xff]
      %v2648 = vld [vmem:[%s170 + $0xe8] sm:$0xff]
      %v2649 = vld [vmem:[%s170 + $0xf0] sm:$0xff]
      %v2650 = vld [vmem:[%s170 + $0xf8] sm:$0xff]
      %v2651 = vld [vmem:[%s170 + $0x100] sm:$0xff]
      %v2652 = vld [vmem:[%s170 + $0x108] sm:$0xff]
      %v2653 = vld [vmem:[%s170 + $0x110] sm:$0xff]
      %v2654 = vld [vmem:[%s170 + $0x118] sm:$0xff]
      %v2655 = vld [vmem:[#allocation2 + $0x24] sm:$0xff]
      %v2656 = vld [vmem:[#allocation2 + $0x2c] sm:$0xff]
      %v2657 = vld [vmem:[#allocation2 + $0x34] sm:$0xff]
      %v2658 = vld [vmem:[#allocation2 + $0x3c] sm:$0xff]
      %v2659 = vld [vmem:[#allocation2 + $0x44] sm:$0xff]
      %v2660 = vld [vmem:[#allocation2 + $0x4c] sm:$0xff]
      %v2661 = vld [vmem:[#allocation2 + $0x54] sm:$0xff]
      %v2662 = vld [vmem:[#allocation2 + $0x5c] sm:$0xff]
      %v2663 = vld [vmem:[#allocation2 + $0x64] sm:$0xff]
      %v2664 = vld [vmem:[#allocation2 + $0x6c] sm:$0xff]
      %v2665 = vld [vmem:[#allocation2 + $0x74] sm:$0xff]
      %v2666 = vld [vmem:[#allocation2 + $0x7c] sm:$0xff]
      %v2667 = vld [vmem:[#allocation2 + $0x84] sm:$0xff]
      %v2668 = vld [vmem:[#allocation2 + $0x8c] sm:$0xff]
      %v2669 = vld [vmem:[#allocation2 + $0x94] sm:$0xff]
      %v2670 = vld [vmem:[#allocation2 + $0x9c] sm:$0xff]
      %v2671 = vld [vmem:[#allocation2 + $0xa4] sm:$0xff]
      %v2672 = vld [vmem:[#allocation2 + $0xac] sm:$0xff]
      %v2673 = vld [vmem:[#allocation2 + $0xb4] sm:$0xff]
      %v2674 = vld [vmem:[#allocation2 + $0xbc] sm:$0xff]
      %v2675 = vld [vmem:[#allocation2 + $0xc4] sm:$0xff]
      %v2676 = vld [vmem:[#allocation2 + $0xcc] sm:$0xff]
      %v2677 = vld [vmem:[#allocation2 + $0xd4] sm:$0xff]
      %v2678 = vld [vmem:[#allocation2 + $0xdc] sm:$0xff]
      %v2679 = vld [vmem:[#allocation2 + $0xe4] sm:$0xff]
      %v2680 = vld [vmem:[#allocation2 + $0xec] sm:$0xff]
      %v2681 = vld [vmem:[#allocation2 + $0xf4] sm:$0xff]
      %v2682 = vld [vmem:[#allocation2 + $0xfc] sm:$0xff]
      %v2683 = vld [vmem:[#allocation2 + $0x104] sm:$0xff]
      %v2684 = vld [vmem:[#allocation2 + $0x10c] sm:$0xff]
      %v2685 = vld [vmem:[#allocation2 + $0x114] sm:$0xff]
      %v2686 = vld [vmem:[#allocation2 + $0x11c] sm:$0xff]
      %v2687 = vld [vmem:[#allocation2 + $0x124] sm:$0xff]
      %v2688 = vld [vmem:[#allocation2 + $0x12c] sm:$0xff]
      %v2689 = vld [vmem:[#allocation2 + $0x134] sm:$0xff]
      %v2690 = vld [vmem:[#allocation2 + $0x13c] sm:$0xff]
      %v2691 = vpack.c.bf16 %v2656, %v2655
      %v2692 = vpack.c.bf16 %v2658, %v2657
      %v2693 = vpack.c.bf16 %v2660, %v2659
      %v2694 = vpack.c.bf16 %v2662, %v2661
      %v2695 = vpack.c.bf16 %v2664, %v2663
      %v2696 = vpack.c.bf16 %v2666, %v2665
      %v2697 = vpack.c.bf16 %v2668, %v2667
      %v2698 = vpack.c.bf16 %v2670, %v2669
      %v2699 = vpack.c.bf16 %v2672, %v2671
      %v2700 = vpack.c.bf16 %v2674, %v2673
      %v2701 = vpack.c.bf16 %v2676, %v2675
      %v2702 = vpack.c.bf16 %v2678, %v2677
      %v2703 = vpack.c.bf16 %v2680, %v2679
      %v2704 = vpack.c.bf16 %v2682, %v2681
      %v2705 = vpack.c.bf16 %v2684, %v2683
      %v2706 = vpack.c.bf16 %v2686, %v2685
      %v2707 = vpack.c.bf16 %v2688, %v2687
      %v2708 = vpack.c.bf16 %v2690, %v2689
      %s2709 = scalar_lea.vmem %s1, 12
      %v2710 = vld [vmem:[%s2709] sm:$0x3]
      %v2712 = vsel %vm258, %v2691, 0
      %v2715 = vsel %vm258, %v2692, 0
      %v2718 = vsel %vm258, %v2693, 0
      %v2721 = vsel %vm258, %v2694, 0
      %v2724 = vsel %vm258, %v2695, 0
      %v2727 = vsel %vm258, %v2696, 0
      %v2730 = vsel %vm258, %v2697, 0
      %v2733 = vsel %vm258, %v2698, 0
      %v2736 = vsel %vm258, %v2699, 0
      %v2739 = vsel %vm258, %v2700, 0
      %v2742 = vsel %vm258, %v2701, 0
      %v2745 = vsel %vm258, %v2702, 0
      %v2748 = vsel %vm258, %v2703, 0
      %v2751 = vsel %vm258, %v2704, 0
      %v2754 = vsel %vm258, %v2705, 0
      %v2757 = vsel %vm258, %v2706, 0
      %v2760 = vsel %vm258, %v2707, 0
      %v2763 = vsel %vm258, %v2708, 0
      %v2766 = vsel %vm412, %v2710, 0
      %2768 = vmatprep.subr.bf16.mxu0 0
      %2769 = vmatpush1.bf16.msra.mxu0 0
      %2770 = vmatprep.subr.bf16.mxu0 0
      %2771 = vmatpush1.bf16.msra.mxu0 0
      %2772 = vmatprep.subr.bf16.mxu0 0
      %2773 = vmatpush1.bf16.msra.mxu0 0
      %2774 = vmatprep.subr.bf16.mxu0 0
      %2775 = vmatpush1.bf16.msra.mxu0 0
      %2776 = vmatprep.subr.bf16.mxu0 0
      %2777 = vmatpush1.bf16.msra.mxu0 0
      %2778 = vmatprep.subr.bf16.mxu0 0
      %2779 = vmatpush1.bf16.msra.mxu0 0
      %2780 = vmatprep.subr.bf16.mxu0 0
      %2781 = vmatpush1.bf16.msra.mxu0 0
      %2782 = vmatprep.subr.bf16.mxu0 0
      %2783 = vmatpush1.bf16.msra.mxu0 %v2766
      %2784 = vmatprep.subr.bf16.mxu0 0
      %2785 = vmatpush2.bf16.msra.mxu0 0
      %2786 = vmatprep.subr.bf16.mxu0 0
      %2787 = vmatpush2.bf16.msra.mxu0 0
      %2788 = vmatprep.subr.bf16.mxu0 0
      %2789 = vmatpush2.bf16.msra.mxu0 0
      %2790 = vmatprep.subr.bf16.mxu0 0
      %2791 = vmatpush2.bf16.msra.mxu0 0
      %2792 = vmatprep.subr.bf16.mxu0 0
      %2793 = vmatpush2.bf16.msra.mxu0 0
      %2794 = vmatprep.subr.bf16.mxu0 0
      %2795 = vmatpush2.bf16.msra.mxu0 0
      %2796 = vmatprep.subr.bf16.mxu0 0
      %2797 = vmatpush2.bf16.msra.mxu0 0
      %2798 = vmatprep.subr.bf16.mxu0 0
      %2799 = vmatpush2.bf16.msra.mxu0 0
      %2800 = vmatprep.mubr.bf16.mxu0 0
      %2801 = vmatmul.mubr.bf16.gmra.mxu0 %v2712
      %v2802 = vpop.f32.mrf.mxu0
      %v2803 = vadd.f32 0.0, %v2802
      %v2804 = vpop.f32.mrf.mxu0
      %v2805 = vpop.f32.mrf.mxu0
      %v2806 = vadd.f32 0.0, %v2805
      %v2807 = vpop.f32.mrf.mxu0
      %2808 = vmatprep.mubr.bf16.mxu0 0
      %2809 = vmatmul.mubr.bf16.gmra.mxu0 %v2715
      %v2810 = vpop.f32.mrf.mxu0
      %v2811 = vadd.f32 0.0, %v2810
      %v2812 = vpop.f32.mrf.mxu0
      %v2813 = vpop.f32.mrf.mxu0
      %v2814 = vadd.f32 0.0, %v2813
      %v2815 = vpop.f32.mrf.mxu0
      %2816 = vmatprep.mubr.bf16.mxu0 0
      %2817 = vmatmul.mubr.bf16.gmra.mxu0 %v2718
      %v2818 = vpop.f32.mrf.mxu0
      %v2819 = vadd.f32 0.0, %v2818
      %v2820 = vpop.f32.mrf.mxu0
      %v2821 = vpop.f32.mrf.mxu0
      %v2822 = vadd.f32 0.0, %v2821
      %v2823 = vpop.f32.mrf.mxu0
      %2824 = vmatprep.mubr.bf16.mxu0 0
      %2825 = vmatmul.mubr.bf16.gmra.mxu0 %v2721
      %v2826 = vpop.f32.mrf.mxu0
      %v2827 = vadd.f32 0.0, %v2826
      %v2828 = vpop.f32.mrf.mxu0
      %v2829 = vpop.f32.mrf.mxu0
      %v2830 = vadd.f32 0.0, %v2829
      %v2831 = vpop.f32.mrf.mxu0
      %2832 = vmatprep.mubr.bf16.mxu0 0
      %2833 = vmatmul.mubr.bf16.gmra.mxu0 %v2724
      %v2834 = vpop.f32.mrf.mxu0
      %v2835 = vadd.f32 0.0, %v2834
      %v2836 = vpop.f32.mrf.mxu0
      %v2837 = vpop.f32.mrf.mxu0
      %v2838 = vadd.f32 0.0, %v2837
      %v2839 = vpop.f32.mrf.mxu0
      %2840 = vmatprep.mubr.bf16.mxu0 0
      %2841 = vmatmul.mubr.bf16.gmra.mxu0 %v2727
      %v2842 = vpop.f32.mrf.mxu0
      %v2843 = vadd.f32 0.0, %v2842
      %v2844 = vpop.f32.mrf.mxu0
      %v2845 = vpop.f32.mrf.mxu0
      %v2846 = vadd.f32 0.0, %v2845
      %v2847 = vpop.f32.mrf.mxu0
      %2848 = vmatprep.mubr.bf16.mxu0 0
      %2849 = vmatmul.mubr.bf16.gmra.mxu0 %v2730
      %v2850 = vpop.f32.mrf.mxu0
      %v2851 = vadd.f32 0.0, %v2850
      %v2852 = vpop.f32.mrf.mxu0
      %v2853 = vpop.f32.mrf.mxu0
      %v2854 = vadd.f32 0.0, %v2853
      %v2855 = vpop.f32.mrf.mxu0
      %2856 = vmatprep.mubr.bf16.mxu0 0
      %2857 = vmatmul.mubr.bf16.gmra.mxu0 %v2733
      %v2858 = vpop.f32.mrf.mxu0
      %v2859 = vadd.f32 0.0, %v2858
      %v2860 = vpop.f32.mrf.mxu0
      %v2861 = vpop.f32.mrf.mxu0
      %v2862 = vadd.f32 0.0, %v2861
      %v2863 = vpop.f32.mrf.mxu0
      %2864 = vmatprep.mubr.bf16.mxu0 0
      %2865 = vmatmul.mubr.bf16.gmra.mxu0 %v2736
      %v2866 = vpop.f32.mrf.mxu0
      %v2867 = vadd.f32 0.0, %v2866
      %v2868 = vpop.f32.mrf.mxu0
      %v2869 = vpop.f32.mrf.mxu0
      %v2870 = vadd.f32 0.0, %v2869
      %v2871 = vpop.f32.mrf.mxu0
      %2872 = vmatprep.mubr.bf16.mxu0 0
      %2873 = vmatmul.mubr.bf16.gmra.mxu0 %v2739
      %v2874 = vpop.f32.mrf.mxu0
      %v2875 = vadd.f32 0.0, %v2874
      %v2876 = vpop.f32.mrf.mxu0
      %v2877 = vpop.f32.mrf.mxu0
      %v2878 = vadd.f32 0.0, %v2877
      %v2879 = vpop.f32.mrf.mxu0
      %2880 = vmatprep.mubr.bf16.mxu0 0
      %2881 = vmatmul.mubr.bf16.gmra.mxu0 %v2742
      %v2882 = vpop.f32.mrf.mxu0
      %v2883 = vadd.f32 0.0, %v2882
      %v2884 = vpop.f32.mrf.mxu0
      %v2885 = vpop.f32.mrf.mxu0
      %v2886 = vadd.f32 0.0, %v2885
      %v2887 = vpop.f32.mrf.mxu0
      %2888 = vmatprep.mubr.bf16.mxu0 0
      %2889 = vmatmul.mubr.bf16.gmra.mxu0 %v2745
      %v2890 = vpop.f32.mrf.mxu0
      %v2891 = vadd.f32 0.0, %v2890
      %v2892 = vpop.f32.mrf.mxu0
      %v2893 = vpop.f32.mrf.mxu0
      %v2894 = vadd.f32 0.0, %v2893
      %v2895 = vpop.f32.mrf.mxu0
      %2896 = vmatprep.mubr.bf16.mxu0 0
      %2897 = vmatmul.mubr.bf16.gmra.mxu0 %v2748
      %v2898 = vpop.f32.mrf.mxu0
      %v2899 = vadd.f32 0.0, %v2898
      %v2900 = vpop.f32.mrf.mxu0
      %v2901 = vpop.f32.mrf.mxu0
      %v2902 = vadd.f32 0.0, %v2901
      %v2903 = vpop.f32.mrf.mxu0
      %2904 = vmatprep.mubr.bf16.mxu0 0
      %2905 = vmatmul.mubr.bf16.gmra.mxu0 %v2751
      %v2906 = vpop.f32.mrf.mxu0
      %v2907 = vadd.f32 0.0, %v2906
      %v2908 = vpop.f32.mrf.mxu0
      %v2909 = vpop.f32.mrf.mxu0
      %v2910 = vadd.f32 0.0, %v2909
      %v2911 = vpop.f32.mrf.mxu0
      %2912 = vmatprep.mubr.bf16.mxu0 0
      %2913 = vmatmul.mubr.bf16.gmra.mxu0 %v2754
      %v2914 = vpop.f32.mrf.mxu0
      %v2915 = vadd.f32 0.0, %v2914
      %v2916 = vpop.f32.mrf.mxu0
      %v2917 = vpop.f32.mrf.mxu0
      %v2918 = vadd.f32 0.0, %v2917
      %v2919 = vpop.f32.mrf.mxu0
      %2920 = vmatprep.mubr.bf16.mxu0 0
      %2921 = vmatmul.mubr.bf16.gmra.mxu0 %v2757
      %v2922 = vpop.f32.mrf.mxu0
      %v2923 = vadd.f32 0.0, %v2922
      %v2924 = vpop.f32.mrf.mxu0
      %v2925 = vpop.f32.mrf.mxu0
      %v2926 = vadd.f32 0.0, %v2925
      %v2927 = vpop.f32.mrf.mxu0
      %2928 = vmatprep.mubr.bf16.mxu0 0
      %2929 = vmatmul.mubr.bf16.gmra.mxu0 %v2760
      %v2930 = vpop.f32.mrf.mxu0
      %v2931 = vadd.f32 0.0, %v2930
      %v2932 = vpop.f32.mrf.mxu0
      %v2933 = vpop.f32.mrf.mxu0
      %v2934 = vadd.f32 0.0, %v2933
      %v2935 = vpop.f32.mrf.mxu0
      %2936 = vmatprep.mubr.bf16.mxu0 0
      %2937 = vmatmul.mubr.bf16.gmra.mxu0 %v2763
      %v2938 = vpop.f32.mrf.mxu0
      %v2939 = vadd.f32 0.0, %v2938
      %v2940 = vpop.f32.mrf.mxu0
      %v2941 = vpop.f32.mrf.mxu0
      %v2942 = vadd.f32 0.0, %v2941
      %v2943 = vpop.f32.mrf.mxu0
      %2944 = vdwg.mxu0
      %v2945 = vadd.f32 %v2619, %v2803
      %v2946 = vadd.f32 %v2620, %v2806
      %v2947 = vadd.f32 %v2621, %v2811
      %v2948 = vadd.f32 %v2622, %v2814
      %v2949 = vadd.f32 %v2623, %v2819
      %v2950 = vadd.f32 %v2624, %v2822
      %v2951 = vadd.f32 %v2625, %v2827
      %v2952 = vadd.f32 %v2626, %v2830
      %v2953 = vadd.f32 %v2627, %v2835
      %v2954 = vadd.f32 %v2628, %v2838
      %v2955 = vadd.f32 %v2629, %v2843
      %v2956 = vadd.f32 %v2630, %v2846
      %v2957 = vadd.f32 %v2631, %v2851
      %v2958 = vadd.f32 %v2632, %v2854
      %v2959 = vadd.f32 %v2633, %v2859
      %v2960 = vadd.f32 %v2634, %v2862
      %v2961 = vadd.f32 %v2635, %v2867
      %v2962 = vadd.f32 %v2636, %v2870
      %v2963 = vadd.f32 %v2637, %v2875
      %v2964 = vadd.f32 %v2638, %v2878
      %v2965 = vadd.f32 %v2639, %v2883
      %v2966 = vadd.f32 %v2640, %v2886
      %v2967 = vadd.f32 %v2641, %v2891
      %v2968 = vadd.f32 %v2642, %v2894
      %v2969 = vadd.f32 %v2643, %v2899
      %v2970 = vadd.f32 %v2644, %v2902
      %v2971 = vadd.f32 %v2645, %v2907
      %v2972 = vadd.f32 %v2646, %v2910
      %v2973 = vadd.f32 %v2647, %v2915
      %v2974 = vadd.f32 %v2648, %v2918
      %v2975 = vadd.f32 %v2649, %v2923
      %v2976 = vadd.f32 %v2650, %v2926
      %v2977 = vadd.f32 %v2651, %v2931
      %v2978 = vadd.f32 %v2652, %v2934
      %v2979 = vadd.f32 %v2653, %v2939
      %v2980 = vadd.f32 %v2654, %v2942
      %2981 = vst [vmem:[%s170] sm:$0xff] %v2945
      %2982 = vst [vmem:[%s170 + $0x8] sm:$0xff] %v2946
      %2983 = vst [vmem:[%s170 + $0x10] sm:$0xff] %v2947
      %2984 = vst [vmem:[%s170 + $0x18] sm:$0xff] %v2948
      %2985 = vst [vmem:[%s170 + $0x20] sm:$0xff] %v2949
      %2986 = vst [vmem:[%s170 + $0x28] sm:$0xff] %v2950
      %2987 = vst [vmem:[%s170 + $0x30] sm:$0xff] %v2951
      %2988 = vst [vmem:[%s170 + $0x38] sm:$0xff] %v2952
      %2989 = vst [vmem:[%s170 + $0x40] sm:$0xff] %v2953
      %2990 = vst [vmem:[%s170 + $0x48] sm:$0xff] %v2954
      %2991 = vst [vmem:[%s170 + $0x50] sm:$0xff] %v2955
      %2992 = vst [vmem:[%s170 + $0x58] sm:$0xff] %v2956
      %2993 = vst [vmem:[%s170 + $0x60] sm:$0xff] %v2957
      %2994 = vst [vmem:[%s170 + $0x68] sm:$0xff] %v2958
      %2995 = vst [vmem:[%s170 + $0x70] sm:$0xff] %v2959
      %2996 = vst [vmem:[%s170 + $0x78] sm:$0xff] %v2960
      %2997 = vst [vmem:[%s170 + $0x80] sm:$0xff] %v2961
      %2998 = vst [vmem:[%s170 + $0x88] sm:$0xff] %v2962
      %2999 = vst [vmem:[%s170 + $0x90] sm:$0xff] %v2963
      %3000 = vst [vmem:[%s170 + $0x98] sm:$0xff] %v2964
      %3001 = vst [vmem:[%s170 + $0xa0] sm:$0xff] %v2965
      %3002 = vst [vmem:[%s170 + $0xa8] sm:$0xff] %v2966
      %3003 = vst [vmem:[%s170 + $0xb0] sm:$0xff] %v2967
      %3004 = vst [vmem:[%s170 + $0xb8] sm:$0xff] %v2968
      %3005 = vst [vmem:[%s170 + $0xc0] sm:$0xff] %v2969
      %3006 = vst [vmem:[%s170 + $0xc8] sm:$0xff] %v2970
      %3007 = vst [vmem:[%s170 + $0xd0] sm:$0xff] %v2971
      %3008 = vst [vmem:[%s170 + $0xd8] sm:$0xff] %v2972
      %3009 = vst [vmem:[%s170 + $0xe0] sm:$0xff] %v2973
      %3010 = vst [vmem:[%s170 + $0xe8] sm:$0xff] %v2974
      %3011 = vst [vmem:[%s170 + $0xf0] sm:$0xff] %v2975
      %3012 = vst [vmem:[%s170 + $0xf8] sm:$0xff] %v2976
      %3013 = vst [vmem:[%s170 + $0x100] sm:$0xff] %v2977
      %3014 = vst [vmem:[%s170 + $0x108] sm:$0xff] %v2978
      %3015 = vst [vmem:[%s170 + $0x110] sm:$0xff] %v2979
      %3016 = vst [vmem:[%s170 + $0x118] sm:$0xff] %v2980
      %v3017 = vld [vmem:[%s170] sm:$0xff]
      %v3018 = vld [vmem:[%s170 + $0x8] sm:$0xff]
      %v3019 = vld [vmem:[%s170 + $0x10] sm:$0xff]
      %v3020 = vld [vmem:[%s170 + $0x18] sm:$0xff]
      %v3021 = vld [vmem:[%s170 + $0x20] sm:$0xff]
      %v3022 = vld [vmem:[%s170 + $0x28] sm:$0xff]
      %v3023 = vld [vmem:[%s170 + $0x30] sm:$0xff]
      %v3024 = vld [vmem:[%s170 + $0x38] sm:$0xff]
      %v3025 = vld [vmem:[%s170 + $0x40] sm:$0xff]
      %v3026 = vld [vmem:[%s170 + $0x48] sm:$0xff]
      %v3027 = vld [vmem:[%s170 + $0x50] sm:$0xff]
      %v3028 = vld [vmem:[%s170 + $0x58] sm:$0xff]
      %v3029 = vld [vmem:[%s170 + $0x60] sm:$0xff]
      %v3030 = vld [vmem:[%s170 + $0x68] sm:$0xff]
      %v3031 = vld [vmem:[%s170 + $0x70] sm:$0xff]
      %v3032 = vld [vmem:[%s170 + $0x78] sm:$0xff]
      %v3033 = vld [vmem:[%s170 + $0x80] sm:$0xff]
      %v3034 = vld [vmem:[%s170 + $0x88] sm:$0xff]
      %v3035 = vld [vmem:[%s170 + $0x90] sm:$0xff]
      %v3036 = vld [vmem:[%s170 + $0x98] sm:$0xff]
      %v3037 = vld [vmem:[%s170 + $0xa0] sm:$0xff]
      %v3038 = vld [vmem:[%s170 + $0xa8] sm:$0xff]
      %v3039 = vld [vmem:[%s170 + $0xb0] sm:$0xff]
      %v3040 = vld [vmem:[%s170 + $0xb8] sm:$0xff]
      %v3041 = vld [vmem:[%s170 + $0xc0] sm:$0xff]
      %v3042 = vld [vmem:[%s170 + $0xc8] sm:$0xff]
      %v3043 = vld [vmem:[%s170 + $0xd0] sm:$0xff]
      %v3044 = vld [vmem:[%s170 + $0xd8] sm:$0xff]
      %v3045 = vld [vmem:[%s170 + $0xe0] sm:$0xff]
      %v3046 = vld [vmem:[%s170 + $0xe8] sm:$0xff]
      %v3047 = vld [vmem:[%s170 + $0xf0] sm:$0xff]
      %v3048 = vld [vmem:[%s170 + $0xf8] sm:$0xff]
      %v3049 = vld [vmem:[%s170 + $0x100] sm:$0xff]
      %v3050 = vld [vmem:[%s170 + $0x108] sm:$0xff]
      %v3051 = vld [vmem:[%s170 + $0x110] sm:$0xff]
      %v3052 = vld [vmem:[%s170 + $0x118] sm:$0xff]
      %v3053 = vld [vmem:[#allocation2 + $0x25] sm:$0xff]
      %v3054 = vld [vmem:[#allocation2 + $0x2d] sm:$0xff]
      %v3055 = vld [vmem:[#allocation2 + $0x35] sm:$0xff]
      %v3056 = vld [vmem:[#allocation2 + $0x3d] sm:$0xff]
      %v3057 = vld [vmem:[#allocation2 + $0x45] sm:$0xff]
      %v3058 = vld [vmem:[#allocation2 + $0x4d] sm:$0xff]
      %v3059 = vld [vmem:[#allocation2 + $0x55] sm:$0xff]
      %v3060 = vld [vmem:[#allocation2 + $0x5d] sm:$0xff]
      %v3061 = vld [vmem:[#allocation2 + $0x65] sm:$0xff]
      %v3062 = vld [vmem:[#allocation2 + $0x6d] sm:$0xff]
      %v3063 = vld [vmem:[#allocation2 + $0x75] sm:$0xff]
      %v3064 = vld [vmem:[#allocation2 + $0x7d] sm:$0xff]
      %v3065 = vld [vmem:[#allocation2 + $0x85] sm:$0xff]
      %v3066 = vld [vmem:[#allocation2 + $0x8d] sm:$0xff]
      %v3067 = vld [vmem:[#allocation2 + $0x95] sm:$0xff]
      %v3068 = vld [vmem:[#allocation2 + $0x9d] sm:$0xff]
      %v3069 = vld [vmem:[#allocation2 + $0xa5] sm:$0xff]
      %v3070 = vld [vmem:[#allocation2 + $0xad] sm:$0xff]
      %v3071 = vld [vmem:[#allocation2 + $0xb5] sm:$0xff]
      %v3072 = vld [vmem:[#allocation2 + $0xbd] sm:$0xff]
      %v3073 = vld [vmem:[#allocation2 + $0xc5] sm:$0xff]
      %v3074 = vld [vmem:[#allocation2 + $0xcd] sm:$0xff]
      %v3075 = vld [vmem:[#allocation2 + $0xd5] sm:$0xff]
      %v3076 = vld [vmem:[#allocation2 + $0xdd] sm:$0xff]
      %v3077 = vld [vmem:[#allocation2 + $0xe5] sm:$0xff]
      %v3078 = vld [vmem:[#allocation2 + $0xed] sm:$0xff]
      %v3079 = vld [vmem:[#allocation2 + $0xf5] sm:$0xff]
      %v3080 = vld [vmem:[#allocation2 + $0xfd] sm:$0xff]
      %v3081 = vld [vmem:[#allocation2 + $0x105] sm:$0xff]
      %v3082 = vld [vmem:[#allocation2 + $0x10d] sm:$0xff]
      %v3083 = vld [vmem:[#allocation2 + $0x115] sm:$0xff]
      %v3084 = vld [vmem:[#allocation2 + $0x11d] sm:$0xff]
      %v3085 = vld [vmem:[#allocation2 + $0x125] sm:$0xff]
      %v3086 = vld [vmem:[#allocation2 + $0x12d] sm:$0xff]
      %v3087 = vld [vmem:[#allocation2 + $0x135] sm:$0xff]
      %v3088 = vld [vmem:[#allocation2 + $0x13d] sm:$0xff]
      %v3089 = vpack.c.bf16 %v3054, %v3053
      %v3090 = vpack.c.bf16 %v3056, %v3055
      %v3091 = vpack.c.bf16 %v3058, %v3057
      %v3092 = vpack.c.bf16 %v3060, %v3059
      %v3093 = vpack.c.bf16 %v3062, %v3061
      %v3094 = vpack.c.bf16 %v3064, %v3063
      %v3095 = vpack.c.bf16 %v3066, %v3065
      %v3096 = vpack.c.bf16 %v3068, %v3067
      %v3097 = vpack.c.bf16 %v3070, %v3069
      %v3098 = vpack.c.bf16 %v3072, %v3071
      %v3099 = vpack.c.bf16 %v3074, %v3073
      %v3100 = vpack.c.bf16 %v3076, %v3075
      %v3101 = vpack.c.bf16 %v3078, %v3077
      %v3102 = vpack.c.bf16 %v3080, %v3079
      %v3103 = vpack.c.bf16 %v3082, %v3081
      %v3104 = vpack.c.bf16 %v3084, %v3083
      %v3105 = vpack.c.bf16 %v3086, %v3085
      %v3106 = vpack.c.bf16 %v3088, %v3087
      %s3107 = scalar_lea.vmem %s1, 14
      %v3108 = vld [vmem:[%s3107] sm:$0x3]
      %v3110 = vsel %vm258, %v3089, 0
      %v3113 = vsel %vm258, %v3090, 0
      %v3116 = vsel %vm258, %v3091, 0
      %v3119 = vsel %vm258, %v3092, 0
      %v3122 = vsel %vm258, %v3093, 0
      %v3125 = vsel %vm258, %v3094, 0
      %v3128 = vsel %vm258, %v3095, 0
      %v3131 = vsel %vm258, %v3096, 0
      %v3134 = vsel %vm258, %v3097, 0
      %v3137 = vsel %vm258, %v3098, 0
      %v3140 = vsel %vm258, %v3099, 0
      %v3143 = vsel %vm258, %v3100, 0
      %v3146 = vsel %vm258, %v3101, 0
      %v3149 = vsel %vm258, %v3102, 0
      %v3152 = vsel %vm258, %v3103, 0
      %v3155 = vsel %vm258, %v3104, 0
      %v3158 = vsel %vm258, %v3105, 0
      %v3161 = vsel %vm258, %v3106, 0
      %v3164 = vsel %vm412, %v3108, 0
      %3166 = vmatprep.subr.bf16.mxu0 0
      %3167 = vmatpush1.bf16.msra.mxu0 0
      %3168 = vmatprep.subr.bf16.mxu0 0
      %3169 = vmatpush1.bf16.msra.mxu0 0
      %3170 = vmatprep.subr.bf16.mxu0 0
      %3171 = vmatpush1.bf16.msra.mxu0 0
      %3172 = vmatprep.subr.bf16.mxu0 0
      %3173 = vmatpush1.bf16.msra.mxu0 0
      %3174 = vmatprep.subr.bf16.mxu0 0
      %3175 = vmatpush1.bf16.msra.mxu0 0
      %3176 = vmatprep.subr.bf16.mxu0 0
      %3177 = vmatpush1.bf16.msra.mxu0 0
      %3178 = vmatprep.subr.bf16.mxu0 0
      %3179 = vmatpush1.bf16.msra.mxu0 0
      %3180 = vmatprep.subr.bf16.mxu0 0
      %3181 = vmatpush1.bf16.msra.mxu0 %v3164
      %3182 = vmatprep.subr.bf16.mxu0 0
      %3183 = vmatpush2.bf16.msra.mxu0 0
      %3184 = vmatprep.subr.bf16.mxu0 0
      %3185 = vmatpush2.bf16.msra.mxu0 0
      %3186 = vmatprep.subr.bf16.mxu0 0
      %3187 = vmatpush2.bf16.msra.mxu0 0
      %3188 = vmatprep.subr.bf16.mxu0 0
      %3189 = vmatpush2.bf16.msra.mxu0 0
      %3190 = vmatprep.subr.bf16.mxu0 0
      %3191 = vmatpush2.bf16.msra.mxu0 0
      %3192 = vmatprep.subr.bf16.mxu0 0
      %3193 = vmatpush2.bf16.msra.mxu0 0
      %3194 = vmatprep.subr.bf16.mxu0 0
      %3195 = vmatpush2.bf16.msra.mxu0 0
      %3196 = vmatprep.subr.bf16.mxu0 0
      %3197 = vmatpush2.bf16.msra.mxu0 0
      %3198 = vmatprep.mubr.bf16.mxu0 0
      %3199 = vmatmul.mubr.bf16.gmra.mxu0 %v3110
      %v3200 = vpop.f32.mrf.mxu0
      %v3201 = vadd.f32 0.0, %v3200
      %v3202 = vpop.f32.mrf.mxu0
      %v3203 = vpop.f32.mrf.mxu0
      %v3204 = vadd.f32 0.0, %v3203
      %v3205 = vpop.f32.mrf.mxu0
      %3206 = vmatprep.mubr.bf16.mxu0 0
      %3207 = vmatmul.mubr.bf16.gmra.mxu0 %v3113
      %v3208 = vpop.f32.mrf.mxu0
      %v3209 = vadd.f32 0.0, %v3208
      %v3210 = vpop.f32.mrf.mxu0
      %v3211 = vpop.f32.mrf.mxu0
      %v3212 = vadd.f32 0.0, %v3211
      %v3213 = vpop.f32.mrf.mxu0
      %3214 = vmatprep.mubr.bf16.mxu0 0
      %3215 = vmatmul.mubr.bf16.gmra.mxu0 %v3116
      %v3216 = vpop.f32.mrf.mxu0
      %v3217 = vadd.f32 0.0, %v3216
      %v3218 = vpop.f32.mrf.mxu0
      %v3219 = vpop.f32.mrf.mxu0
      %v3220 = vadd.f32 0.0, %v3219
      %v3221 = vpop.f32.mrf.mxu0
      %3222 = vmatprep.mubr.bf16.mxu0 0
      %3223 = vmatmul.mubr.bf16.gmra.mxu0 %v3119
      %v3224 = vpop.f32.mrf.mxu0
      %v3225 = vadd.f32 0.0, %v3224
      %v3226 = vpop.f32.mrf.mxu0
      %v3227 = vpop.f32.mrf.mxu0
      %v3228 = vadd.f32 0.0, %v3227
      %v3229 = vpop.f32.mrf.mxu0
      %3230 = vmatprep.mubr.bf16.mxu0 0
      %3231 = vmatmul.mubr.bf16.gmra.mxu0 %v3122
      %v3232 = vpop.f32.mrf.mxu0
      %v3233 = vadd.f32 0.0, %v3232
      %v3234 = vpop.f32.mrf.mxu0
      %v3235 = vpop.f32.mrf.mxu0
      %v3236 = vadd.f32 0.0, %v3235
      %v3237 = vpop.f32.mrf.mxu0
      %3238 = vmatprep.mubr.bf16.mxu0 0
      %3239 = vmatmul.mubr.bf16.gmra.mxu0 %v3125
      %v3240 = vpop.f32.mrf.mxu0
      %v3241 = vadd.f32 0.0, %v3240
      %v3242 = vpop.f32.mrf.mxu0
      %v3243 = vpop.f32.mrf.mxu0
      %v3244 = vadd.f32 0.0, %v3243
      %v3245 = vpop.f32.mrf.mxu0
      %3246 = vmatprep.mubr.bf16.mxu0 0
      %3247 = vmatmul.mubr.bf16.gmra.mxu0 %v3128
      %v3248 = vpop.f32.mrf.mxu0
      %v3249 = vadd.f32 0.0, %v3248
      %v3250 = vpop.f32.mrf.mxu0
      %v3251 = vpop.f32.mrf.mxu0
      %v3252 = vadd.f32 0.0, %v3251
      %v3253 = vpop.f32.mrf.mxu0
      %3254 = vmatprep.mubr.bf16.mxu0 0
      %3255 = vmatmul.mubr.bf16.gmra.mxu0 %v3131
      %v3256 = vpop.f32.mrf.mxu0
      %v3257 = vadd.f32 0.0, %v3256
      %v3258 = vpop.f32.mrf.mxu0
      %v3259 = vpop.f32.mrf.mxu0
      %v3260 = vadd.f32 0.0, %v3259
      %v3261 = vpop.f32.mrf.mxu0
      %3262 = vmatprep.mubr.bf16.mxu0 0
      %3263 = vmatmul.mubr.bf16.gmra.mxu0 %v3134
      %v3264 = vpop.f32.mrf.mxu0
      %v3265 = vadd.f32 0.0, %v3264
      %v3266 = vpop.f32.mrf.mxu0
      %v3267 = vpop.f32.mrf.mxu0
      %v3268 = vadd.f32 0.0, %v3267
      %v3269 = vpop.f32.mrf.mxu0
      %3270 = vmatprep.mubr.bf16.mxu0 0
      %3271 = vmatmul.mubr.bf16.gmra.mxu0 %v3137
      %v3272 = vpop.f32.mrf.mxu0
      %v3273 = vadd.f32 0.0, %v3272
      %v3274 = vpop.f32.mrf.mxu0
      %v3275 = vpop.f32.mrf.mxu0
      %v3276 = vadd.f32 0.0, %v3275
      %v3277 = vpop.f32.mrf.mxu0
      %3278 = vmatprep.mubr.bf16.mxu0 0
      %3279 = vmatmul.mubr.bf16.gmra.mxu0 %v3140
      %v3280 = vpop.f32.mrf.mxu0
      %v3281 = vadd.f32 0.0, %v3280
      %v3282 = vpop.f32.mrf.mxu0
      %v3283 = vpop.f32.mrf.mxu0
      %v3284 = vadd.f32 0.0, %v3283
      %v3285 = vpop.f32.mrf.mxu0
      %3286 = vmatprep.mubr.bf16.mxu0 0
      %3287 = vmatmul.mubr.bf16.gmra.mxu0 %v3143
      %v3288 = vpop.f32.mrf.mxu0
      %v3289 = vadd.f32 0.0, %v3288
      %v3290 = vpop.f32.mrf.mxu0
      %v3291 = vpop.f32.mrf.mxu0
      %v3292 = vadd.f32 0.0, %v3291
      %v3293 = vpop.f32.mrf.mxu0
      %3294 = vmatprep.mubr.bf16.mxu0 0
      %3295 = vmatmul.mubr.bf16.gmra.mxu0 %v3146
      %v3296 = vpop.f32.mrf.mxu0
      %v3297 = vadd.f32 0.0, %v3296
      %v3298 = vpop.f32.mrf.mxu0
      %v3299 = vpop.f32.mrf.mxu0
      %v3300 = vadd.f32 0.0, %v3299
      %v3301 = vpop.f32.mrf.mxu0
      %3302 = vmatprep.mubr.bf16.mxu0 0
      %3303 = vmatmul.mubr.bf16.gmra.mxu0 %v3149
      %v3304 = vpop.f32.mrf.mxu0
      %v3305 = vadd.f32 0.0, %v3304
      %v3306 = vpop.f32.mrf.mxu0
      %v3307 = vpop.f32.mrf.mxu0
      %v3308 = vadd.f32 0.0, %v3307
      %v3309 = vpop.f32.mrf.mxu0
      %3310 = vmatprep.mubr.bf16.mxu0 0
      %3311 = vmatmul.mubr.bf16.gmra.mxu0 %v3152
      %v3312 = vpop.f32.mrf.mxu0
      %v3313 = vadd.f32 0.0, %v3312
      %v3314 = vpop.f32.mrf.mxu0
      %v3315 = vpop.f32.mrf.mxu0
      %v3316 = vadd.f32 0.0, %v3315
      %v3317 = vpop.f32.mrf.mxu0
      %3318 = vmatprep.mubr.bf16.mxu0 0
      %3319 = vmatmul.mubr.bf16.gmra.mxu0 %v3155
      %v3320 = vpop.f32.mrf.mxu0
      %v3321 = vadd.f32 0.0, %v3320
      %v3322 = vpop.f32.mrf.mxu0
      %v3323 = vpop.f32.mrf.mxu0
      %v3324 = vadd.f32 0.0, %v3323
      %v3325 = vpop.f32.mrf.mxu0
      %3326 = vmatprep.mubr.bf16.mxu0 0
      %3327 = vmatmul.mubr.bf16.gmra.mxu0 %v3158
      %v3328 = vpop.f32.mrf.mxu0
      %v3329 = vadd.f32 0.0, %v3328
      %v3330 = vpop.f32.mrf.mxu0
      %v3331 = vpop.f32.mrf.mxu0
      %v3332 = vadd.f32 0.0, %v3331
      %v3333 = vpop.f32.mrf.mxu0
      %3334 = vmatprep.mubr.bf16.mxu0 0
      %3335 = vmatmul.mubr.bf16.gmra.mxu0 %v3161
      %v3336 = vpop.f32.mrf.mxu0
      %v3337 = vadd.f32 0.0, %v3336
      %v3338 = vpop.f32.mrf.mxu0
      %v3339 = vpop.f32.mrf.mxu0
      %v3340 = vadd.f32 0.0, %v3339
      %v3341 = vpop.f32.mrf.mxu0
      %3342 = vdwg.mxu0
      %v3343 = vadd.f32 %v3017, %v3201
      %v3344 = vadd.f32 %v3018, %v3204
      %v3345 = vadd.f32 %v3019, %v3209
      %v3346 = vadd.f32 %v3020, %v3212
      %v3347 = vadd.f32 %v3021, %v3217
      %v3348 = vadd.f32 %v3022, %v3220
      %v3349 = vadd.f32 %v3023, %v3225
      %v3350 = vadd.f32 %v3024, %v3228
      %v3351 = vadd.f32 %v3025, %v3233
      %v3352 = vadd.f32 %v3026, %v3236
      %v3353 = vadd.f32 %v3027, %v3241
      %v3354 = vadd.f32 %v3028, %v3244
      %v3355 = vadd.f32 %v3029, %v3249
      %v3356 = vadd.f32 %v3030, %v3252
      %v3357 = vadd.f32 %v3031, %v3257
      %v3358 = vadd.f32 %v3032, %v3260
      %v3359 = vadd.f32 %v3033, %v3265
      %v3360 = vadd.f32 %v3034, %v3268
      %v3361 = vadd.f32 %v3035, %v3273
      %v3362 = vadd.f32 %v3036, %v3276
      %v3363 = vadd.f32 %v3037, %v3281
      %v3364 = vadd.f32 %v3038, %v3284
      %v3365 = vadd.f32 %v3039, %v3289
      %v3366 = vadd.f32 %v3040, %v3292
      %v3367 = vadd.f32 %v3041, %v3297
      %v3368 = vadd.f32 %v3042, %v3300
      %v3369 = vadd.f32 %v3043, %v3305
      %v3370 = vadd.f32 %v3044, %v3308
      %v3371 = vadd.f32 %v3045, %v3313
      %v3372 = vadd.f32 %v3046, %v3316
      %v3373 = vadd.f32 %v3047, %v3321
      %v3374 = vadd.f32 %v3048, %v3324
      %v3375 = vadd.f32 %v3049, %v3329
      %v3376 = vadd.f32 %v3050, %v3332
      %v3377 = vadd.f32 %v3051, %v3337
      %v3378 = vadd.f32 %v3052, %v3340
      %3379 = vst [vmem:[%s170] sm:$0xff] %v3343
      %3380 = vst [vmem:[%s170 + $0x8] sm:$0xff] %v3344
      %3381 = vst [vmem:[%s170 + $0x10] sm:$0xff] %v3345
      %3382 = vst [vmem:[%s170 + $0x18] sm:$0xff] %v3346
      %3383 = vst [vmem:[%s170 + $0x20] sm:$0xff] %v3347
      %3384 = vst [vmem:[%s170 + $0x28] sm:$0xff] %v3348
      %3385 = vst [vmem:[%s170 + $0x30] sm:$0xff] %v3349
      %3386 = vst [vmem:[%s170 + $0x38] sm:$0xff] %v3350
      %3387 = vst [vmem:[%s170 + $0x40] sm:$0xff] %v3351
      %3388 = vst [vmem:[%s170 + $0x48] sm:$0xff] %v3352
      %3389 = vst [vmem:[%s170 + $0x50] sm:$0xff] %v3353
      %3390 = vst [vmem:[%s170 + $0x58] sm:$0xff] %v3354
      %3391 = vst [vmem:[%s170 + $0x60] sm:$0xff] %v3355
      %3392 = vst [vmem:[%s170 + $0x68] sm:$0xff] %v3356
      %3393 = vst [vmem:[%s170 + $0x70] sm:$0xff] %v3357
      %3394 = vst [vmem:[%s170 + $0x78] sm:$0xff] %v3358
      %3395 = vst [vmem:[%s170 + $0x80] sm:$0xff] %v3359
      %3396 = vst [vmem:[%s170 + $0x88] sm:$0xff] %v3360
      %3397 = vst [vmem:[%s170 + $0x90] sm:$0xff] %v3361
      %3398 = vst [vmem:[%s170 + $0x98] sm:$0xff] %v3362
      %3399 = vst [vmem:[%s170 + $0xa0] sm:$0xff] %v3363
      %3400 = vst [vmem:[%s170 + $0xa8] sm:$0xff] %v3364
      %3401 = vst [vmem:[%s170 + $0xb0] sm:$0xff] %v3365
      %3402 = vst [vmem:[%s170 + $0xb8] sm:$0xff] %v3366
      %3403 = vst [vmem:[%s170 + $0xc0] sm:$0xff] %v3367
      %3404 = vst [vmem:[%s170 + $0xc8] sm:$0xff] %v3368
      %3405 = vst [vmem:[%s170 + $0xd0] sm:$0xff] %v3369
      %3406 = vst [vmem:[%s170 + $0xd8] sm:$0xff] %v3370
      %3407 = vst [vmem:[%s170 + $0xe0] sm:$0xff] %v3371
      %3408 = vst [vmem:[%s170 + $0xe8] sm:$0xff] %v3372
      %3409 = vst [vmem:[%s170 + $0xf0] sm:$0xff] %v3373
      %3410 = vst [vmem:[%s170 + $0xf8] sm:$0xff] %v3374
      %3411 = vst [vmem:[%s170 + $0x100] sm:$0xff] %v3375
      %3412 = vst [vmem:[%s170 + $0x108] sm:$0xff] %v3376
      %3413 = vst [vmem:[%s170 + $0x110] sm:$0xff] %v3377
      %3414 = vst [vmem:[%s170 + $0x118] sm:$0xff] %v3378
      %v3415 = vld [vmem:[%s170] sm:$0xff]
      %v3416 = vld [vmem:[%s170 + $0x8] sm:$0xff]
      %v3417 = vld [vmem:[%s170 + $0x10] sm:$0xff]
      %v3418 = vld [vmem:[%s170 + $0x18] sm:$0xff]
      %v3419 = vld [vmem:[%s170 + $0x20] sm:$0xff]
      %v3420 = vld [vmem:[%s170 + $0x28] sm:$0xff]
      %v3421 = vld [vmem:[%s170 + $0x30] sm:$0xff]
      %v3422 = vld [vmem:[%s170 + $0x38] sm:$0xff]
      %v3423 = vld [vmem:[%s170 + $0x40] sm:$0xff]
      %v3424 = vld [vmem:[%s170 + $0x48] sm:$0xff]
      %v3425 = vld [vmem:[%s170 + $0x50] sm:$0xff]
      %v3426 = vld [vmem:[%s170 + $0x58] sm:$0xff]
      %v3427 = vld [vmem:[%s170 + $0x60] sm:$0xff]
      %v3428 = vld [vmem:[%s170 + $0x68] sm:$0xff]
      %v3429 = vld [vmem:[%s170 + $0x70] sm:$0xff]
      %v3430 = vld [vmem:[%s170 + $0x78] sm:$0xff]
      %v3431 = vld [vmem:[%s170 + $0x80] sm:$0xff]
      %v3432 = vld [vmem:[%s170 + $0x88] sm:$0xff]
      %v3433 = vld [vmem:[%s170 + $0x90] sm:$0xff]
      %v3434 = vld [vmem:[%s170 + $0x98] sm:$0xff]
      %v3435 = vld [vmem:[%s170 + $0xa0] sm:$0xff]
      %v3436 = vld [vmem:[%s170 + $0xa8] sm:$0xff]
      %v3437 = vld [vmem:[%s170 + $0xb0] sm:$0xff]
      %v3438 = vld [vmem:[%s170 + $0xb8] sm:$0xff]
      %v3439 = vld [vmem:[%s170 + $0xc0] sm:$0xff]
      %v3440 = vld [vmem:[%s170 + $0xc8] sm:$0xff]
      %v3441 = vld [vmem:[%s170 + $0xd0] sm:$0xff]
      %v3442 = vld [vmem:[%s170 + $0xd8] sm:$0xff]
      %v3443 = vld [vmem:[%s170 + $0xe0] sm:$0xff]
      %v3444 = vld [vmem:[%s170 + $0xe8] sm:$0xff]
      %v3445 = vld [vmem:[%s170 + $0xf0] sm:$0xff]
      %v3446 = vld [vmem:[%s170 + $0xf8] sm:$0xff]
      %v3447 = vld [vmem:[%s170 + $0x100] sm:$0xff]
      %v3448 = vld [vmem:[%s170 + $0x108] sm:$0xff]
      %v3449 = vld [vmem:[%s170 + $0x110] sm:$0xff]
      %v3450 = vld [vmem:[%s170 + $0x118] sm:$0xff]
      %v3451 = vld [vmem:[#allocation2 + $0x26] sm:$0xff]
      %v3452 = vld [vmem:[#allocation2 + $0x2e] sm:$0xff]
      %v3453 = vld [vmem:[#allocation2 + $0x36] sm:$0xff]
      %v3454 = vld [vmem:[#allocation2 + $0x3e] sm:$0xff]
      %v3455 = vld [vmem:[#allocation2 + $0x46] sm:$0xff]
      %v3456 = vld [vmem:[#allocation2 + $0x4e] sm:$0xff]
      %v3457 = vld [vmem:[#allocation2 + $0x56] sm:$0xff]
      %v3458 = vld [vmem:[#allocation2 + $0x5e] sm:$0xff]
      %v3459 = vld [vmem:[#allocation2 + $0x66] sm:$0xff]
      %v3460 = vld [vmem:[#allocation2 + $0x6e] sm:$0xff]
      %v3461 = vld [vmem:[#allocation2 + $0x76] sm:$0xff]
      %v3462 = vld [vmem:[#allocation2 + $0x7e] sm:$0xff]
      %v3463 = vld [vmem:[#allocation2 + $0x86] sm:$0xff]
      %v3464 = vld [vmem:[#allocation2 + $0x8e] sm:$0xff]
      %v3465 = vld [vmem:[#allocation2 + $0x96] sm:$0xff]
      %v3466 = vld [vmem:[#allocation2 + $0x9e] sm:$0xff]
      %v3467 = vld [vmem:[#allocation2 + $0xa6] sm:$0xff]
      %v3468 = vld [vmem:[#allocation2 + $0xae] sm:$0xff]
      %v3469 = vld [vmem:[#allocation2 + $0xb6] sm:$0xff]
      %v3470 = vld [vmem:[#allocation2 + $0xbe] sm:$0xff]
      %v3471 = vld [vmem:[#allocation2 + $0xc6] sm:$0xff]
      %v3472 = vld [vmem:[#allocation2 + $0xce] sm:$0xff]
      %v3473 = vld [vmem:[#allocation2 + $0xd6] sm:$0xff]
      %v3474 = vld [vmem:[#allocation2 + $0xde] sm:$0xff]
      %v3475 = vld [vmem:[#allocation2 + $0xe6] sm:$0xff]
      %v3476 = vld [vmem:[#allocation2 + $0xee] sm:$0xff]
      %v3477 = vld [vmem:[#allocation2 + $0xf6] sm:$0xff]
      %v3478 = vld [vmem:[#allocation2 + $0xfe] sm:$0xff]
      %v3479 = vld [vmem:[#allocation2 + $0x106] sm:$0xff]
      %v3480 = vld [vmem:[#allocation2 + $0x10e] sm:$0xff]
      %v3481 = vld [vmem:[#allocation2 + $0x116] sm:$0xff]
      %v3482 = vld [vmem:[#allocation2 + $0x11e] sm:$0xff]
      %v3483 = vld [vmem:[#allocation2 + $0x126] sm:$0xff]
      %v3484 = vld [vmem:[#allocation2 + $0x12e] sm:$0xff]
      %v3485 = vld [vmem:[#allocation2 + $0x136] sm:$0xff]
      %v3486 = vld [vmem:[#allocation2 + $0x13e] sm:$0xff]
      %v3487 = vpack.c.bf16 %v3452, %v3451
      %v3488 = vpack.c.bf16 %v3454, %v3453
      %v3489 = vpack.c.bf16 %v3456, %v3455
      %v3490 = vpack.c.bf16 %v3458, %v3457
      %v3491 = vpack.c.bf16 %v3460, %v3459
      %v3492 = vpack.c.bf16 %v3462, %v3461
      %v3493 = vpack.c.bf16 %v3464, %v3463
      %v3494 = vpack.c.bf16 %v3466, %v3465
      %v3495 = vpack.c.bf16 %v3468, %v3467
      %v3496 = vpack.c.bf16 %v3470, %v3469
      %v3497 = vpack.c.bf16 %v3472, %v3471
      %v3498 = vpack.c.bf16 %v3474, %v3473
      %v3499 = vpack.c.bf16 %v3476, %v3475
      %v3500 = vpack.c.bf16 %v3478, %v3477
      %v3501 = vpack.c.bf16 %v3480, %v3479
      %v3502 = vpack.c.bf16 %v3482, %v3481
      %v3503 = vpack.c.bf16 %v3484, %v3483
      %v3504 = vpack.c.bf16 %v3486, %v3485
      %s3505 = scalar_lea.vmem %s1, 16
      %v3506 = vld [vmem:[%s3505] sm:$0x3]
      %v3508 = vsel %vm258, %v3487, 0
      %v3511 = vsel %vm258, %v3488, 0
      %v3514 = vsel %vm258, %v3489, 0
      %v3517 = vsel %vm258, %v3490, 0
      %v3520 = vsel %vm258, %v3491, 0
      %v3523 = vsel %vm258, %v3492, 0
      %v3526 = vsel %vm258, %v3493, 0
      %v3529 = vsel %vm258, %v3494, 0
      %v3532 = vsel %vm258, %v3495, 0
      %v3535 = vsel %vm258, %v3496, 0
      %v3538 = vsel %vm258, %v3497, 0
      %v3541 = vsel %vm258, %v3498, 0
      %v3544 = vsel %vm258, %v3499, 0
      %v3547 = vsel %vm258, %v3500, 0
      %v3550 = vsel %vm258, %v3501, 0
      %v3553 = vsel %vm258, %v3502, 0
      %v3556 = vsel %vm258, %v3503, 0
      %v3559 = vsel %vm258, %v3504, 0
      %v3562 = vsel %vm412, %v3506, 0
      %3564 = vmatprep.subr.bf16.mxu0 0
      %3565 = vmatpush1.bf16.msra.mxu0 0
      %3566 = vmatprep.subr.bf16.mxu0 0
      %3567 = vmatpush1.bf16.msra.mxu0 0
      %3568 = vmatprep.subr.bf16.mxu0 0
      %3569 = vmatpush1.bf16.msra.mxu0 0
      %3570 = vmatprep.subr.bf16.mxu0 0
      %3571 = vmatpush1.bf16.msra.mxu0 0
      %3572 = vmatprep.subr.bf16.mxu0 0
      %3573 = vmatpush1.bf16.msra.mxu0 0
      %3574 = vmatprep.subr.bf16.mxu0 0
      %3575 = vmatpush1.bf16.msra.mxu0 0
      %3576 = vmatprep.subr.bf16.mxu0 0
      %3577 = vmatpush1.bf16.msra.mxu0 0
      %3578 = vmatprep.subr.bf16.mxu0 0
      %3579 = vmatpush1.bf16.msra.mxu0 %v3562
      %3580 = vmatprep.subr.bf16.mxu0 0
      %3581 = vmatpush2.bf16.msra.mxu0 0
      %3582 = vmatprep.subr.bf16.mxu0 0
      %3583 = vmatpush2.bf16.msra.mxu0 0
      %3584 = vmatprep.subr.bf16.mxu0 0
      %3585 = vmatpush2.bf16.msra.mxu0 0
      %3586 = vmatprep.subr.bf16.mxu0 0
      %3587 = vmatpush2.bf16.msra.mxu0 0
      %3588 = vmatprep.subr.bf16.mxu0 0
      %3589 = vmatpush2.bf16.msra.mxu0 0
      %3590 = vmatprep.subr.bf16.mxu0 0
      %3591 = vmatpush2.bf16.msra.mxu0 0
      %3592 = vmatprep.subr.bf16.mxu0 0
      %3593 = vmatpush2.bf16.msra.mxu0 0
      %3594 = vmatprep.subr.bf16.mxu0 0
      %3595 = vmatpush2.bf16.msra.mxu0 0
      %3596 = vmatprep.mubr.bf16.mxu0 0
      %3597 = vmatmul.mubr.bf16.gmra.mxu0 %v3508
      %v3598 = vpop.f32.mrf.mxu0
      %v3599 = vadd.f32 0.0, %v3598
      %v3600 = vpop.f32.mrf.mxu0
      %v3601 = vpop.f32.mrf.mxu0
      %v3602 = vadd.f32 0.0, %v3601
      %v3603 = vpop.f32.mrf.mxu0
      %3604 = vmatprep.mubr.bf16.mxu0 0
      %3605 = vmatmul.mubr.bf16.gmra.mxu0 %v3511
      %v3606 = vpop.f32.mrf.mxu0
      %v3607 = vadd.f32 0.0, %v3606
      %v3608 = vpop.f32.mrf.mxu0
      %v3609 = vpop.f32.mrf.mxu0
      %v3610 = vadd.f32 0.0, %v3609
      %v3611 = vpop.f32.mrf.mxu0
      %3612 = vmatprep.mubr.bf16.mxu0 0
      %3613 = vmatmul.mubr.bf16.gmra.mxu0 %v3514
      %v3614 = vpop.f32.mrf.mxu0
      %v3615 = vadd.f32 0.0, %v3614
      %v3616 = vpop.f32.mrf.mxu0
      %v3617 = vpop.f32.mrf.mxu0
      %v3618 = vadd.f32 0.0, %v3617
      %v3619 = vpop.f32.mrf.mxu0
      %3620 = vmatprep.mubr.bf16.mxu0 0
      %3621 = vmatmul.mubr.bf16.gmra.mxu0 %v3517
      %v3622 = vpop.f32.mrf.mxu0
      %v3623 = vadd.f32 0.0, %v3622
      %v3624 = vpop.f32.mrf.mxu0
      %v3625 = vpop.f32.mrf.mxu0
      %v3626 = vadd.f32 0.0, %v3625
      %v3627 = vpop.f32.mrf.mxu0
      %3628 = vmatprep.mubr.bf16.mxu0 0
      %3629 = vmatmul.mubr.bf16.gmra.mxu0 %v3520
      %v3630 = vpop.f32.mrf.mxu0
      %v3631 = vadd.f32 0.0, %v3630
      %v3632 = vpop.f32.mrf.mxu0
      %v3633 = vpop.f32.mrf.mxu0
      %v3634 = vadd.f32 0.0, %v3633
      %v3635 = vpop.f32.mrf.mxu0
      %3636 = vmatprep.mubr.bf16.mxu0 0
      %3637 = vmatmul.mubr.bf16.gmra.mxu0 %v3523
      %v3638 = vpop.f32.mrf.mxu0
      %v3639 = vadd.f32 0.0, %v3638
      %v3640 = vpop.f32.mrf.mxu0
      %v3641 = vpop.f32.mrf.mxu0
      %v3642 = vadd.f32 0.0, %v3641
      %v3643 = vpop.f32.mrf.mxu0
      %3644 = vmatprep.mubr.bf16.mxu0 0
      %3645 = vmatmul.mubr.bf16.gmra.mxu0 %v3526
      %v3646 = vpop.f32.mrf.mxu0
      %v3647 = vadd.f32 0.0, %v3646
      %v3648 = vpop.f32.mrf.mxu0
      %v3649 = vpop.f32.mrf.mxu0
      %v3650 = vadd.f32 0.0, %v3649
      %v3651 = vpop.f32.mrf.mxu0
      %3652 = vmatprep.mubr.bf16.mxu0 0
      %3653 = vmatmul.mubr.bf16.gmra.mxu0 %v3529
      %v3654 = vpop.f32.mrf.mxu0
      %v3655 = vadd.f32 0.0, %v3654
      %v3656 = vpop.f32.mrf.mxu0
      %v3657 = vpop.f32.mrf.mxu0
      %v3658 = vadd.f32 0.0, %v3657
      %v3659 = vpop.f32.mrf.mxu0
      %3660 = vmatprep.mubr.bf16.mxu0 0
      %3661 = vmatmul.mubr.bf16.gmra.mxu0 %v3532
      %v3662 = vpop.f32.mrf.mxu0
      %v3663 = vadd.f32 0.0, %v3662
      %v3664 = vpop.f32.mrf.mxu0
      %v3665 = vpop.f32.mrf.mxu0
      %v3666 = vadd.f32 0.0, %v3665
      %v3667 = vpop.f32.mrf.mxu0
      %3668 = vmatprep.mubr.bf16.mxu0 0
      %3669 = vmatmul.mubr.bf16.gmra.mxu0 %v3535
      %v3670 = vpop.f32.mrf.mxu0
      %v3671 = vadd.f32 0.0, %v3670
      %v3672 = vpop.f32.mrf.mxu0
      %v3673 = vpop.f32.mrf.mxu0
      %v3674 = vadd.f32 0.0, %v3673
      %v3675 = vpop.f32.mrf.mxu0
      %3676 = vmatprep.mubr.bf16.mxu0 0
      %3677 = vmatmul.mubr.bf16.gmra.mxu0 %v3538
      %v3678 = vpop.f32.mrf.mxu0
      %v3679 = vadd.f32 0.0, %v3678
      %v3680 = vpop.f32.mrf.mxu0
      %v3681 = vpop.f32.mrf.mxu0
      %v3682 = vadd.f32 0.0, %v3681
      %v3683 = vpop.f32.mrf.mxu0
      %3684 = vmatprep.mubr.bf16.mxu0 0
      %3685 = vmatmul.mubr.bf16.gmra.mxu0 %v3541
      %v3686 = vpop.f32.mrf.mxu0
      %v3687 = vadd.f32 0.0, %v3686
      %v3688 = vpop.f32.mrf.mxu0
      %v3689 = vpop.f32.mrf.mxu0
      %v3690 = vadd.f32 0.0, %v3689
      %v3691 = vpop.f32.mrf.mxu0
      %3692 = vmatprep.mubr.bf16.mxu0 0
      %3693 = vmatmul.mubr.bf16.gmra.mxu0 %v3544
      %v3694 = vpop.f32.mrf.mxu0
      %v3695 = vadd.f32 0.0, %v3694
      %v3696 = vpop.f32.mrf.mxu0
      %v3697 = vpop.f32.mrf.mxu0
      %v3698 = vadd.f32 0.0, %v3697
      %v3699 = vpop.f32.mrf.mxu0
      %3700 = vmatprep.mubr.bf16.mxu0 0
      %3701 = vmatmul.mubr.bf16.gmra.mxu0 %v3547
      %v3702 = vpop.f32.mrf.mxu0
      %v3703 = vadd.f32 0.0, %v3702
      %v3704 = vpop.f32.mrf.mxu0
      %v3705 = vpop.f32.mrf.mxu0
      %v3706 = vadd.f32 0.0, %v3705
      %v3707 = vpop.f32.mrf.mxu0
      %3708 = vmatprep.mubr.bf16.mxu0 0
      %3709 = vmatmul.mubr.bf16.gmra.mxu0 %v3550
      %v3710 = vpop.f32.mrf.mxu0
      %v3711 = vadd.f32 0.0, %v3710
      %v3712 = vpop.f32.mrf.mxu0
      %v3713 = vpop.f32.mrf.mxu0
      %v3714 = vadd.f32 0.0, %v3713
      %v3715 = vpop.f32.mrf.mxu0
      %3716 = vmatprep.mubr.bf16.mxu0 0
      %3717 = vmatmul.mubr.bf16.gmra.mxu0 %v3553
      %v3718 = vpop.f32.mrf.mxu0
      %v3719 = vadd.f32 0.0, %v3718
      %v3720 = vpop.f32.mrf.mxu0
      %v3721 = vpop.f32.mrf.mxu0
      %v3722 = vadd.f32 0.0, %v3721
      %v3723 = vpop.f32.mrf.mxu0
      %3724 = vmatprep.mubr.bf16.mxu0 0
      %3725 = vmatmul.mubr.bf16.gmra.mxu0 %v3556
      %v3726 = vpop.f32.mrf.mxu0
      %v3727 = vadd.f32 0.0, %v3726
      %v3728 = vpop.f32.mrf.mxu0
      %v3729 = vpop.f32.mrf.mxu0
      %v3730 = vadd.f32 0.0, %v3729
      %v3731 = vpop.f32.mrf.mxu0
      %3732 = vmatprep.mubr.bf16.mxu0 0
      %3733 = vmatmul.mubr.bf16.gmra.mxu0 %v3559
      %v3734 = vpop.f32.mrf.mxu0
      %v3735 = vadd.f32 0.0, %v3734
      %v3736 = vpop.f32.mrf.mxu0
      %v3737 = vpop.f32.mrf.mxu0
      %v3738 = vadd.f32 0.0, %v3737
      %v3739 = vpop.f32.mrf.mxu0
      %3740 = vdwg.mxu0
      %v3741 = vadd.f32 %v3415, %v3599
      %v3742 = vadd.f32 %v3416, %v3602
      %v3743 = vadd.f32 %v3417, %v3607
      %v3744 = vadd.f32 %v3418, %v3610
      %v3745 = vadd.f32 %v3419, %v3615
      %v3746 = vadd.f32 %v3420, %v3618
      %v3747 = vadd.f32 %v3421, %v3623
      %v3748 = vadd.f32 %v3422, %v3626
      %v3749 = vadd.f32 %v3423, %v3631
      %v3750 = vadd.f32 %v3424, %v3634
      %v3751 = vadd.f32 %v3425, %v3639
      %v3752 = vadd.f32 %v3426, %v3642
      %v3753 = vadd.f32 %v3427, %v3647
      %v3754 = vadd.f32 %v3428, %v3650
      %v3755 = vadd.f32 %v3429, %v3655
      %v3756 = vadd.f32 %v3430, %v3658
      %v3757 = vadd.f32 %v3431, %v3663
      %v3758 = vadd.f32 %v3432, %v3666
      %v3759 = vadd.f32 %v3433, %v3671
      %v3760 = vadd.f32 %v3434, %v3674
      %v3761 = vadd.f32 %v3435, %v3679
      %v3762 = vadd.f32 %v3436, %v3682
      %v3763 = vadd.f32 %v3437, %v3687
      %v3764 = vadd.f32 %v3438, %v3690
      %v3765 = vadd.f32 %v3439, %v3695
      %v3766 = vadd.f32 %v3440, %v3698
      %v3767 = vadd.f32 %v3441, %v3703
      %v3768 = vadd.f32 %v3442, %v3706
      %v3769 = vadd.f32 %v3443, %v3711
      %v3770 = vadd.f32 %v3444, %v3714
      %v3771 = vadd.f32 %v3445, %v3719
      %v3772 = vadd.f32 %v3446, %v3722
      %v3773 = vadd.f32 %v3447, %v3727
      %v3774 = vadd.f32 %v3448, %v3730
      %v3775 = vadd.f32 %v3449, %v3735
      %v3776 = vadd.f32 %v3450, %v3738
      %3777 = vst [vmem:[%s170] sm:$0xff] %v3741
      %3778 = vst [vmem:[%s170 + $0x8] sm:$0xff] %v3742
      %3779 = vst [vmem:[%s170 + $0x10] sm:$0xff] %v3743
      %3780 = vst [vmem:[%s170 + $0x18] sm:$0xff] %v3744
      %3781 = vst [vmem:[%s170 + $0x20] sm:$0xff] %v3745
      %3782 = vst [vmem:[%s170 + $0x28] sm:$0xff] %v3746
      %3783 = vst [vmem:[%s170 + $0x30] sm:$0xff] %v3747
      %3784 = vst [vmem:[%s170 + $0x38] sm:$0xff] %v3748
      %3785 = vst [vmem:[%s170 + $0x40] sm:$0xff] %v3749
      %3786 = vst [vmem:[%s170 + $0x48] sm:$0xff] %v3750
      %3787 = vst [vmem:[%s170 + $0x50] sm:$0xff] %v3751
      %3788 = vst [vmem:[%s170 + $0x58] sm:$0xff] %v3752
      %3789 = vst [vmem:[%s170 + $0x60] sm:$0xff] %v3753
      %3790 = vst [vmem:[%s170 + $0x68] sm:$0xff] %v3754
      %3791 = vst [vmem:[%s170 + $0x70] sm:$0xff] %v3755
      %3792 = vst [vmem:[%s170 + $0x78] sm:$0xff] %v3756
      %3793 = vst [vmem:[%s170 + $0x80] sm:$0xff] %v3757
      %3794 = vst [vmem:[%s170 + $0x88] sm:$0xff] %v3758
      %3795 = vst [vmem:[%s170 + $0x90] sm:$0xff] %v3759
      %3796 = vst [vmem:[%s170 + $0x98] sm:$0xff] %v3760
      %3797 = vst [vmem:[%s170 + $0xa0] sm:$0xff] %v3761
      %3798 = vst [vmem:[%s170 + $0xa8] sm:$0xff] %v3762
      %3799 = vst [vmem:[%s170 + $0xb0] sm:$0xff] %v3763
      %3800 = vst [vmem:[%s170 + $0xb8] sm:$0xff] %v3764
      %3801 = vst [vmem:[%s170 + $0xc0] sm:$0xff] %v3765
      %3802 = vst [vmem:[%s170 + $0xc8] sm:$0xff] %v3766
      %3803 = vst [vmem:[%s170 + $0xd0] sm:$0xff] %v3767
      %3804 = vst [vmem:[%s170 + $0xd8] sm:$0xff] %v3768
      %3805 = vst [vmem:[%s170 + $0xe0] sm:$0xff] %v3769
      %3806 = vst [vmem:[%s170 + $0xe8] sm:$0xff] %v3770
      %3807 = vst [vmem:[%s170 + $0xf0] sm:$0xff] %v3771
      %3808 = vst [vmem:[%s170 + $0xf8] sm:$0xff] %v3772
      %3809 = vst [vmem:[%s170 + $0x100] sm:$0xff] %v3773
      %3810 = vst [vmem:[%s170 + $0x108] sm:$0xff] %v3774
      %3811 = vst [vmem:[%s170 + $0x110] sm:$0xff] %v3775
      %3812 = vst [vmem:[%s170 + $0x118] sm:$0xff] %v3776
      %v3813 = vld [vmem:[%s170] sm:$0xff]
      %v3814 = vld [vmem:[%s170 + $0x8] sm:$0xff]
      %v3815 = vld [vmem:[%s170 + $0x10] sm:$0xff]
      %v3816 = vld [vmem:[%s170 + $0x18] sm:$0xff]
      %v3817 = vld [vmem:[%s170 + $0x20] sm:$0xff]
      %v3818 = vld [vmem:[%s170 + $0x28] sm:$0xff]
      %v3819 = vld [vmem:[%s170 + $0x30] sm:$0xff]
      %v3820 = vld [vmem:[%s170 + $0x38] sm:$0xff]
      %v3821 = vld [vmem:[%s170 + $0x40] sm:$0xff]
      %v3822 = vld [vmem:[%s170 + $0x48] sm:$0xff]
      %v3823 = vld [vmem:[%s170 + $0x50] sm:$0xff]
      %v3824 = vld [vmem:[%s170 + $0x58] sm:$0xff]
      %v3825 = vld [vmem:[%s170 + $0x60] sm:$0xff]
      %v3826 = vld [vmem:[%s170 + $0x68] sm:$0xff]
      %v3827 = vld [vmem:[%s170 + $0x70] sm:$0xff]
      %v3828 = vld [vmem:[%s170 + $0x78] sm:$0xff]
      %v3829 = vld [vmem:[%s170 + $0x80] sm:$0xff]
      %v3830 = vld [vmem:[%s170 + $0x88] sm:$0xff]
      %v3831 = vld [vmem:[%s170 + $0x90] sm:$0xff]
      %v3832 = vld [vmem:[%s170 + $0x98] sm:$0xff]
      %v3833 = vld [vmem:[%s170 + $0xa0] sm:$0xff]
      %v3834 = vld [vmem:[%s170 + $0xa8] sm:$0xff]
      %v3835 = vld [vmem:[%s170 + $0xb0] sm:$0xff]
      %v3836 = vld [vmem:[%s170 + $0xb8] sm:$0xff]
      %v3837 = vld [vmem:[%s170 + $0xc0] sm:$0xff]
      %v3838 = vld [vmem:[%s170 + $0xc8] sm:$0xff]
      %v3839 = vld [vmem:[%s170 + $0xd0] sm:$0xff]
      %v3840 = vld [vmem:[%s170 + $0xd8] sm:$0xff]
      %v3841 = vld [vmem:[%s170 + $0xe0] sm:$0xff]
      %v3842 = vld [vmem:[%s170 + $0xe8] sm:$0xff]
      %v3843 = vld [vmem:[%s170 + $0xf0] sm:$0xff]
      %v3844 = vld [vmem:[%s170 + $0xf8] sm:$0xff]
      %v3845 = vld [vmem:[%s170 + $0x100] sm:$0xff]
      %v3846 = vld [vmem:[%s170 + $0x108] sm:$0xff]
      %v3847 = vld [vmem:[%s170 + $0x110] sm:$0xff]
      %v3848 = vld [vmem:[%s170 + $0x118] sm:$0xff]
      %v3849 = vld [vmem:[%s2] sm:$0x1]
      %v3851 = vlaneseq
      %v3852 = vshrl.u32 %v3851, 7
      %v3853 = vsub.s32 0, %v3852
      %v3854 = vrot.slane %v3849, %v3853
      %v3856 = vadd.f32 %v3813, %v3854
      %v3857 = vadd.f32 %v3814, %v3854
      %v3858 = vadd.f32 %v3815, %v3854
      %v3859 = vadd.f32 %v3816, %v3854
      %v3860 = vadd.f32 %v3817, %v3854
      %v3861 = vadd.f32 %v3818, %v3854
      %v3862 = vadd.f32 %v3819, %v3854
      %v3863 = vadd.f32 %v3820, %v3854
      %v3864 = vadd.f32 %v3821, %v3854
      %v3865 = vadd.f32 %v3822, %v3854
      %v3866 = vadd.f32 %v3823, %v3854
      %v3867 = vadd.f32 %v3824, %v3854
      %v3868 = vadd.f32 %v3825, %v3854
      %v3869 = vadd.f32 %v3826, %v3854
      %v3870 = vadd.f32 %v3827, %v3854
      %v3871 = vadd.f32 %v3828, %v3854
      %v3872 = vadd.f32 %v3829, %v3854
      %v3873 = vadd.f32 %v3830, %v3854
      %v3874 = vadd.f32 %v3831, %v3854
      %v3875 = vadd.f32 %v3832, %v3854
      %v3876 = vadd.f32 %v3833, %v3854
      %v3877 = vadd.f32 %v3834, %v3854
      %v3878 = vadd.f32 %v3835, %v3854
      %v3879 = vadd.f32 %v3836, %v3854
      %v3880 = vadd.f32 %v3837, %v3854
      %v3881 = vadd.f32 %v3838, %v3854
      %v3882 = vadd.f32 %v3839, %v3854
      %v3883 = vadd.f32 %v3840, %v3854
      %v3884 = vadd.f32 %v3841, %v3854
      %v3885 = vadd.f32 %v3842, %v3854
      %v3886 = vadd.f32 %v3843, %v3854
      %v3887 = vadd.f32 %v3844, %v3854
      %v3888 = vadd.f32 %v3845, %v3854
      %v3889 = vadd.f32 %v3846, %v3854
      %v3890 = vadd.f32 %v3847, %v3854
      %v3891 = vadd.f32 %v3848, %v3854
      %v3892 = vmax.f32 %v3856, 0.0
      %v3893 = vmax.f32 %v3857, 0.0
      %v3894 = vmax.f32 %v3858, 0.0
      %v3895 = vmax.f32 %v3859, 0.0
      %v3896 = vmax.f32 %v3860, 0.0
      %v3897 = vmax.f32 %v3861, 0.0
      %v3898 = vmax.f32 %v3862, 0.0
      %v3899 = vmax.f32 %v3863, 0.0
      %v3900 = vmax.f32 %v3864, 0.0
      %v3901 = vmax.f32 %v3865, 0.0
      %v3902 = vmax.f32 %v3866, 0.0
      %v3903 = vmax.f32 %v3867, 0.0
      %v3904 = vmax.f32 %v3868, 0.0
      %v3905 = vmax.f32 %v3869, 0.0
      %v3906 = vmax.f32 %v3870, 0.0
      %v3907 = vmax.f32 %v3871, 0.0
      %v3908 = vmax.f32 %v3872, 0.0
      %v3909 = vmax.f32 %v3873, 0.0
      %v3910 = vmax.f32 %v3874, 0.0
      %v3911 = vmax.f32 %v3875, 0.0
      %v3912 = vmax.f32 %v3876, 0.0
      %v3913 = vmax.f32 %v3877, 0.0
      %v3914 = vmax.f32 %v3878, 0.0
      %v3915 = vmax.f32 %v3879, 0.0
      %v3916 = vmax.f32 %v3880, 0.0
      %v3917 = vmax.f32 %v3881, 0.0
      %v3918 = vmax.f32 %v3882, 0.0
      %v3919 = vmax.f32 %v3883, 0.0
      %v3920 = vmax.f32 %v3884, 0.0
      %v3921 = vmax.f32 %v3885, 0.0
      %v3922 = vmax.f32 %v3886, 0.0
      %v3923 = vmax.f32 %v3887, 0.0
      %v3924 = vmax.f32 %v3888, 0.0
      %v3925 = vmax.f32 %v3889, 0.0
      %v3926 = vmax.f32 %v3890, 0.0
      %v3927 = vmax.f32 %v3891, 0.0
      %3928 = vst [vmem:[%s170] sm:$0xff] %v3892
      %3929 = vst [vmem:[%s170 + $0x8] sm:$0xff] %v3893
      %3930 = vst [vmem:[%s170 + $0x10] sm:$0xff] %v3894
      %3931 = vst [vmem:[%s170 + $0x18] sm:$0xff] %v3895
      %3932 = vst [vmem:[%s170 + $0x20] sm:$0xff] %v3896
      %3933 = vst [vmem:[%s170 + $0x28] sm:$0xff] %v3897
      %3934 = vst [vmem:[%s170 + $0x30] sm:$0xff] %v3898
      %3935 = vst [vmem:[%s170 + $0x38] sm:$0xff] %v3899
      %3936 = vst [vmem:[%s170 + $0x40] sm:$0xff] %v3900
      %3937 = vst [vmem:[%s170 + $0x48] sm:$0xff] %v3901
      %3938 = vst [vmem:[%s170 + $0x50] sm:$0xff] %v3902
      %3939 = vst [vmem:[%s170 + $0x58] sm:$0xff] %v3903
      %3940 = vst [vmem:[%s170 + $0x60] sm:$0xff] %v3904
      %3941 = vst [vmem:[%s170 + $0x68] sm:$0xff] %v3905
      %3942 = vst [vmem:[%s170 + $0x70] sm:$0xff] %v3906
      %3943 = vst [vmem:[%s170 + $0x78] sm:$0xff] %v3907
      %3944 = vst [vmem:[%s170 + $0x80] sm:$0xff] %v3908
      %3945 = vst [vmem:[%s170 + $0x88] sm:$0xff] %v3909
      %3946 = vst [vmem:[%s170 + $0x90] sm:$0xff] %v3910
      %3947 = vst [vmem:[%s170 + $0x98] sm:$0xff] %v3911
      %3948 = vst [vmem:[%s170 + $0xa0] sm:$0xff] %v3912
      %3949 = vst [vmem:[%s170 + $0xa8] sm:$0xff] %v3913
      %3950 = vst [vmem:[%s170 + $0xb0] sm:$0xff] %v3914
      %3951 = vst [vmem:[%s170 + $0xb8] sm:$0xff] %v3915
      %3952 = vst [vmem:[%s170 + $0xc0] sm:$0xff] %v3916
      %3953 = vst [vmem:[%s170 + $0xc8] sm:$0xff] %v3917
      %3954 = vst [vmem:[%s170 + $0xd0] sm:$0xff] %v3918
      %3955 = vst [vmem:[%s170 + $0xd8] sm:$0xff] %v3919
      %3956 = vst [vmem:[%s170 + $0xe0] sm:$0xff] %v3920
      %3957 = vst [vmem:[%s170 + $0xe8] sm:$0xff] %v3921
      %3958 = vst [vmem:[%s170 + $0xf0] sm:$0xff] %v3922
      %3959 = vst [vmem:[%s170 + $0xf8] sm:$0xff] %v3923
      %3960 = vst [vmem:[%s170 + $0x100] sm:$0xff] %v3924
      %3961 = vst [vmem:[%s170 + $0x108] sm:$0xff] %v3925
      %3962 = vst [vmem:[%s170 + $0x110] sm:$0xff] %v3926
      %3963 = vst [vmem:[%s170 + $0x118] sm:$0xff] %v3927
      %p3964 = scmp.lt.s32.totalorder %s14, 1
      %s3965 = scalar_select %p3964, %s14, 1
      %s3966 = smul.addr %s3965, 36
      %s3967 = smul.addr %s3966, 8
      %s3968 = scalar_lea.vmem %s3, %s3967
      // Predicated region
      $region33: #{basic_conv2d.1} parent=31 // pred_check
        %p3969 = pneg %p100
      $region34: #{basic_conv2d.1} parent=31 // pred_check_branch
        %3971 = sbr.rel (%p3969) target = $region36
      $region35: #{basic_conv2d.1} parent=31 // pred_region
        _
      $region36: #{basic_conv2d.1} parent=31 // pred_fallthru
        _
    $region32: #{basic_conv2d.1} parent=5 // pred_fallthru
      _
    %p3972 = scmp.le.s32.totalorder 2, %s9
    // Predicated region
    $region37: #{basic_conv2d.1} parent=5 // pred_check
      %p3973 = pneg %p3972
    $region38: #{basic_conv2d.1} parent=5 // pred_check_branch
      %3975 = sbr.rel (%p3973) target = $region40
    $region39: #{basic_conv2d.1} parent=5 // pred_region
      %s3976 = ssub.s32 %s9, 2
      // Predicated region
      $region41: #{basic_conv2d.1} parent=39 // pred_check
        %p3977 = pneg %p106
      $region42: #{basic_conv2d.1} parent=39 // pred_check_branch
        %3979 = sbr.rel (%p3977) target = $region44
      $region43: #{basic_conv2d.1} parent=39 // pred_region
        %p3980 = scmp.lt.s32.totalorder %s15, 1
        %s3981 = scalar_select %p3980, %s15, 1
        %s3982 = smul.addr %s3981, 36
        %s3983 = smul.addr %s3982, 8
        %s3984 = scalar_lea.vmem %s3, %s3983
      $region44: #{basic_conv2d.1} parent=39 // pred_fallthru
        _
    $region40: #{basic_conv2d.1} parent=5 // pred_fallthru
      _
  $region6: #{basic_conv2d.1} parent=0 // loop_footer
    %s13 = sadd.s32 1, %s9
  $region7: #{basic_conv2d.1} parent=0 // loop_footer_branch
    %8 = sbr.rel target = $region3
  $region8: #{basic_conv2d.1} parent=0 // loop_exit
    _

</llo_original>
